<compile_context>
chip_gen: v7x
topology: tpu7x:2x2x1
jax: 0.10.0
libtpu: 0.0.40
codegen_flags: <defaults>
</compile_context>

<pallas_src>
import math

import jax
import jax.numpy as jnp
from jax.experimental import pallas as pl
from jax.experimental.pallas import tpu as pltpu

LANE = 128
SUB = 8


# -----------------------------------------------------------------------------
# Kernel 1: fc1 (the hot matmul, K = 32768) + bias + ReLU.
#
# This layer is pure weight streaming (w1 = 128 MiB f32 vs a tiny M=8 batch),
# so it is HBM-bandwidth bound.  Tiles are large (tk=4096, tn=512 -> 8 MiB
# weight block, 16 MiB double-buffered) to cut per-grid-step pipeline overhead
# (64 -> 16 steps) while staying within the v7x 64 MiB/TC VMEM budget.  The N
# axis is the first grid axis and "parallel" so its 2 tiles shard across the
# two TensorCores on v7x.  Activations (1 MiB) stay fully VMEM-resident and
# are sliced per-k inside the kernel; the f32 output block is resident across
# the k axis and used directly as the accumulator (no scratch, no final copy):
# bias initializes it at k==0, ReLU is applied only on the last k step.
# -----------------------------------------------------------------------------
def _fc1_kernel(x_ref, w_ref, b_ref, o_ref):
    k = pl.program_id(1)
    tk = w_ref.shape[0]

    @pl.when(k == 0)
    def _():
        # Initialize the resident accumulator with the broadcast bias.
        o_ref[...] = jnp.broadcast_to(b_ref[...], o_ref.shape)

    x_blk = x_ref[:, pl.ds(pl.multiple_of(k * tk, tk), tk)]
    o_ref[...] += jnp.dot(x_blk, w_ref[...], preferred_element_type=jnp.float32)

    @pl.when(k == pl.num_programs(1) - 1)
    def _():
        # ReLU only after the full K reduction.
        o_ref[...] = jnp.maximum(o_ref[...], 0.0)


def fc1_relu(x, w, b2d, *, tn=512, tk=4096):
    M, K = x.shape
    _, N = w.shape
    assert K % tk == 0 and N % tn == 0
    return pl.pallas_call(
        _fc1_kernel,
        out_shape=jax.ShapeDtypeStruct((M, N), jnp.float32),
        grid_spec=pltpu.PrefetchScalarGridSpec(
            num_scalar_prefetch=0,
            grid=(N // tn, K // tk),
            in_specs=[
                pl.BlockSpec((M, K), lambda j, k: (0, 0)),    # activations, resident
                pl.BlockSpec((tk, tn), lambda j, k: (k, j)),  # weights (streamed)
                pl.BlockSpec((1, tn), lambda j, k: (0, j)),   # bias
            ],
            out_specs=pl.BlockSpec((M, tn), lambda j, k: (0, j)),
        ),
        compiler_params=pltpu.CompilerParams(
            dimension_semantics=("parallel", "arbitrary"),
            vmem_limit_bytes=32 * 1024 * 1024,
        ),
    )(x, w, b2d)


# -----------------------------------------------------------------------------
# Kernel 2: fc2 (1024 -> 2, zero-padded to 128 lanes) + log_softmax.
# Padded fc2 bias columns are -1e30 so exp(z - m) underflows to 0 in the
# log-softmax normalizer; padded output columns are sliced off in the wrapper.
# -----------------------------------------------------------------------------
def _head_kernel(h_ref, w2_ref, b2_ref, o_ref):
    z = jnp.dot(h_ref[...], w2_ref[...], preferred_element_type=jnp.float32)
    z = z + b2_ref[...]
    m = jnp.max(z, axis=1, keepdims=True)
    lse = jnp.log(jnp.sum(jnp.exp(z - m), axis=1, keepdims=True)) + m
    o_ref[...] = (z - lse).astype(o_ref.dtype)


def head_fc2_logsoftmax(h, w2p, b2p):
    M = h.shape[0]
    return pl.pallas_call(
        _head_kernel,
        out_shape=jax.ShapeDtypeStruct((M, LANE), jnp.float32),
        in_specs=[
            pl.BlockSpec(memory_space=pltpu.MemorySpace.VMEM),
            pl.BlockSpec(memory_space=pltpu.MemorySpace.VMEM),
            pl.BlockSpec(memory_space=pltpu.MemorySpace.VMEM),
        ],
        out_specs=pl.BlockSpec(memory_space=pltpu.MemorySpace.VMEM),
    )(h, w2p, b2p)


# -----------------------------------------------------------------------------
# Parameter preprocessing (done ONCE, hoisted out of the per-call forward).
# -----------------------------------------------------------------------------
def prepare_params(params):
    w1, b1, w2, b2 = params
    b1_2d = b1.reshape(1, -1).astype(jnp.float32)
    w2p = jnp.zeros((w2.shape[0], LANE), jnp.float32).at[:, : w2.shape[1]].set(w2)
    b2p = jnp.full((1, LANE), -1e30, jnp.float32).at[:, : b2.shape[0]].set(b2)
    return (w1.astype(jnp.float32), b1_2d, w2p, b2p)


# -----------------------------------------------------------------------------
# Full model forward.
# -----------------------------------------------------------------------------
def net0_forward(x_nchw, prepared):
    w1, b1_2d, w2p, b2p = prepared
    B = x_nchw.shape[0]
    xf = x_nchw.reshape(B, -1).astype(jnp.float32)            # torch.flatten(x, 1)
    assert xf.shape[1] == 8192 * 4

    # Pad batch to a sublane multiple (8) with zero rows.
    Mp = max(SUB, ((B + SUB - 1) // SUB) * SUB)
    xp = jnp.zeros((Mp, xf.shape[1]), jnp.float32).at[:B].set(xf)

    h = fc1_relu(xp, w1, b1_2d)              # fc1 + relu (dropout1 = identity)
    out = head_fc2_logsoftmax(h, w2p, b2p)   # fc2 + log_softmax  (Mp, 128)
    return out[:B, :2]                        # (B, 2) log-probs


def init_params(key):
    ks = jax.random.split(key, 4)

    def lin(kw, kb, fan_in, fan_out):
        bound = 1.0 / math.sqrt(fan_in)
        w = jax.random.uniform(kw, (fan_in, fan_out), jnp.float32, -bound, bound)
        b = jax.random.uniform(kb, (fan_out,), jnp.float32, -bound, bound)
        return w, b

    w1, b1 = lin(ks[0], ks[1], 8192 * 4, 1024)
    w2, b2 = lin(ks[2], ks[3], 1024, 2)
    return (w1, b1, w2, b2)


if __name__ == "__main__":
    key = jax.random.PRNGKey(0)
    kx, kp = jax.random.split(key)

    # Feature count is fixed by the module: 4*64*128 = 32768 = 8192*4.
    x = jax.random.normal(kx, (2, 4, 64, 128), jnp.float32)
    params = init_params(kp)
    prepared = prepare_params(params)        # one-time padding, outside forward

    out = jax.jit(net0_forward)(x, prepared)
    out = jax.block_until_ready(out)

    # Sanity: shape and normalized log-probs.
    assert out.shape == (2, 2)
    probs_sum = jnp.sum(jnp.exp(out), axis=1)
    assert bool(jnp.all(jnp.abs(probs_sum - 1.0) < 1e-4))

    # Pure-JAX reference check (same f32 math, different accumulation order).
    w1, b1, w2, b2 = params
    xf = x.reshape(2, -1)
    h_ref = jnp.maximum(xf @ w1 + b1, 0.0)
    ref = jax.nn.log_softmax(h_ref @ w2 + b2, axis=1)
    assert bool(jnp.allclose(out, ref, atol=1e-3, rtol=1e-3))

    print("KERNEL_OK")
</pallas_src>

<mosaic_0001>
module attributes {stable_mosaic.version = 11 : i64} {
  func.func @_head_kernel(%arg0: memref<8x1024xf32, #tpu.memory_space<vmem>>, %arg1: memref<1024x128xf32, #tpu.memory_space<vmem>>, %arg2: memref<1x128xf32, #tpu.memory_space<vmem>>, %arg3: memref<8x128xf32, #tpu.memory_space<vmem>>) attributes {dimension_semantics = [], scalar_prefetch = 0 : i64, scratch_operands = 0 : i64, tpu.core_type = #tpu.core_type<tc>} {
    %c0 = arith.constant 0 : index
    %c0_0 = arith.constant 0 : index
    %0 = vector.load %arg0[%c0, %c0_0] : memref<8x1024xf32, #tpu.memory_space<vmem>>, vector<8x1024xf32>
    %c0_1 = arith.constant 0 : index
    %c0_2 = arith.constant 0 : index
    %1 = vector.load %arg1[%c0_1, %c0_2] : memref<1024x128xf32, #tpu.memory_space<vmem>>, vector<1024x128xf32>
    %cst = arith.constant dense<0.000000e+00> : vector<8x128xf32>
    %2 = tpu.matmul %0, %1, %cst {dimension_numbers = #tpu.dot_dimension_numbers<[1], [0], [0], [1], [0, 0, 1, 1], [], []>} : vector<8x1024xf32>, vector<1024x128xf32>, vector<8x128xf32> -> vector<8x128xf32>
    %c0_3 = arith.constant 0 : index
    %c0_4 = arith.constant 0 : index
    %3 = vector.load %arg2[%c0_3, %c0_4] : memref<1x128xf32, #tpu.memory_space<vmem>>, vector<1x128xf32>
    %4 = vector.broadcast %3 : vector<1x128xf32> to vector<8x128xf32>
    %5 = arith.addf %2, %4 : vector<8x128xf32>
    %cst_5 = arith.constant dense<0xFF800000> : vector<8xf32>
    %6 = vector.multi_reduction <maximumf>, %5, %cst_5 [1] : vector<8x128xf32> to vector<8xf32>
    %7 = vector.shape_cast %6 : vector<8xf32> to vector<8x1xf32>
    %8 = vector.broadcast %7 : vector<8x1xf32> to vector<8x128xf32>
    %9 = arith.subf %5, %8 : vector<8x128xf32>
    %10 = math.exp %9 : vector<8x128xf32>
    %cst_6 = arith.constant dense<0.000000e+00> : vector<8xf32>
    %11 = vector.multi_reduction <add>, %10, %cst_6 [1] : vector<8x128xf32> to vector<8xf32>
    %12 = vector.shape_cast %11 : vector<8xf32> to vector<8x1xf32>
    %13 = math.log %12 : vector<8x1xf32>
    %14 = arith.addf %13, %7 : vector<8x1xf32>
    %15 = vector.broadcast %14 : vector<8x1xf32> to vector<8x128xf32>
    %16 = arith.subf %5, %15 : vector<8x128xf32>
    %c0_7 = arith.constant 0 : index
    %c0_8 = arith.constant 0 : index
    %17 = vector.load %arg3[%c0_7, %c0_8] : memref<8x128xf32, #tpu.memory_space<vmem>>, vector<8x128xf32>
    tpu.vector_store %arg3[%c0_7, %c0_8], %16 {strides = array<i32>} : memref<8x128xf32, #tpu.memory_space<vmem>>, vector<8x128xf32>,
    return
  }
}

module attributes {stable_mosaic.version = 11 : i64} {
  func.func @_fc1_kernel(%arg0: i32, %arg1: i32, %arg2: memref<8x32768xf32, #tpu.memory_space<vmem>>, %arg3: memref<4096x512xf32, #tpu.memory_space<vmem>>, %arg4: memref<1x512xf32, #tpu.memory_space<vmem>>, %arg5: memref<8x512xf32, #tpu.memory_space<vmem>>) attributes {dimension_semantics = [#tpu.dimension_semantics<parallel>, #tpu.dimension_semantics<arbitrary>], iteration_bounds = array<i64: 2, 8>, scalar_prefetch = 0 : i64, scratch_operands = 0 : i64, tpu.core_type = #tpu.core_type<tc>, window_params = [{pipeline_mode = #tpu.pipeline_mode<synchronous>, transform_indices = @transform_0, window_bounds = array<i64: 8, 32768>}, {transform_indices = @transform_1, window_bounds = array<i64: 4096, 512>}, {transform_indices = @transform_2, window_bounds = array<i64: 1, 512>}, {transform_indices = @transform_3, window_bounds = array<i64: 8, 512>}]} {
    %c0_i32 = arith.constant 0 : i32
    %0 = arith.cmpi eq, %arg1, %c0_i32 : i32
    %1 = arith.extui %0 : i1 to i32
    %c0_i32_0 = arith.constant 0 : i32
    %2 = arith.cmpi ne, %1, %c0_i32_0 : i32
    scf.if %2 {
      %c0_8 = arith.constant 0 : index
      %c0_9 = arith.constant 0 : index
      %15 = vector.load %arg4[%c0_8, %c0_9] : memref<1x512xf32, #tpu.memory_space<vmem>>, vector<1x512xf32>
      %16 = vector.shape_cast %15 : vector<1x512xf32> to vector<1x512xf32>
      %17 = vector.broadcast %16 : vector<1x512xf32> to vector<8x512xf32>
      %c0_10 = arith.constant 0 : index
      %c0_11 = arith.constant 0 : index
      %18 = vector.load %arg5[%c0_10, %c0_11] : memref<8x512xf32, #tpu.memory_space<vmem>>, vector<8x512xf32>
      tpu.vector_store %arg5[%c0_10, %c0_11], %17 {strides = array<i32>} : memref<8x512xf32, #tpu.memory_space<vmem>>, vector<8x512xf32>,
    } else {
    }
    %c4096_i32 = arith.constant 4096 : i32
    %3 = arith.muli %arg1, %c4096_i32 : i32
    %4 = tpu.assume_multiple %3, 4096 : i32
    %c0 = arith.constant 0 : index
    %5 = arith.index_cast %4 : i32 to index
    %6 = vector.load %arg2[%c0, %5] : memref<8x32768xf32, #tpu.memory_space<vmem>>, vector<8x4096xf32>
    %c0_1 = arith.constant 0 : index
    %c0_2 = arith.constant 0 : index
    %7 = vector.load %arg5[%c0_1, %c0_2] : memref<8x512xf32, #tpu.memory_space<vmem>>, vector<8x512xf32>
    %c0_3 = arith.constant 0 : index
    %c0_4 = arith.constant 0 : index
    %8 = vector.load %arg3[%c0_3, %c0_4] : memref<4096x512xf32, #tpu.memory_space<vmem>>, vector<4096x512xf32>
    %cst = arith.constant dense<0.000000e+00> : vector<8x512xf32>
    %9 = tpu.matmul %6, %8, %cst {dimension_numbers = #tpu.dot_dimension_numbers<[1], [0], [0], [1], [0, 0, 1, 1], [], []>} : vector<8x4096xf32>, vector<4096x512xf32>, vector<8x512xf32> -> vector<8x512xf32>
    %10 = arith.addf %7, %9 : vector<8x512xf32>
    %c0_5 = arith.constant 0 : index
    %c0_6 = arith.constant 0 : index
    %11 = vector.load %arg5[%c0_5, %c0_6] : memref<8x512xf32, #tpu.memory_space<vmem>>, vector<8x512xf32>
    tpu.vector_store %arg5[%c0_5, %c0_6], %10 {strides = array<i32>} : memref<8x512xf32, #tpu.memory_space<vmem>>, vector<8x512xf32>,
    %c7_i32 = arith.constant 7 : i32
    %12 = arith.cmpi eq, %arg1, %c7_i32 : i32
    %13 = arith.extui %12 : i1 to i32
    %c0_i32_7 = arith.constant 0 : i32
    %14 = arith.cmpi ne, %13, %c0_i32_7 : i32
    scf.if %14 {
      %c0_8 = arith.constant 0 : index
      %c0_9 = arith.constant 0 : index
      %15 = vector.load %arg5[%c0_8, %c0_9] : memref<8x512xf32, #tpu.memory_space<vmem>>, vector<8x512xf32>
      %cst_10 = arith.constant 0.000000e+00 : f32
      %16 = vector.broadcast %cst_10 : f32 to vector<8x512xf32>
      %17 = arith.maximumf %15, %16 : vector<8x512xf32>
      %c0_11 = arith.constant 0 : index
      %c0_12 = arith.constant 0 : index
      %18 = vector.load %arg5[%c0_11, %c0_12] : memref<8x512xf32, #tpu.memory_space<vmem>>, vector<8x512xf32>
      tpu.vector_store %arg5[%c0_11, %c0_12], %17 {strides = array<i32>} : memref<8x512xf32, #tpu.memory_space<vmem>>, vector<8x512xf32>,
    } else {
    }
    return
  }
  func.func @transform_0(%arg0: i32, %arg1: i32) -> (i32, i32) {
    %c0_i32 = arith.constant 0 : i32
    %c0_i32_0 = arith.constant 0 : i32
    %c0_i32_1 = arith.constant 0 : i32
    return %c0_i32, %c0_i32_0 : i32, i32
  }
  func.func @transform_1(%arg0: i32, %arg1: i32) -> (i32, i32) {
    %c0_i32 = arith.constant 0 : i32
    return %arg1, %arg0 : i32, i32
  }
  func.func @transform_2(%arg0: i32, %arg1: i32) -> (i32, i32) {
    %c0_i32 = arith.constant 0 : i32
    %c0_i32_0 = arith.constant 0 : i32
    return %c0_i32, %arg0 : i32, i32
  }
  func.func @transform_3(%arg0: i32, %arg1: i32) -> (i32, i32) {
    %c0_i32 = arith.constant 0 : i32
    %c0_i32_0 = arith.constant 0 : i32
    return %c0_i32, %arg0 : i32, i32
  }
}

</mosaic_0001>

<llo_original>
// kernel: net0_forward.3
$region0: #{net0_forward.3}
  #allocation0 [shape = 'u32[]', space=smem, size = 0x4, offset = 0x4, fixed_abs, tag = 'smem constant byte address 0x4 - core index']
  #allocation1 [shape = 'u32[144,128]{1,0:T(1,128)}', space=vmem, size = 0x12000, scoped, tag = 'internal scratch']
  %s0 = inlined_call_operand.vmem [shape: f32[8,1024], index: 0, kind: input, shape index: {}]
  %s1 = inlined_call_operand.vmem [shape: f32[1024,128], index: 1, kind: input, shape index: {}]
  %s2 = inlined_call_operand.vmem [shape: f32[1,128], index: 2, kind: input, shape index: {}]
  %s3 = inlined_call_operand.vmem [shape: f32[8,128], index: 3, kind: output, shape index: {}]
  %s4 = sld [smem:[#allocation0]]
  $region22: #{net0_forward.3} parent=0
    _
  %s6 = ssub.s32 1, %s4
  %s7 = scalar_select 0, %s6, %s4
  // Predicated region
  $region2: #{net0_forward.3} parent=0 // pred_check
    _
  $region3: #{net0_forward.3} parent=0 // pred_check_branch
    %9 = sbr.rel (0) target = $region5
  $region4: #{net0_forward.3} parent=0 // pred_region
    _
  $region5: #{net0_forward.3} parent=0 // pred_fallthru
    _
  // Predicated region
  $region6: #{net0_forward.3} parent=0 // pred_check
    _
  $region7: #{net0_forward.3} parent=0 // pred_check_branch
    %11 = sbr.rel (0) target = $region9
  $region8: #{net0_forward.3} parent=0 // pred_region
    _
  $region9: #{net0_forward.3} parent=0 // pred_fallthru
    _
  // Predicated region
  $region10: #{net0_forward.3} parent=0 // pred_check
    _
  $region11: #{net0_forward.3} parent=0 // pred_check_branch
    %13 = sbr.rel (0) target = $region13
  $region12: #{net0_forward.3} parent=0 // pred_region
    _
  $region13: #{net0_forward.3} parent=0 // pred_fallthru
    _
  %v14 = vld [vmem:[%s0] sm:$0xff]
  %v15 = vld [vmem:[%s0 + $0x8] sm:$0xff]
  %v16 = vld [vmem:[%s0 + $0x10] sm:$0xff]
  %v17 = vld [vmem:[%s0 + $0x18] sm:$0xff]
  %v18 = vld [vmem:[%s0 + $0x20] sm:$0xff]
  %v19 = vld [vmem:[%s0 + $0x28] sm:$0xff]
  %v20 = vld [vmem:[%s0 + $0x30] sm:$0xff]
  %v21 = vld [vmem:[%s0 + $0x38] sm:$0xff]
  %v22 = vld [vmem:[%s1] sm:$0xff]
  %v23 = vld [vmem:[%s1 + $0x8] sm:$0xff]
  %v24 = vld [vmem:[%s1 + $0x10] sm:$0xff]
  %v25 = vld [vmem:[%s1 + $0x18] sm:$0xff]
  %v26 = vld [vmem:[%s1 + $0x20] sm:$0xff]
  %v27 = vld [vmem:[%s1 + $0x28] sm:$0xff]
  %v28 = vld [vmem:[%s1 + $0x30] sm:$0xff]
  %v29 = vld [vmem:[%s1 + $0x38] sm:$0xff]
  %v30 = vld [vmem:[%s1 + $0x40] sm:$0xff]
  %v31 = vld [vmem:[%s1 + $0x48] sm:$0xff]
  %v32 = vld [vmem:[%s1 + $0x50] sm:$0xff]
  %v33 = vld [vmem:[%s1 + $0x58] sm:$0xff]
  %v34 = vld [vmem:[%s1 + $0x60] sm:$0xff]
  %v35 = vld [vmem:[%s1 + $0x68] sm:$0xff]
  %v36 = vld [vmem:[%s1 + $0x70] sm:$0xff]
  %v37 = vld [vmem:[%s1 + $0x78] sm:$0xff]
  %v38 = vld [vmem:[%s1 + $0x80] sm:$0xff]
  %v39 = vld [vmem:[%s1 + $0x88] sm:$0xff]
  %v40 = vld [vmem:[%s1 + $0x90] sm:$0xff]
  %v41 = vld [vmem:[%s1 + $0x98] sm:$0xff]
  %v42 = vld [vmem:[%s1 + $0xa0] sm:$0xff]
  %v43 = vld [vmem:[%s1 + $0xa8] sm:$0xff]
  %v44 = vld [vmem:[%s1 + $0xb0] sm:$0xff]
  %v45 = vld [vmem:[%s1 + $0xb8] sm:$0xff]
  %v46 = vld [vmem:[%s1 + $0xc0] sm:$0xff]
  %v47 = vld [vmem:[%s1 + $0xc8] sm:$0xff]
  %v48 = vld [vmem:[%s1 + $0xd0] sm:$0xff]
  %v49 = vld [vmem:[%s1 + $0xd8] sm:$0xff]
  %v50 = vld [vmem:[%s1 + $0xe0] sm:$0xff]
  %v51 = vld [vmem:[%s1 + $0xe8] sm:$0xff]
  %v52 = vld [vmem:[%s1 + $0xf0] sm:$0xff]
  %v53 = vld [vmem:[%s1 + $0xf8] sm:$0xff]
  %v54 = vld [vmem:[%s1 + $0x100] sm:$0xff]
  %v55 = vld [vmem:[%s1 + $0x108] sm:$0xff]
  %v56 = vld [vmem:[%s1 + $0x110] sm:$0xff]
  %v57 = vld [vmem:[%s1 + $0x118] sm:$0xff]
  %v58 = vld [vmem:[%s1 + $0x120] sm:$0xff]
  %v59 = vld [vmem:[%s1 + $0x128] sm:$0xff]
  %v60 = vld [vmem:[%s1 + $0x130] sm:$0xff]
  %v61 = vld [vmem:[%s1 + $0x138] sm:$0xff]
  %v62 = vld [vmem:[%s1 + $0x140] sm:$0xff]
  %v63 = vld [vmem:[%s1 + $0x148] sm:$0xff]
  %v64 = vld [vmem:[%s1 + $0x150] sm:$0xff]
  %v65 = vld [vmem:[%s1 + $0x158] sm:$0xff]
  %v66 = vld [vmem:[%s1 + $0x160] sm:$0xff]
  %v67 = vld [vmem:[%s1 + $0x168] sm:$0xff]
  %v68 = vld [vmem:[%s1 + $0x170] sm:$0xff]
  %v69 = vld [vmem:[%s1 + $0x178] sm:$0xff]
  %v70 = vld [vmem:[%s1 + $0x180] sm:$0xff]
  %v71 = vld [vmem:[%s1 + $0x188] sm:$0xff]
  %v72 = vld [vmem:[%s1 + $0x190] sm:$0xff]
  %v73 = vld [vmem:[%s1 + $0x198] sm:$0xff]
  %v74 = vld [vmem:[%s1 + $0x1a0] sm:$0xff]
  %v75 = vld [vmem:[%s1 + $0x1a8] sm:$0xff]
  %v76 = vld [vmem:[%s1 + $0x1b0] sm:$0xff]
  %v77 = vld [vmem:[%s1 + $0x1b8] sm:$0xff]
  %v78 = vld [vmem:[%s1 + $0x1c0] sm:$0xff]
  %v79 = vld [vmem:[%s1 + $0x1c8] sm:$0xff]
  %v80 = vld [vmem:[%s1 + $0x1d0] sm:$0xff]
  %v81 = vld [vmem:[%s1 + $0x1d8] sm:$0xff]
  %v82 = vld [vmem:[%s1 + $0x1e0] sm:$0xff]
  %v83 = vld [vmem:[%s1 + $0x1e8] sm:$0xff]
  %v84 = vld [vmem:[%s1 + $0x1f0] sm:$0xff]
  %v85 = vld [vmem:[%s1 + $0x1f8] sm:$0xff]
  %v86 = vld [vmem:[%s1 + $0x200] sm:$0xff]
  %v87 = vld [vmem:[%s1 + $0x208] sm:$0xff]
  %v88 = vld [vmem:[%s1 + $0x210] sm:$0xff]
  %v89 = vld [vmem:[%s1 + $0x218] sm:$0xff]
  %v90 = vld [vmem:[%s1 + $0x220] sm:$0xff]
  %v91 = vld [vmem:[%s1 + $0x228] sm:$0xff]
  %v92 = vld [vmem:[%s1 + $0x230] sm:$0xff]
  %v93 = vld [vmem:[%s1 + $0x238] sm:$0xff]
  %v94 = vld [vmem:[%s1 + $0x240] sm:$0xff]
  %v95 = vld [vmem:[%s1 + $0x248] sm:$0xff]
  %v96 = vld [vmem:[%s1 + $0x250] sm:$0xff]
  %v97 = vld [vmem:[%s1 + $0x258] sm:$0xff]
  %v98 = vld [vmem:[%s1 + $0x260] sm:$0xff]
  %v99 = vld [vmem:[%s1 + $0x268] sm:$0xff]
  %v100 = vld [vmem:[%s1 + $0x270] sm:$0xff]
  %v101 = vld [vmem:[%s1 + $0x278] sm:$0xff]
  %v102 = vld [vmem:[%s1 + $0x280] sm:$0xff]
  %v103 = vld [vmem:[%s1 + $0x288] sm:$0xff]
  %v104 = vld [vmem:[%s1 + $0x290] sm:$0xff]
  %v105 = vld [vmem:[%s1 + $0x298] sm:$0xff]
  %v106 = vld [vmem:[%s1 + $0x2a0] sm:$0xff]
  %v107 = vld [vmem:[%s1 + $0x2a8] sm:$0xff]
  %v108 = vld [vmem:[%s1 + $0x2b0] sm:$0xff]
  %v109 = vld [vmem:[%s1 + $0x2b8] sm:$0xff]
  %v110 = vld [vmem:[%s1 + $0x2c0] sm:$0xff]
  %v111 = vld [vmem:[%s1 + $0x2c8] sm:$0xff]
  %v112 = vld [vmem:[%s1 + $0x2d0] sm:$0xff]
  %v113 = vld [vmem:[%s1 + $0x2d8] sm:$0xff]
  %v114 = vld [vmem:[%s1 + $0x2e0] sm:$0xff]
  %v115 = vld [vmem:[%s1 + $0x2e8] sm:$0xff]
  %v116 = vld [vmem:[%s1 + $0x2f0] sm:$0xff]
  %v117 = vld [vmem:[%s1 + $0x2f8] sm:$0xff]
  %v118 = vld [vmem:[%s1 + $0x300] sm:$0xff]
  %v119 = vld [vmem:[%s1 + $0x308] sm:$0xff]
  %v120 = vld [vmem:[%s1 + $0x310] sm:$0xff]
  %v121 = vld [vmem:[%s1 + $0x318] sm:$0xff]
  %v122 = vld [vmem:[%s1 + $0x320] sm:$0xff]
  %v123 = vld [vmem:[%s1 + $0x328] sm:$0xff]
  %v124 = vld [vmem:[%s1 + $0x330] sm:$0xff]
  %v125 = vld [vmem:[%s1 + $0x338] sm:$0xff]
  %v126 = vld [vmem:[%s1 + $0x340] sm:$0xff]
  %v127 = vld [vmem:[%s1 + $0x348] sm:$0xff]
  %v128 = vld [vmem:[%s1 + $0x350] sm:$0xff]
  %v129 = vld [vmem:[%s1 + $0x358] sm:$0xff]
  %v130 = vld [vmem:[%s1 + $0x360] sm:$0xff]
  %v131 = vld [vmem:[%s1 + $0x368] sm:$0xff]
  %v132 = vld [vmem:[%s1 + $0x370] sm:$0xff]
  %v133 = vld [vmem:[%s1 + $0x378] sm:$0xff]
  %v134 = vld [vmem:[%s1 + $0x380] sm:$0xff]
  %v135 = vld [vmem:[%s1 + $0x388] sm:$0xff]
  %v136 = vld [vmem:[%s1 + $0x390] sm:$0xff]
  %v137 = vld [vmem:[%s1 + $0x398] sm:$0xff]
  %v138 = vld [vmem:[%s1 + $0x3a0] sm:$0xff]
  %v139 = vld [vmem:[%s1 + $0x3a8] sm:$0xff]
  %v140 = vld [vmem:[%s1 + $0x3b0] sm:$0xff]
  %v141 = vld [vmem:[%s1 + $0x3b8] sm:$0xff]
  %v142 = vld [vmem:[%s1 + $0x3c0] sm:$0xff]
  %v143 = vld [vmem:[%s1 + $0x3c8] sm:$0xff]
  %v144 = vld [vmem:[%s1 + $0x3d0] sm:$0xff]
  %v145 = vld [vmem:[%s1 + $0x3d8] sm:$0xff]
  %v146 = vld [vmem:[%s1 + $0x3e0] sm:$0xff]
  %v147 = vld [vmem:[%s1 + $0x3e8] sm:$0xff]
  %v148 = vld [vmem:[%s1 + $0x3f0] sm:$0xff]
  %v149 = vld [vmem:[%s1 + $0x3f8] sm:$0xff]
  %v150 = vld [vmem:[%s2] sm:$0x1]
  %v152 = vlaneseq
  %v153 = vshrl.u32 %v152, 7
  %v154 = vsub.s32 0, %v153
  %v155 = vrot.slane %v150, %v154
  %157 = vmatprep.subr.mxu0 0.0
  %158 = vmatpush1.msra.mxu0 %v22
  %159 = vmatprep.subr.mxu0 0.0
  %160 = vmatpush1.msra.mxu0 %v23
  %161 = vmatprep.subr.mxu0 0.0
  %162 = vmatpush1.msra.mxu0 %v24
  %163 = vmatprep.subr.mxu0 0.0
  %164 = vmatpush1.msra.mxu0 %v25
  %165 = vmatprep.subr.mxu0 0.0
  %166 = vmatpush1.msra.mxu0 %v26
  %167 = vmatprep.subr.mxu0 0.0
  %168 = vmatpush1.msra.mxu0 %v27
  %169 = vmatprep.subr.mxu0 0.0
  %170 = vmatpush1.msra.mxu0 %v28
  %171 = vmatprep.subr.mxu0 0.0
  %172 = vmatpush1.msra.mxu0 %v29
  %173 = vmatprep.subr.mxu0 0.0
  %174 = vmatpush1.msra.mxu0 %v30
  %175 = vmatprep.subr.mxu0 0.0
  %176 = vmatpush1.msra.mxu0 %v31
  %177 = vmatprep.subr.mxu0 0.0
  %178 = vmatpush1.msra.mxu0 %v32
  %179 = vmatprep.subr.mxu0 0.0
  %180 = vmatpush1.msra.mxu0 %v33
  %181 = vmatprep.subr.mxu0 0.0
  %182 = vmatpush1.msra.mxu0 %v34
  %183 = vmatprep.subr.mxu0 0.0
  %184 = vmatpush1.msra.mxu0 %v35
  %185 = vmatprep.subr.mxu0 0.0
  %186 = vmatpush1.msra.mxu0 %v36
  %187 = vmatprep.subr.mxu0 0.0
  %188 = vmatpush1.msra.mxu0 %v37
  %189 = vmatprep.subr.mxu0 0.0
  %190 = vmatpush1.msra.mxu0 %v38
  %191 = vmatprep.subr.mxu0 0.0
  %192 = vmatpush1.msra.mxu0 %v39
  %193 = vmatprep.subr.mxu0 0.0
  %194 = vmatpush1.msra.mxu0 %v40
  %195 = vmatprep.subr.mxu0 0.0
  %196 = vmatpush1.msra.mxu0 %v41
  %197 = vmatprep.subr.mxu0 0.0
  %198 = vmatpush1.msra.mxu0 %v42
  %199 = vmatprep.subr.mxu0 0.0
  %200 = vmatpush1.msra.mxu0 %v43
  %201 = vmatprep.subr.mxu0 0.0
  %202 = vmatpush1.msra.mxu0 %v44
  %203 = vmatprep.subr.mxu0 0.0
  %204 = vmatpush1.msra.mxu0 %v45
  %205 = vmatprep.subr.mxu0 0.0
  %206 = vmatpush1.msra.mxu0 %v46
  %207 = vmatprep.subr.mxu0 0.0
  %208 = vmatpush1.msra.mxu0 %v47
  %209 = vmatprep.subr.mxu0 0.0
  %210 = vmatpush1.msra.mxu0 %v48
  %211 = vmatprep.subr.mxu0 0.0
  %212 = vmatpush1.msra.mxu0 %v49
  %213 = vmatprep.subr.mxu0 0.0
  %214 = vmatpush1.msra.mxu0 %v50
  %215 = vmatprep.subr.mxu0 0.0
  %216 = vmatpush1.msra.mxu0 %v51
  %217 = vmatprep.subr.mxu0 0.0
  %218 = vmatpush1.msra.mxu0 %v52
  %219 = vmatprep.subr.mxu0 0.0
  %220 = vmatpush1.msra.mxu0 %v53
  %221 = vmatprep.mubr.f32.mxu0 %v15
  %222 = vmatmul.mubr.f32.gmra.mrb[0].mxu0 %v14
  %v223 = vpop.f32.mrb[0].mxu0
  %v224 = vadd.f32 %v155, %v223
  %v225 = vpop.f32.mrb[0].mxu0
  %226 = vdwg.mxu0
  %227 = vmatprep.subr.mxu0 0.0
  %228 = vmatpush1.msra.mxu0 %v54
  %229 = vmatprep.subr.mxu0 0.0
  %230 = vmatpush1.msra.mxu0 %v55
  %231 = vmatprep.subr.mxu0 0.0
  %232 = vmatpush1.msra.mxu0 %v56
  %233 = vmatprep.subr.mxu0 0.0
  %234 = vmatpush1.msra.mxu0 %v57
  %235 = vmatprep.subr.mxu0 0.0
  %236 = vmatpush1.msra.mxu0 %v58
  %237 = vmatprep.subr.mxu0 0.0
  %238 = vmatpush1.msra.mxu0 %v59
  %239 = vmatprep.subr.mxu0 0.0
  %240 = vmatpush1.msra.mxu0 %v60
  %241 = vmatprep.subr.mxu0 0.0
  %242 = vmatpush1.msra.mxu0 %v61
  %243 = vmatprep.subr.mxu0 0.0
  %244 = vmatpush1.msra.mxu0 %v62
  %245 = vmatprep.subr.mxu0 0.0
  %246 = vmatpush1.msra.mxu0 %v63
  %247 = vmatprep.subr.mxu0 0.0
  %248 = vmatpush1.msra.mxu0 %v64
  %249 = vmatprep.subr.mxu0 0.0
  %250 = vmatpush1.msra.mxu0 %v65
  %251 = vmatprep.subr.mxu0 0.0
  %252 = vmatpush1.msra.mxu0 %v66
  %253 = vmatprep.subr.mxu0 0.0
  %254 = vmatpush1.msra.mxu0 %v67
  %255 = vmatprep.subr.mxu0 0.0
  %256 = vmatpush1.msra.mxu0 %v68
  %257 = vmatprep.subr.mxu0 0.0
  %258 = vmatpush1.msra.mxu0 %v69
  %259 = vmatprep.subr.mxu0 0.0
  %260 = vmatpush1.msra.mxu0 %v70
  %261 = vmatprep.subr.mxu0 0.0
  %262 = vmatpush1.msra.mxu0 %v71
  %263 = vmatprep.subr.mxu0 0.0
  %264 = vmatpush1.msra.mxu0 %v72
  %265 = vmatprep.subr.mxu0 0.0
  %266 = vmatpush1.msra.mxu0 %v73
  %267 = vmatprep.subr.mxu0 0.0
  %268 = vmatpush1.msra.mxu0 %v74
  %269 = vmatprep.subr.mxu0 0.0
  %270 = vmatpush1.msra.mxu0 %v75
  %271 = vmatprep.subr.mxu0 0.0
  %272 = vmatpush1.msra.mxu0 %v76
  %273 = vmatprep.subr.mxu0 0.0
  %274 = vmatpush1.msra.mxu0 %v77
  %275 = vmatprep.subr.mxu0 0.0
  %276 = vmatpush1.msra.mxu0 %v78
  %277 = vmatprep.subr.mxu0 0.0
  %278 = vmatpush1.msra.mxu0 %v79
  %279 = vmatprep.subr.mxu0 0.0
  %280 = vmatpush1.msra.mxu0 %v80
  %281 = vmatprep.subr.mxu0 0.0
  %282 = vmatpush1.msra.mxu0 %v81
  %283 = vmatprep.subr.mxu0 0.0
  %284 = vmatpush1.msra.mxu0 %v82
  %285 = vmatprep.subr.mxu0 0.0
  %286 = vmatpush1.msra.mxu0 %v83
  %287 = vmatprep.subr.mxu0 0.0
  %288 = vmatpush1.msra.mxu0 %v84
  %289 = vmatprep.subr.mxu0 0.0
  %290 = vmatpush1.msra.mxu0 %v85
  %291 = vmatprep.mubr.f32.mxu0 %v17
  %292 = vmatmul.mubr.f32.gmra.mrb[0].mxu0 %v16
  %v293 = vpop.f32.mrb[0].mxu0
  %v294 = vadd.f32 %v224, %v293
  %v295 = vpop.f32.mrb[0].mxu0
  %296 = vdwg.mxu0
  %297 = vmatprep.subr.mxu0 0.0
  %298 = vmatpush1.msra.mxu0 %v86
  %299 = vmatprep.subr.mxu0 0.0
  %300 = vmatpush1.msra.mxu0 %v87
  %301 = vmatprep.subr.mxu0 0.0
  %302 = vmatpush1.msra.mxu0 %v88
  %303 = vmatprep.subr.mxu0 0.0
  %304 = vmatpush1.msra.mxu0 %v89
  %305 = vmatprep.subr.mxu0 0.0
  %306 = vmatpush1.msra.mxu0 %v90
  %307 = vmatprep.subr.mxu0 0.0
  %308 = vmatpush1.msra.mxu0 %v91
  %309 = vmatprep.subr.mxu0 0.0
  %310 = vmatpush1.msra.mxu0 %v92
  %311 = vmatprep.subr.mxu0 0.0
  %312 = vmatpush1.msra.mxu0 %v93
  %313 = vmatprep.subr.mxu0 0.0
  %314 = vmatpush1.msra.mxu0 %v94
  %315 = vmatprep.subr.mxu0 0.0
  %316 = vmatpush1.msra.mxu0 %v95
  %317 = vmatprep.subr.mxu0 0.0
  %318 = vmatpush1.msra.mxu0 %v96
  %319 = vmatprep.subr.mxu0 0.0
  %320 = vmatpush1.msra.mxu0 %v97
  %321 = vmatprep.subr.mxu0 0.0
  %322 = vmatpush1.msra.mxu0 %v98
  %323 = vmatprep.subr.mxu0 0.0
  %324 = vmatpush1.msra.mxu0 %v99
  %325 = vmatprep.subr.mxu0 0.0
  %326 = vmatpush1.msra.mxu0 %v100
  %327 = vmatprep.subr.mxu0 0.0
  %328 = vmatpush1.msra.mxu0 %v101
  %329 = vmatprep.subr.mxu0 0.0
  %330 = vmatpush1.msra.mxu0 %v102
  %331 = vmatprep.subr.mxu0 0.0
  %332 = vmatpush1.msra.mxu0 %v103
  %333 = vmatprep.subr.mxu0 0.0
  %334 = vmatpush1.msra.mxu0 %v104
  %335 = vmatprep.subr.mxu0 0.0
  %336 = vmatpush1.msra.mxu0 %v105
  %337 = vmatprep.subr.mxu0 0.0
  %338 = vmatpush1.msra.mxu0 %v106
  %339 = vmatprep.subr.mxu0 0.0
  %340 = vmatpush1.msra.mxu0 %v107
  %341 = vmatprep.subr.mxu0 0.0
  %342 = vmatpush1.msra.mxu0 %v108
  %343 = vmatprep.subr.mxu0 0.0
  %344 = vmatpush1.msra.mxu0 %v109
  %345 = vmatprep.subr.mxu0 0.0
  %346 = vmatpush1.msra.mxu0 %v110
  %347 = vmatprep.subr.mxu0 0.0
  %348 = vmatpush1.msra.mxu0 %v111
  %349 = vmatprep.subr.mxu0 0.0
  %350 = vmatpush1.msra.mxu0 %v112
  %351 = vmatprep.subr.mxu0 0.0
  %352 = vmatpush1.msra.mxu0 %v113
  %353 = vmatprep.subr.mxu0 0.0
  %354 = vmatpush1.msra.mxu0 %v114
  %355 = vmatprep.subr.mxu0 0.0
  %356 = vmatpush1.msra.mxu0 %v115
  %357 = vmatprep.subr.mxu0 0.0
  %358 = vmatpush1.msra.mxu0 %v116
  %359 = vmatprep.subr.mxu0 0.0
  %360 = vmatpush1.msra.mxu0 %v117
  %361 = vmatprep.mubr.f32.mxu0 %v19
  %362 = vmatmul.mubr.f32.gmra.mrb[0].mxu0 %v18
  %v363 = vpop.f32.mrb[0].mxu0
  %v364 = vadd.f32 %v294, %v363
  %v365 = vpop.f32.mrb[0].mxu0
  %366 = vdwg.mxu0
  %367 = vmatprep.subr.mxu0 0.0
  %368 = vmatpush1.msra.mxu0 %v118
  %369 = vmatprep.subr.mxu0 0.0
  %370 = vmatpush1.msra.mxu0 %v119
  %371 = vmatprep.subr.mxu0 0.0
  %372 = vmatpush1.msra.mxu0 %v120
  %373 = vmatprep.subr.mxu0 0.0
  %374 = vmatpush1.msra.mxu0 %v121
  %375 = vmatprep.subr.mxu0 0.0
  %376 = vmatpush1.msra.mxu0 %v122
  %377 = vmatprep.subr.mxu0 0.0
  %378 = vmatpush1.msra.mxu0 %v123
  %379 = vmatprep.subr.mxu0 0.0
  %380 = vmatpush1.msra.mxu0 %v124
  %381 = vmatprep.subr.mxu0 0.0
  %382 = vmatpush1.msra.mxu0 %v125
  %383 = vmatprep.subr.mxu0 0.0
  %384 = vmatpush1.msra.mxu0 %v126
  %385 = vmatprep.subr.mxu0 0.0
  %386 = vmatpush1.msra.mxu0 %v127
  %387 = vmatprep.subr.mxu0 0.0
  %388 = vmatpush1.msra.mxu0 %v128
  %389 = vmatprep.subr.mxu0 0.0
  %390 = vmatpush1.msra.mxu0 %v129
  %391 = vmatprep.subr.mxu0 0.0
  %392 = vmatpush1.msra.mxu0 %v130
  %393 = vmatprep.subr.mxu0 0.0
  %394 = vmatpush1.msra.mxu0 %v131
  %395 = vmatprep.subr.mxu0 0.0
  %396 = vmatpush1.msra.mxu0 %v132
  %397 = vmatprep.subr.mxu0 0.0
  %398 = vmatpush1.msra.mxu0 %v133
  %399 = vmatprep.subr.mxu0 0.0
  %400 = vmatpush1.msra.mxu0 %v134
  %401 = vmatprep.subr.mxu0 0.0
  %402 = vmatpush1.msra.mxu0 %v135
  %403 = vmatprep.subr.mxu0 0.0
  %404 = vmatpush1.msra.mxu0 %v136
  %405 = vmatprep.subr.mxu0 0.0
  %406 = vmatpush1.msra.mxu0 %v137
  %407 = vmatprep.subr.mxu0 0.0
  %408 = vmatpush1.msra.mxu0 %v138
  %409 = vmatprep.subr.mxu0 0.0
  %410 = vmatpush1.msra.mxu0 %v139
  %411 = vmatprep.subr.mxu0 0.0
  %412 = vmatpush1.msra.mxu0 %v140
  %413 = vmatprep.subr.mxu0 0.0
  %414 = vmatpush1.msra.mxu0 %v141
  %415 = vmatprep.subr.mxu0 0.0
  %416 = vmatpush1.msra.mxu0 %v142
  %417 = vmatprep.subr.mxu0 0.0
  %418 = vmatpush1.msra.mxu0 %v143
  %419 = vmatprep.subr.mxu0 0.0
  %420 = vmatpush1.msra.mxu0 %v144
  %421 = vmatprep.subr.mxu0 0.0
  %422 = vmatpush1.msra.mxu0 %v145
  %423 = vmatprep.subr.mxu0 0.0
  %424 = vmatpush1.msra.mxu0 %v146
  %425 = vmatprep.subr.mxu0 0.0
  %426 = vmatpush1.msra.mxu0 %v147
  %427 = vmatprep.subr.mxu0 0.0
  %428 = vmatpush1.msra.mxu0 %v148
  %429 = vmatprep.subr.mxu0 0.0
  %430 = vmatpush1.msra.mxu0 %v149
  %431 = vmatprep.mubr.f32.mxu0 %v21
  %432 = vmatmul.mubr.f32.gmra.mrb[0].mxu0 %v20
  %v433 = vpop.f32.mrb[0].mxu0
  %v434 = vadd.f32 %v364, %v433
  %v435 = vpop.f32.mrb[0].mxu0
  %436 = vdwg.mxu0
  %437 = vmax.xlane.f32.xlu0 %v434
  %v438 = vpop.xlane.xlu0 %437
  %v439 = vsub.f32 %v434, %v438
  %v440 = vmul.f32 %v439, 1.442695
  %v441 = vpow.pop %v440
  %442 = vadd.xlane.f32.xlu0 %v441
  %v443 = vpop.xlane.xlu0 %442
  %v444 = vlog2.pop %v443
  %v445 = vmul.f32 %v444, 0.6931472
  %v446 = vadd.f32 %v445, %v438
  %v447 = vsub.f32 %v434, %v446
  %448 = vst [vmem:[%s3] sm:$0xff] %v447
  // Predicated region
  $region14: #{net0_forward.3} parent=0 // pred_check
    _
  $region15: #{net0_forward.3} parent=0 // pred_check_branch
    %450 = sbr.rel (0) target = $region17
  $region16: #{net0_forward.3} parent=0 // pred_region
    _
  $region17: #{net0_forward.3} parent=0 // pred_fallthru
    _
  // Predicated region
  $region18: #{net0_forward.3} parent=0 // pred_check
    _
  $region19: #{net0_forward.3} parent=0 // pred_check_branch
    %452 = sbr.rel (0) target = $region21
  $region20: #{net0_forward.3} parent=0 // pred_region
    _
  $region21: #{net0_forward.3} parent=0 // pred_fallthru
    _

// kernel: net0_forward.2
$region0: #{net0_forward.2}
  #allocation0 [shape = 'u32[]', space=smem, size = 0x4, offset = 0x4, fixed_abs, tag = 'smem constant byte address 0x4 - core index']
  #allocation1 [shape = 'u32[144,128]{1,0:T(1,128)}', space=vmem, size = 0x12000, scoped, tag = 'internal scratch']
  %s0 = inlined_call_operand.vmem [shape: f32[8,32768], index: 0, kind: input, shape index: {}]
  %s1 = inlined_call_operand.hbm [shape: f32[32768,1024], index: 1, kind: input, shape index: {}]
  %s2 = inlined_call_operand.hbm [shape: f32[1,1024], index: 2, kind: input, shape index: {}]
  %s3 = inlined_call_operand.vmem [shape: f32[8,1024], index: 3, kind: output, shape index: {}]
  %s4 = sld [smem:[#allocation0]]
  $region61: #{net0_forward.2} parent=0
    _
  %s6 = ssub.s32 1, %s4
  %s7 = scalar_select 0, %s6, %s4
  $region1: #{net0_forward.2} parent=0
    #allocation2 [shape = 'u8[16777216]{0}', space=vmem, size = 0x1000000, scoped, tag = 'input window, operand 1']
    #allocation3 [shape = 's32[2]{0}', space=sflag, size = 0x8, scoped, tag = 'scoped memory for net0_forward.2']
    #allocation4 [shape = 'u8[4096]{0}', space=vmem, size = 0x1000, scoped, tag = 'input window, operand 2']
    #allocation5 [shape = 's32[2]{0}', space=sflag, size = 0x8, scoped, tag = 'scoped memory for net0_forward.2']
    %8 = vsyncpa [#allocation3], 0
    %s9 = scalar_lea.sflag [#allocation3], 1
    %10 = vsyncpa %s9, 0
    %11 = vsyncpa [#allocation5], 0
    %s12 = scalar_lea.sflag [#allocation5], 1
    %13 = vsyncpa %s12, 0
    loop: start=0, step=1, limit=18
    $region2: #{net0_forward.2} parent=1 // loop_pre_header
      _
    $region3: #{net0_forward.2} parent=1 // loop_header
      %s15 = sphi 0, %s19
      %p16 = scmp.ge.s32.totalorder %s15, 18
      %s22 = sphi 0, %s34
      %s23 = sphi 0, %s30
      %s24 = sphi 0, %s22
      %s25 = sphi 0, %s23
      %s26 = sphi 0, %s24
      %s27 = sphi 0, %s25
      %s35 = sphi 0, %s35
      %s37 = sphi 0, %s35
      %s38 = sphi 0, %s37
      %s52 = sphi 0, %s38
      %s60 = sphi 0, %s62
      %s63 = sphi 0, %s60
      %s64 = sphi 0, %s63
      %s80 = sphi 0, %s64
      %s86 = sphi 0, %s88
      %s89 = sphi 0, %s86
      %s90 = sphi 0, %s89
      %s106 = sphi 0, %s90
      %s112 = sphi 0, %s114
      %s115 = sphi 0, %s112
      %s116 = sphi 0, %s115
      %s132 = sphi 0, %s116
    $region4: #{net0_forward.2} parent=1 // loop_header_branch
      %18 = sbr.rel (%p16) target = $region8
    $region5: #{net0_forward.2} parent=1 // loop_body
      %s20 = ssub.s32 %s15, 1
      %s21 = ssub.s32 %s15, 2
      %s28 = sadd.s32 1, %s23
      %p29 = scmp.ge.s32.totalorder %s28, 8
      %s30 = scalar_select %p29, 0, %s28
      %s31 = sadd.s32 1, %s22
      %s32 = scalar_select %p29, %s31, %s22
      %p33 = scmp.ge.s32.totalorder %s32, 2
      %s34 = scalar_select %p33, 0, %s32
      %s36 = sadd.s32 %s35, 1
      %p39 = scmp.eq.s32.totalorder %s15, 15
      %p40 = scmp.ne.s32.totalorder %s35, %s37
      %p41 = scmp.eq.s32.totalorder %s15, 0
      %p42 = por %p40, %p41
      %p43 = scmp.ne.s32.totalorder %s35, %s37
      %p44 = scmp.eq.s32.totalorder %s20, 15
      %p45 = por %p43, %p44
      %p46 = scmp.ne.s32.totalorder %s37, %s38
      %p47 = scmp.eq.s32.totalorder %s20, 0
      %p48 = por %p46, %p47
      %p49 = scmp.ne.s32.totalorder %s37, %s38
      %p50 = scmp.eq.s32.totalorder %s21, 15
      %p51 = por %p49, %p50
      %p53 = scmp.ne.s32.totalorder %s38, %s52
      %p54 = scmp.eq.s32.totalorder %s21, 0
      %p55 = por %p53, %p54
      %s56 = ssub.s32 %s23, %s30
      %s57 = ssub.s32 %s22, %s34
      %s58 = sor.u32 %s56, %s57
      %p59 = scmp.eq.s32.totalorder %s58, 0
      %s61 = sadd.s32 %s60, 1
      %s62 = scalar_select %p59, %s60, %s61
      %p65 = pneg %p59
      %p66 = scmp.eq.s32.totalorder %s15, 15
      %p67 = por %p65, %p66
      %p68 = scmp.ne.s32.totalorder %s60, %s63
      %p69 = scmp.eq.s32.totalorder %s15, 0
      %p70 = por %p68, %p69
      %p71 = scmp.ne.s32.totalorder %s60, %s63
      %p72 = scmp.eq.s32.totalorder %s20, 15
      %p73 = por %p71, %p72
      %p74 = scmp.ne.s32.totalorder %s63, %s64
      %p75 = scmp.eq.s32.totalorder %s20, 0
      %p76 = por %p74, %p75
      %p77 = scmp.ne.s32.totalorder %s63, %s64
      %p78 = scmp.eq.s32.totalorder %s21, 15
      %p79 = por %p77, %p78
      %p81 = scmp.ne.s32.totalorder %s64, %s80
      %p82 = scmp.eq.s32.totalorder %s21, 0
      %p83 = por %p81, %p82
      %s84 = ssub.s32 %s22, %s34
      %p85 = scmp.eq.s32.totalorder %s84, 0
      %s87 = sadd.s32 %s86, 1
      %s88 = scalar_select %p85, %s86, %s87
      %p91 = pneg %p85
      %p92 = scmp.eq.s32.totalorder %s15, 15
      %p93 = por %p91, %p92
      %p94 = scmp.ne.s32.totalorder %s86, %s89
      %p95 = scmp.eq.s32.totalorder %s15, 0
      %p96 = por %p94, %p95
      %p97 = scmp.ne.s32.totalorder %s86, %s89
      %p98 = scmp.eq.s32.totalorder %s20, 15
      %p99 = por %p97, %p98
      %p100 = scmp.ne.s32.totalorder %s89, %s90
      %p101 = scmp.eq.s32.totalorder %s20, 0
      %p102 = por %p100, %p101
      %p103 = scmp.ne.s32.totalorder %s89, %s90
      %p104 = scmp.eq.s32.totalorder %s21, 15
      %p105 = por %p103, %p104
      %p107 = scmp.ne.s32.totalorder %s90, %s106
      %p108 = scmp.eq.s32.totalorder %s21, 0
      %p109 = por %p107, %p108
      %s110 = ssub.s32 %s22, %s34
      %p111 = scmp.eq.s32.totalorder %s110, 0
      %s113 = sadd.s32 %s112, 1
      %s114 = scalar_select %p111, %s112, %s113
      %p117 = pneg %p111
      %p118 = scmp.eq.s32.totalorder %s15, 15
      %p119 = por %p117, %p118
      %p120 = scmp.ne.s32.totalorder %s112, %s115
      %p121 = scmp.eq.s32.totalorder %s15, 0
      %p122 = por %p120, %p121
      %p123 = scmp.ne.s32.totalorder %s112, %s115
      %p124 = scmp.eq.s32.totalorder %s20, 15
      %p125 = por %p123, %p124
      %p126 = scmp.ne.s32.totalorder %s115, %s116
      %p127 = scmp.eq.s32.totalorder %s20, 0
      %p128 = por %p126, %p127
      %p129 = scmp.ne.s32.totalorder %s115, %s116
      %p130 = scmp.eq.s32.totalorder %s21, 15
      %p131 = por %p129, %p130
      %p133 = scmp.ne.s32.totalorder %s116, %s132
      %p134 = scmp.eq.s32.totalorder %s21, 0
      %p135 = por %p133, %p134
      %p136 = scmp.le.s32.totalorder 1, %s15
      %p137 = scmp.lt.s32.totalorder %s15, 17
      %p138 = pnand %p136, %p137
      %p139 = pneg %p138
      // Predicated region
      $region9: #{net0_forward.2} parent=5 // pred_check
        _
      $region10: #{net0_forward.2} parent=5 // pred_check_branch
        %141 = sbr.rel (%p138) target = $region12
      $region11: #{net0_forward.2} parent=5 // pred_region
        %s142 = ssub.s32 %s15, 1
        // Predicated region
        $region13: #{net0_forward.2} parent=11 // pred_check
          %p143 = pneg %p48
        $region14: #{net0_forward.2} parent=11 // pred_check_branch
          %145 = sbr.rel (%p143) target = $region16
        $region15: #{net0_forward.2} parent=11 // pred_region
          _
        $region16: #{net0_forward.2} parent=11 // pred_fallthru
          _
      $region12: #{net0_forward.2} parent=5 // pred_fallthru
        _
      %p146 = scmp.lt.s32.totalorder %s15, 16
      // Predicated region
      $region17: #{net0_forward.2} parent=5 // pred_check
        %p147 = pneg %p146
      $region18: #{net0_forward.2} parent=5 // pred_check_branch
        %149 = sbr.rel (%p147) target = $region20
      $region19: #{net0_forward.2} parent=5 // pred_region
        // Predicated region
        $region21: #{net0_forward.2} parent=19 // pred_check
          %p150 = pneg %p70
        $region22: #{net0_forward.2} parent=19 // pred_check_branch
          %152 = sbr.rel (%p150) target = $region24
        $region23: #{net0_forward.2} parent=19 // pred_region
          %s153 = sand.u32 %s60, 1
          %s154 = scalar_lea.sflag [#allocation3], %s153
          %s155 = sand.u32 %s60, 1
          %s156 = smul.addr %s155, 16384
          %s157 = scalar_lea.vmem [#allocation2], %s156
          %s158 = smul.u32 512, %s23
          %s159 = smul.u32 4, %s22
          %s161 = ssub.s32 262144, 262144
          %162 = vsyncadd %s154, %s161
          %s163 = smul.addr %s158, 8
          %s164 = sadd.s32 %s159, %s163
          %s165 = smul.addr %s164, 128
          %s166 = scalar_lea.hbm %s1, %s165
          %s167 = sshll.u32 %s157, 4
          %s168 = int_to_ptr.vmem [resolvable:$true] %s167
          %173 = dma.hbm_to_vmem [thread:$0]  %s166, 262144, %s168, %s154, 1024, 512, 32
        $region24: #{net0_forward.2} parent=19 // pred_fallthru
          _
        // Predicated region
        $region25: #{net0_forward.2} parent=19 // pred_check
          %p174 = pneg %p96
        $region26: #{net0_forward.2} parent=19 // pred_check_branch
          %176 = sbr.rel (%p174) target = $region28
        $region27: #{net0_forward.2} parent=19 // pred_region
          %s177 = sand.u32 %s86, 1
          %s178 = scalar_lea.sflag [#allocation5], %s177
          %s179 = sand.u32 %s86, 1
          %s180 = smul.addr %s179, 4
          %s181 = scalar_lea.vmem [#allocation4], %s180
          %s182 = smul.u32 4, %s22
          %s184 = ssub.s32 64, 64
          %185 = vsyncadd %s178, %s184
          %s186 = smul.addr %s182, 16
          %s187 = scalar_lea.hbm %s2, %s186
          %s189 = sshll.u32 %s181, 4
          %s190 = int_to_ptr.vmem [resolvable:$true] %s189
          %192 = dma.hbm_to_vmem [thread:$0]  %s187, 64, %s190, %s178
        $region28: #{net0_forward.2} parent=19 // pred_fallthru
          _
      $region20: #{net0_forward.2} parent=5 // pred_fallthru
        _
      %p193 = scmp.le.s32.totalorder 1, %s15
      %p194 = scmp.lt.s32.totalorder %s15, 17
      %p195 = pnand %p193, %p194
      %p196 = pneg %p195
      // Predicated region
      $region29: #{net0_forward.2} parent=5 // pred_check
        _
      $region30: #{net0_forward.2} parent=5 // pred_check_branch
        %198 = sbr.rel (%p195) target = $region32
      $region31: #{net0_forward.2} parent=5 // pred_region
        %s199 = ssub.s32 %s15, 1
        %s200 = sand.u32 %s63, 1
        %s201 = scalar_lea.sflag [#allocation3], %s200
        %s202 = sand.u32 %s63, 1
        %s203 = smul.addr %s202, 16384
        %s204 = scalar_lea.vmem [#allocation2], %s203
        // Predicated region
        $region33: #{net0_forward.2} parent=31 // pred_check
          %p205 = pneg %p76
        $region34: #{net0_forward.2} parent=31 // pred_check_branch
          %207 = sbr.rel (%p205) target = $region36
        $region35: #{net0_forward.2} parent=31 // pred_region
          %208 = dma.done %s201, 262144
        $region36: #{net0_forward.2} parent=31 // pred_fallthru
          _
        %s209 = sand.u32 %s89, 1
        %s210 = scalar_lea.sflag [#allocation5], %s209
        %s211 = sand.u32 %s89, 1
        %s212 = smul.addr %s211, 4
        %s213 = scalar_lea.vmem [#allocation4], %s212
        // Predicated region
        $region37: #{net0_forward.2} parent=31 // pred_check
          %p214 = pneg %p102
        $region38: #{net0_forward.2} parent=31 // pred_check_branch
          %216 = sbr.rel (%p214) target = $region40
        $region39: #{net0_forward.2} parent=31 // pred_region
          %217 = dma.done %s210, 64
        $region40: #{net0_forward.2} parent=31 // pred_fallthru
          _
        %p218 = pneg %p48
        %p219 = pneg %p45
        %s220 = sand.u32 %s63, 1
        %s221 = scalar_lea.sflag [#allocation3], %s220
        %s222 = sand.u32 %s63, 1
        %s223 = smul.addr %s222, 16384
        %s224 = scalar_lea.vmem [#allocation2], %s223
        %p225 = pneg %p76
        %p226 = pneg %p73
        %s227 = sand.u32 %s89, 1
        %s228 = scalar_lea.sflag [#allocation5], %s227
        %s229 = sand.u32 %s89, 1
        %s230 = smul.addr %s229, 4
        %s231 = scalar_lea.vmem [#allocation4], %s230
        %p232 = pneg %p102
        %p233 = pneg %p99
        %p234 = pneg %p128
        %p235 = pneg %p125
        %s236 = smul.u32 4, %s24
        %p237 = scmp.lt.s32.totalorder %s236, 7
        %s238 = scalar_select %p237, %s236, 7
        %s239 = smul.addr %s238, 8
        %s240 = scalar_lea.vmem %s3, %s239
        %s241 = smul.u32 512, %s25
        %s242 = smul.u32 4, %s24
        %s243 = smul.u32 4, %s24
        %s244 = smul.u32 4, %s24
        %p245 = scmp.lt.s32.totalorder %s244, 7
        %s246 = scalar_select %p245, %s244, 7
        %s247 = smul.addr %s246, 8
        %s248 = scalar_lea.vmem %s3, %s247
        %s249 = smul.u32 4, %s24
        %p250 = scmp.eq.s32.totalorder %s25, 0
        // Predicated region
        $region41: #{net0_forward.2} parent=31 // pred_check
          %p251 = pneg %p250
        $region42: #{net0_forward.2} parent=31 // pred_check_branch
          %253 = sbr.rel (%p251) target = $region44
        $region43: #{net0_forward.2} parent=31 // pred_region
          %v254 = vld [vmem:[%s213] sm:$0xf]
          %v256 = vlaneseq
          %v257 = vshrl.u32 %v256, 7
          %v258 = vsub.s32 0, %v257
          %v259 = vrot.slane %v254, %v258
          %v260 = vlaneseq
          %v261 = vshrl.u32 %v260, 7
          %v262 = vsub.s32 1, %v261
          %v263 = vrot.slane %v254, %v262
          %v264 = vlaneseq
          %v265 = vshrl.u32 %v264, 7
          %v266 = vsub.s32 2, %v265
          %v267 = vrot.slane %v254, %v266
          %v268 = vlaneseq
          %v269 = vshrl.u32 %v268, 7
          %v270 = vsub.s32 3, %v269
          %v271 = vrot.slane %v254, %v270
          %276 = vst [vmem:[%s248] sm:$0xff] %v259
          %277 = vst [vmem:[%s248 + $0x8] sm:$0xff] %v263
          %278 = vst [vmem:[%s248 + $0x10] sm:$0xff] %v267
          %279 = vst [vmem:[%s248 + $0x18] sm:$0xff] %v271
        $region44: #{net0_forward.2} parent=31 // pred_fallthru
          _
        %s280 = smul.u32 %s25, 4096
        %s281 = sshra.s32 %s280, 7
        %s282 = sand.u32 %s280, 127
        %s283 = smul.addr %s281, 8
        %s284 = scalar_lea.vmem %s0, %s283
        %v285 = vld [vmem:[%s284] sm:$0xff]
        %v286 = vld [vmem:[%s284 + $0x8] sm:$0xff]
        %v287 = vld [vmem:[%s284 + $0x10] sm:$0xff]
        %v288 = vld [vmem:[%s284 + $0x18] sm:$0xff]
        %v289 = vld [vmem:[%s284 + $0x20] sm:$0xff]
        %v290 = vld [vmem:[%s284 + $0x28] sm:$0xff]
        %v291 = vld [vmem:[%s284 + $0x30] sm:$0xff]
        %v292 = vld [vmem:[%s284 + $0x38] sm:$0xff]
        %v293 = vld [vmem:[%s284 + $0x40] sm:$0xff]
        %v294 = vld [vmem:[%s284 + $0x48] sm:$0xff]
        %v295 = vld [vmem:[%s284 + $0x50] sm:$0xff]
        %v296 = vld [vmem:[%s284 + $0x58] sm:$0xff]
        %v297 = vld [vmem:[%s284 + $0x60] sm:$0xff]
        %v298 = vld [vmem:[%s284 + $0x68] sm:$0xff]
        %v299 = vld [vmem:[%s284 + $0x70] sm:$0xff]
        %v300 = vld [vmem:[%s284 + $0x78] sm:$0xff]
        %v301 = vld [vmem:[%s284 + $0x80] sm:$0xff]
        %v302 = vld [vmem:[%s284 + $0x88] sm:$0xff]
        %v303 = vld [vmem:[%s284 + $0x90] sm:$0xff]
        %v304 = vld [vmem:[%s284 + $0x98] sm:$0xff]
        %v305 = vld [vmem:[%s284 + $0xa0] sm:$0xff]
        %v306 = vld [vmem:[%s284 + $0xa8] sm:$0xff]
        %v307 = vld [vmem:[%s284 + $0xb0] sm:$0xff]
        %v308 = vld [vmem:[%s284 + $0xb8] sm:$0xff]
        %v309 = vld [vmem:[%s284 + $0xc0] sm:$0xff]
        %v310 = vld [vmem:[%s284 + $0xc8] sm:$0xff]
        %v311 = vld [vmem:[%s284 + $0xd0] sm:$0xff]
        %v312 = vld [vmem:[%s284 + $0xd8] sm:$0xff]
        %v313 = vld [vmem:[%s284 + $0xe0] sm:$0xff]
        %v314 = vld [vmem:[%s284 + $0xe8] sm:$0xff]
        %v315 = vld [vmem:[%s284 + $0xf0] sm:$0xff]
        %v316 = vld [vmem:[%s284 + $0xf8] sm:$0xff]
        %v317 = vld [vmem:[%s248] sm:$0xff]
        %v318 = vld [vmem:[%s248 + $0x8] sm:$0xff]
        %v319 = vld [vmem:[%s248 + $0x10] sm:$0xff]
        %v320 = vld [vmem:[%s248 + $0x18] sm:$0xff]
        %v321 = vld [vmem:[%s204] sm:$0xff]
        %v322 = vld [vmem:[%s204 + $0x8] sm:$0xff]
        %v323 = vld [vmem:[%s204 + $0x10] sm:$0xff]
        %v324 = vld [vmem:[%s204 + $0x18] sm:$0xff]
        %v325 = vld [vmem:[%s204 + $0x20] sm:$0xff]
        %v326 = vld [vmem:[%s204 + $0x28] sm:$0xff]
        %v327 = vld [vmem:[%s204 + $0x30] sm:$0xff]
        %v328 = vld [vmem:[%s204 + $0x38] sm:$0xff]
        %v329 = vld [vmem:[%s204 + $0x40] sm:$0xff]
        %v330 = vld [vmem:[%s204 + $0x48] sm:$0xff]
        %v331 = vld [vmem:[%s204 + $0x50] sm:$0xff]
        %v332 = vld [vmem:[%s204 + $0x58] sm:$0xff]
        %v333 = vld [vmem:[%s204 + $0x60] sm:$0xff]
        %v334 = vld [vmem:[%s204 + $0x68] sm:$0xff]
        %v335 = vld [vmem:[%s204 + $0x70] sm:$0xff]
        %v336 = vld [vmem:[%s204 + $0x78] sm:$0xff]
        %v337 = vld [vmem:[%s204 + $0x80] sm:$0xff]
        %v338 = vld [vmem:[%s204 + $0x88] sm:$0xff]
        %v339 = vld [vmem:[%s204 + $0x90] sm:$0xff]
        %v340 = vld [vmem:[%s204 + $0x98] sm:$0xff]
        %v341 = vld [vmem:[%s204 + $0xa0] sm:$0xff]
        %v342 = vld [vmem:[%s204 + $0xa8] sm:$0xff]
        %v343 = vld [vmem:[%s204 + $0xb0] sm:$0xff]
        %v344 = vld [vmem:[%s204 + $0xb8] sm:$0xff]
        %v345 = vld [vmem:[%s204 + $0xc0] sm:$0xff]
        %v346 = vld [vmem:[%s204 + $0xc8] sm:$0xff]
        %v347 = vld [vmem:[%s204 + $0xd0] sm:$0xff]
        %v348 = vld [vmem:[%s204 + $0xd8] sm:$0xff]
        %v349 = vld [vmem:[%s204 + $0xe0] sm:$0xff]
        %v350 = vld [vmem:[%s204 + $0xe8] sm:$0xff]
        %v351 = vld [vmem:[%s204 + $0xf0] sm:$0xff]
        %v352 = vld [vmem:[%s204 + $0xf8] sm:$0xff]
        %v353 = vld [vmem:[%s204 + $0x100] sm:$0xff]
        %v354 = vld [vmem:[%s204 + $0x108] sm:$0xff]
        %v355 = vld [vmem:[%s204 + $0x110] sm:$0xff]
        %v356 = vld [vmem:[%s204 + $0x118] sm:$0xff]
        %v357 = vld [vmem:[%s204 + $0x120] sm:$0xff]
        %v358 = vld [vmem:[%s204 + $0x128] sm:$0xff]
        %v359 = vld [vmem:[%s204 + $0x130] sm:$0xff]
        %v360 = vld [vmem:[%s204 + $0x138] sm:$0xff]
        %v361 = vld [vmem:[%s204 + $0x140] sm:$0xff]
        %v362 = vld [vmem:[%s204 + $0x148] sm:$0xff]
        %v363 = vld [vmem:[%s204 + $0x150] sm:$0xff]
        %v364 = vld [vmem:[%s204 + $0x158] sm:$0xff]
        %v365 = vld [vmem:[%s204 + $0x160] sm:$0xff]
        %v366 = vld [vmem:[%s204 + $0x168] sm:$0xff]
        %v367 = vld [vmem:[%s204 + $0x170] sm:$0xff]
        %v368 = vld [vmem:[%s204 + $0x178] sm:$0xff]
        %v369 = vld [vmem:[%s204 + $0x180] sm:$0xff]
        %v370 = vld [vmem:[%s204 + $0x188] sm:$0xff]
        %v371 = vld [vmem:[%s204 + $0x190] sm:$0xff]
        %v372 = vld [vmem:[%s204 + $0x198] sm:$0xff]
        %v373 = vld [vmem:[%s204 + $0x1a0] sm:$0xff]
        %v374 = vld [vmem:[%s204 + $0x1a8] sm:$0xff]
        %v375 = vld [vmem:[%s204 + $0x1b0] sm:$0xff]
        %v376 = vld [vmem:[%s204 + $0x1b8] sm:$0xff]
        %v377 = vld [vmem:[%s204 + $0x1c0] sm:$0xff]
        %v378 = vld [vmem:[%s204 + $0x1c8] sm:$0xff]
        %v379 = vld [vmem:[%s204 + $0x1d0] sm:$0xff]
        %v380 = vld [vmem:[%s204 + $0x1d8] sm:$0xff]
        %v381 = vld [vmem:[%s204 + $0x1e0] sm:$0xff]
        %v382 = vld [vmem:[%s204 + $0x1e8] sm:$0xff]
        %v383 = vld [vmem:[%s204 + $0x1f0] sm:$0xff]
        %v384 = vld [vmem:[%s204 + $0x1f8] sm:$0xff]
        %v385 = vld [vmem:[%s204 + $0x200] sm:$0xff]
        %v386 = vld [vmem:[%s204 + $0x208] sm:$0xff]
        %v387 = vld [vmem:[%s204 + $0x210] sm:$0xff]
        %v388 = vld [vmem:[%s204 + $0x218] sm:$0xff]
        %v389 = vld [vmem:[%s204 + $0x220] sm:$0xff]
        %v390 = vld [vmem:[%s204 + $0x228] sm:$0xff]
        %v391 = vld [vmem:[%s204 + $0x230] sm:$0xff]
        %v392 = vld [vmem:[%s204 + $0x238] sm:$0xff]
        %v393 = vld [vmem:[%s204 + $0x240] sm:$0xff]
        %v394 = vld [vmem:[%s204 + $0x248] sm:$0xff]
        %v395 = vld [vmem:[%s204 + $0x250] sm:$0xff]
        %v396 = vld [vmem:[%s204 + $0x258] sm:$0xff]
        %v397 = vld [vmem:[%s204 + $0x260] sm:$0xff]
        %v398 = vld [vmem:[%s204 + $0x268] sm:$0xff]
        %v399 = vld [vmem:[%s204 + $0x270] sm:$0xff]
        %v400 = vld [vmem:[%s204 + $0x278] sm:$0xff]
        %v401 = vld [vmem:[%s204 + $0x280] sm:$0xff]
        %v402 = vld [vmem:[%s204 + $0x288] sm:$0xff]
        %v403 = vld [vmem:[%s204 + $0x290] sm:$0xff]
        %v404 = vld [vmem:[%s204 + $0x298] sm:$0xff]
        %v405 = vld [vmem:[%s204 + $0x2a0] sm:$0xff]
        %v406 = vld [vmem:[%s204 + $0x2a8] sm:$0xff]
        %v407 = vld [vmem:[%s204 + $0x2b0] sm:$0xff]
        %v408 = vld [vmem:[%s204 + $0x2b8] sm:$0xff]
        %v409 = vld [vmem:[%s204 + $0x2c0] sm:$0xff]
        %v410 = vld [vmem:[%s204 + $0x2c8] sm:$0xff]
        %v411 = vld [vmem:[%s204 + $0x2d0] sm:$0xff]
        %v412 = vld [vmem:[%s204 + $0x2d8] sm:$0xff]
        %v413 = vld [vmem:[%s204 + $0x2e0] sm:$0xff]
        %v414 = vld [vmem:[%s204 + $0x2e8] sm:$0xff]
        %v415 = vld [vmem:[%s204 + $0x2f0] sm:$0xff]
        %v416 = vld [vmem:[%s204 + $0x2f8] sm:$0xff]
        %v417 = vld [vmem:[%s204 + $0x300] sm:$0xff]
        %v418 = vld [vmem:[%s204 + $0x308] sm:$0xff]
        %v419 = vld [vmem:[%s204 + $0x310] sm:$0xff]
        %v420 = vld [vmem:[%s204 + $0x318] sm:$0xff]
        %v421 = vld [vmem:[%s204 + $0x320] sm:$0xff]
        %v422 = vld [vmem:[%s204 + $0x328] sm:$0xff]
        %v423 = vld [vmem:[%s204 + $0x330] sm:$0xff]
        %v424 = vld [vmem:[%s204 + $0x338] sm:$0xff]
        %v425 = vld [vmem:[%s204 + $0x340] sm:$0xff]
        %v426 = vld [vmem:[%s204 + $0x348] sm:$0xff]
        %v427 = vld [vmem:[%s204 + $0x350] sm:$0xff]
        %v428 = vld [vmem:[%s204 + $0x358] sm:$0xff]
        %v429 = vld [vmem:[%s204 + $0x360] sm:$0xff]
        %v430 = vld [vmem:[%s204 + $0x368] sm:$0xff]
        %v431 = vld [vmem:[%s204 + $0x370] sm:$0xff]
        %v432 = vld [vmem:[%s204 + $0x378] sm:$0xff]
        %v433 = vld [vmem:[%s204 + $0x380] sm:$0xff]
        %v434 = vld [vmem:[%s204 + $0x388] sm:$0xff]
        %v435 = vld [vmem:[%s204 + $0x390] sm:$0xff]
        %v436 = vld [vmem:[%s204 + $0x398] sm:$0xff]
        %v437 = vld [vmem:[%s204 + $0x3a0] sm:$0xff]
        %v438 = vld [vmem:[%s204 + $0x3a8] sm:$0xff]
        %v439 = vld [vmem:[%s204 + $0x3b0] sm:$0xff]
        %v440 = vld [vmem:[%s204 + $0x3b8] sm:$0xff]
        %v441 = vld [vmem:[%s204 + $0x3c0] sm:$0xff]
        %v442 = vld [vmem:[%s204 + $0x3c8] sm:$0xff]
        %v443 = vld [vmem:[%s204 + $0x3d0] sm:$0xff]
        %v444 = vld [vmem:[%s204 + $0x3d8] sm:$0xff]
        %v445 = vld [vmem:[%s204 + $0x3e0] sm:$0xff]
        %v446 = vld [vmem:[%s204 + $0x3e8] sm:$0xff]
        %v447 = vld [vmem:[%s204 + $0x3f0] sm:$0xff]
        %v448 = vld [vmem:[%s204 + $0x3f8] sm:$0xff]
        %v449 = vld [vmem:[%s204 + $0x400] sm:$0xff]
        %v450 = vld [vmem:[%s204 + $0x408] sm:$0xff]
        %v451 = vld [vmem:[%s204 + $0x410] sm:$0xff]
        %v452 = vld [vmem:[%s204 + $0x418] sm:$0xff]
        %v453 = vld [vmem:[%s204 + $0x420] sm:$0xff]
        %v454 = vld [vmem:[%s204 + $0x428] sm:$0xff]
        %v455 = vld [vmem:[%s204 + $0x430] sm:$0xff]
        %v456 = vld [vmem:[%s204 + $0x438] sm:$0xff]
        %v457 = vld [vmem:[%s204 + $0x440] sm:$0xff]
        %v458 = vld [vmem:[%s204 + $0x448] sm:$0xff]
        %v459 = vld [vmem:[%s204 + $0x450] sm:$0xff]
        %v460 = vld [vmem:[%s204 + $0x458] sm:$0xff]
        %v461 = vld [vmem:[%s204 + $0x460] sm:$0xff]
        %v462 = vld [vmem:[%s204 + $0x468] sm:$0xff]
        %v463 = vld [vmem:[%s204 + $0x470] sm:$0xff]
        %v464 = vld [vmem:[%s204 + $0x478] sm:$0xff]
        %v465 = vld [vmem:[%s204 + $0x480] sm:$0xff]
        %v466 = vld [vmem:[%s204 + $0x488] sm:$0xff]
        %v467 = vld [vmem:[%s204 + $0x490] sm:$0xff]
        %v468 = vld [vmem:[%s204 + $0x498] sm:$0xff]
        %v469 = vld [vmem:[%s204 + $0x4a0] sm:$0xff]
        %v470 = vld [vmem:[%s204 + $0x4a8] sm:$0xff]
        %v471 = vld [vmem:[%s204 + $0x4b0] sm:$0xff]
        %v472 = vld [vmem:[%s204 + $0x4b8] sm:$0xff]
        %v473 = vld [vmem:[%s204 + $0x4c0] sm:$0xff]
        %v474 = vld [vmem:[%s204 + $0x4c8] sm:$0xff]
        %v475 = vld [vmem:[%s204 + $0x4d0] sm:$0xff]
        %v476 = vld [vmem:[%s204 + $0x4d8] sm:$0xff]
        %v477 = vld [vmem:[%s204 + $0x4e0] sm:$0xff]
        %v478 = vld [vmem:[%s204 + $0x4e8] sm:$0xff]
        %v479 = vld [vmem:[%s204 + $0x4f0] sm:$0xff]
        %v480 = vld [vmem:[%s204 + $0x4f8] sm:$0xff]
        %v481 = vld [vmem:[%s204 + $0x500] sm:$0xff]
        %v482 = vld [vmem:[%s204 + $0x508] sm:$0xff]
        %v483 = vld [vmem:[%s204 + $0x510] sm:$0xff]
        %v484 = vld [vmem:[%s204 + $0x518] sm:$0xff]
        %v485 = vld [vmem:[%s204 + $0x520] sm:$0xff]
        %v486 = vld [vmem:[%s204 + $0x528] sm:$0xff]
        %v487 = vld [vmem:[%s204 + $0x530] sm:$0xff]
        %v488 = vld [vmem:[%s204 + $0x538] sm:$0xff]
        %v489 = vld [vmem:[%s204 + $0x540] sm:$0xff]
        %v490 = vld [vmem:[%s204 + $0x548] sm:$0xff]
        %v491 = vld [vmem:[%s204 + $0x550] sm:$0xff]
        %v492 = vld [vmem:[%s204 + $0x558] sm:$0xff]
        %v493 = vld [vmem:[%s204 + $0x560] sm:$0xff]
        %v494 = vld [vmem:[%s204 + $0x568] sm:$0xff]
        %v495 = vld [vmem:[%s204 + $0x570] sm:$0xff]
        %v496 = vld [vmem:[%s204 + $0x578] sm:$0xff]
        %v497 = vld [vmem:[%s204 + $0x580] sm:$0xff]
        %v498 = vld [vmem:[%s204 + $0x588] sm:$0xff]
        %v499 = vld [vmem:[%s204 + $0x590] sm:$0xff]
        %v500 = vld [vmem:[%s204 + $0x598] sm:$0xff]
        %v501 = vld [vmem:[%s204 + $0x5a0] sm:$0xff]
        %v502 = vld [vmem:[%s204 + $0x5a8] sm:$0xff]
        %v503 = vld [vmem:[%s204 + $0x5b0] sm:$0xff]
        %v504 = vld [vmem:[%s204 + $0x5b8] sm:$0xff]
        %v505 = vld [vmem:[%s204 + $0x5c0] sm:$0xff]
        %v506 = vld [vmem:[%s204 + $0x5c8] sm:$0xff]
        %v507 = vld [vmem:[%s204 + $0x5d0] sm:$0xff]
        %v508 = vld [vmem:[%s204 + $0x5d8] sm:$0xff]
        %v509 = vld [vmem:[%s204 + $0x5e0] sm:$0xff]
        %v510 = vld [vmem:[%s204 + $0x5e8] sm:$0xff]
        %v511 = vld [vmem:[%s204 + $0x5f0] sm:$0xff]
        %v512 = vld [vmem:[%s204 + $0x5f8] sm:$0xff]
        %v513 = vld [vmem:[%s204 + $0x600] sm:$0xff]
        %v514 = vld [vmem:[%s204 + $0x608] sm:$0xff]
        %v515 = vld [vmem:[%s204 + $0x610] sm:$0xff]
        %v516 = vld [vmem:[%s204 + $0x618] sm:$0xff]
        %v517 = vld [vmem:[%s204 + $0x620] sm:$0xff]
        %v518 = vld [vmem:[%s204 + $0x628] sm:$0xff]
        %v519 = vld [vmem:[%s204 + $0x630] sm:$0xff]
        %v520 = vld [vmem:[%s204 + $0x638] sm:$0xff]
        %v521 = vld [vmem:[%s204 + $0x640] sm:$0xff]
        %v522 = vld [vmem:[%s204 + $0x648] sm:$0xff]
        %v523 = vld [vmem:[%s204 + $0x650] sm:$0xff]
        %v524 = vld [vmem:[%s204 + $0x658] sm:$0xff]
        %v525 = vld [vmem:[%s204 + $0x660] sm:$0xff]
        %v526 = vld [vmem:[%s204 + $0x668] sm:$0xff]
        %v527 = vld [vmem:[%s204 + $0x670] sm:$0xff]
        %v528 = vld [vmem:[%s204 + $0x678] sm:$0xff]
        %v529 = vld [vmem:[%s204 + $0x680] sm:$0xff]
        %v530 = vld [vmem:[%s204 + $0x688] sm:$0xff]
        %v531 = vld [vmem:[%s204 + $0x690] sm:$0xff]
        %v532 = vld [vmem:[%s204 + $0x698] sm:$0xff]
        %v533 = vld [vmem:[%s204 + $0x6a0] sm:$0xff]
        %v534 = vld [vmem:[%s204 + $0x6a8] sm:$0xff]
        %v535 = vld [vmem:[%s204 + $0x6b0] sm:$0xff]
        %v536 = vld [vmem:[%s204 + $0x6b8] sm:$0xff]
        %v537 = vld [vmem:[%s204 + $0x6c0] sm:$0xff]
        %v538 = vld [vmem:[%s204 + $0x6c8] sm:$0xff]
        %v539 = vld [vmem:[%s204 + $0x6d0] sm:$0xff]
        %v540 = vld [vmem:[%s204 + $0x6d8] sm:$0xff]
        %v541 = vld [vmem:[%s204 + $0x6e0] sm:$0xff]
        %v542 = vld [vmem:[%s204 + $0x6e8] sm:$0xff]
        %v543 = vld [vmem:[%s204 + $0x6f0] sm:$0xff]
        %v544 = vld [vmem:[%s204 + $0x6f8] sm:$0xff]
        %v545 = vld [vmem:[%s204 + $0x700] sm:$0xff]
        %v546 = vld [vmem:[%s204 + $0x708] sm:$0xff]
        %v547 = vld [vmem:[%s204 + $0x710] sm:$0xff]
        %v548 = vld [vmem:[%s204 + $0x718] sm:$0xff]
        %v549 = vld [vmem:[%s204 + $0x720] sm:$0xff]
        %v550 = vld [vmem:[%s204 + $0x728] sm:$0xff]
        %v551 = vld [vmem:[%s204 + $0x730] sm:$0xff]
        %v552 = vld [vmem:[%s204 + $0x738] sm:$0xff]
        %v553 = vld [vmem:[%s204 + $0x740] sm:$0xff]
        %v554 = vld [vmem:[%s204 + $0x748] sm:$0xff]
        %v555 = vld [vmem:[%s204 + $0x750] sm:$0xff]
        %v556 = vld [vmem:[%s204 + $0x758] sm:$0xff]
        %v557 = vld [vmem:[%s204 + $0x760] sm:$0xff]
        %v558 = vld [vmem:[%s204 + $0x768] sm:$0xff]
        %v559 = vld [vmem:[%s204 + $0x770] sm:$0xff]
        %v560 = vld [vmem:[%s204 + $0x778] sm:$0xff]
        %v561 = vld [vmem:[%s204 + $0x780] sm:$0xff]
        %v562 = vld [vmem:[%s204 + $0x788] sm:$0xff]
        %v563 = vld [vmem:[%s204 + $0x790] sm:$0xff]
        %v564 = vld [vmem:[%s204 + $0x798] sm:$0xff]
        %v565 = vld [vmem:[%s204 + $0x7a0] sm:$0xff]
        %v566 = vld [vmem:[%s204 + $0x7a8] sm:$0xff]
        %v567 = vld [vmem:[%s204 + $0x7b0] sm:$0xff]
        %v568 = vld [vmem:[%s204 + $0x7b8] sm:$0xff]
        %v569 = vld [vmem:[%s204 + $0x7c0] sm:$0xff]
        %v570 = vld [vmem:[%s204 + $0x7c8] sm:$0xff]
        %v571 = vld [vmem:[%s204 + $0x7d0] sm:$0xff]
        %v572 = vld [vmem:[%s204 + $0x7d8] sm:$0xff]
        %v573 = vld [vmem:[%s204 + $0x7e0] sm:$0xff]
        %v574 = vld [vmem:[%s204 + $0x7e8] sm:$0xff]
        %v575 = vld [vmem:[%s204 + $0x7f0] sm:$0xff]
        %v576 = vld [vmem:[%s204 + $0x7f8] sm:$0xff]
        %v577 = vld [vmem:[%s204 + $0x800] sm:$0xff]
        %v578 = vld [vmem:[%s204 + $0x808] sm:$0xff]
        %v579 = vld [vmem:[%s204 + $0x810] sm:$0xff]
        %v580 = vld [vmem:[%s204 + $0x818] sm:$0xff]
        %v581 = vld [vmem:[%s204 + $0x820] sm:$0xff]
        %v582 = vld [vmem:[%s204 + $0x828] sm:$0xff]
        %v583 = vld [vmem:[%s204 + $0x830] sm:$0xff]
        %v584 = vld [vmem:[%s204 + $0x838] sm:$0xff]
        %v585 = vld [vmem:[%s204 + $0x840] sm:$0xff]
        %v586 = vld [vmem:[%s204 + $0x848] sm:$0xff]
        %v587 = vld [vmem:[%s204 + $0x850] sm:$0xff]
        %v588 = vld [vmem:[%s204 + $0x858] sm:$0xff]
        %v589 = vld [vmem:[%s204 + $0x860] sm:$0xff]
        %v590 = vld [vmem:[%s204 + $0x868] sm:$0xff]
        %v591 = vld [vmem:[%s204 + $0x870] sm:$0xff]
        %v592 = vld [vmem:[%s204 + $0x878] sm:$0xff]
        %v593 = vld [vmem:[%s204 + $0x880] sm:$0xff]
        %v594 = vld [vmem:[%s204 + $0x888] sm:$0xff]
        %v595 = vld [vmem:[%s204 + $0x890] sm:$0xff]
        %v596 = vld [vmem:[%s204 + $0x898] sm:$0xff]
        %v597 = vld [vmem:[%s204 + $0x8a0] sm:$0xff]
        %v598 = vld [vmem:[%s204 + $0x8a8] sm:$0xff]
        %v599 = vld [vmem:[%s204 + $0x8b0] sm:$0xff]
        %v600 = vld [vmem:[%s204 + $0x8b8] sm:$0xff]
        %v601 = vld [vmem:[%s204 + $0x8c0] sm:$0xff]
        %v602 = vld [vmem:[%s204 + $0x8c8] sm:$0xff]
        %v603 = vld [vmem:[%s204 + $0x8d0] sm:$0xff]
        %v604 = vld [vmem:[%s204 + $0x8d8] sm:$0xff]
        %v605 = vld [vmem:[%s204 + $0x8e0] sm:$0xff]
        %v606 = vld [vmem:[%s204 + $0x8e8] sm:$0xff]
        %v607 = vld [vmem:[%s204 + $0x8f0] sm:$0xff]
        %v608 = vld [vmem:[%s204 + $0x8f8] sm:$0xff]
        %v609 = vld [vmem:[%s204 + $0x900] sm:$0xff]
        %v610 = vld [vmem:[%s204 + $0x908] sm:$0xff]
        %v611 = vld [vmem:[%s204 + $0x910] sm:$0xff]
        %v612 = vld [vmem:[%s204 + $0x918] sm:$0xff]
        %v613 = vld [vmem:[%s204 + $0x920] sm:$0xff]
        %v614 = vld [vmem:[%s204 + $0x928] sm:$0xff]
        %v615 = vld [vmem:[%s204 + $0x930] sm:$0xff]
        %v616 = vld [vmem:[%s204 + $0x938] sm:$0xff]
        %v617 = vld [vmem:[%s204 + $0x940] sm:$0xff]
        %v618 = vld [vmem:[%s204 + $0x948] sm:$0xff]
        %v619 = vld [vmem:[%s204 + $0x950] sm:$0xff]
        %v620 = vld [vmem:[%s204 + $0x958] sm:$0xff]
        %v621 = vld [vmem:[%s204 + $0x960] sm:$0xff]
        %v622 = vld [vmem:[%s204 + $0x968] sm:$0xff]
        %v623 = vld [vmem:[%s204 + $0x970] sm:$0xff]
        %v624 = vld [vmem:[%s204 + $0x978] sm:$0xff]
        %v625 = vld [vmem:[%s204 + $0x980] sm:$0xff]
        %v626 = vld [vmem:[%s204 + $0x988] sm:$0xff]
        %v627 = vld [vmem:[%s204 + $0x990] sm:$0xff]
        %v628 = vld [vmem:[%s204 + $0x998] sm:$0xff]
        %v629 = vld [vmem:[%s204 + $0x9a0] sm:$0xff]
        %v630 = vld [vmem:[%s204 + $0x9a8] sm:$0xff]
        %v631 = vld [vmem:[%s204 + $0x9b0] sm:$0xff]
        %v632 = vld [vmem:[%s204 + $0x9b8] sm:$0xff]
        %v633 = vld [vmem:[%s204 + $0x9c0] sm:$0xff]
        %v634 = vld [vmem:[%s204 + $0x9c8] sm:$0xff]
        %v635 = vld [vmem:[%s204 + $0x9d0] sm:$0xff]
        %v636 = vld [vmem:[%s204 + $0x9d8] sm:$0xff]
        %v637 = vld [vmem:[%s204 + $0x9e0] sm:$0xff]
        %v638 = vld [vmem:[%s204 + $0x9e8] sm:$0xff]
        %v639 = vld [vmem:[%s204 + $0x9f0] sm:$0xff]
        %v640 = vld [vmem:[%s204 + $0x9f8] sm:$0xff]
        %v641 = vld [vmem:[%s204 + $0xa00] sm:$0xff]
        %v642 = vld [vmem:[%s204 + $0xa08] sm:$0xff]
        %v643 = vld [vmem:[%s204 + $0xa10] sm:$0xff]
        %v644 = vld [vmem:[%s204 + $0xa18] sm:$0xff]
        %v645 = vld [vmem:[%s204 + $0xa20] sm:$0xff]
        %v646 = vld [vmem:[%s204 + $0xa28] sm:$0xff]
        %v647 = vld [vmem:[%s204 + $0xa30] sm:$0xff]
        %v648 = vld [vmem:[%s204 + $0xa38] sm:$0xff]
        %v649 = vld [vmem:[%s204 + $0xa40] sm:$0xff]
        %v650 = vld [vmem:[%s204 + $0xa48] sm:$0xff]
        %v651 = vld [vmem:[%s204 + $0xa50] sm:$0xff]
        %v652 = vld [vmem:[%s204 + $0xa58] sm:$0xff]
        %v653 = vld [vmem:[%s204 + $0xa60] sm:$0xff]
        %v654 = vld [vmem:[%s204 + $0xa68] sm:$0xff]
        %v655 = vld [vmem:[%s204 + $0xa70] sm:$0xff]
        %v656 = vld [vmem:[%s204 + $0xa78] sm:$0xff]
        %v657 = vld [vmem:[%s204 + $0xa80] sm:$0xff]
        %v658 = vld [vmem:[%s204 + $0xa88] sm:$0xff]
        %v659 = vld [vmem:[%s204 + $0xa90] sm:$0xff]
        %v660 = vld [vmem:[%s204 + $0xa98] sm:$0xff]
        %v661 = vld [vmem:[%s204 + $0xaa0] sm:$0xff]
        %v662 = vld [vmem:[%s204 + $0xaa8] sm:$0xff]
        %v663 = vld [vmem:[%s204 + $0xab0] sm:$0xff]
        %v664 = vld [vmem:[%s204 + $0xab8] sm:$0xff]
        %v665 = vld [vmem:[%s204 + $0xac0] sm:$0xff]
        %v666 = vld [vmem:[%s204 + $0xac8] sm:$0xff]
        %v667 = vld [vmem:[%s204 + $0xad0] sm:$0xff]
        %v668 = vld [vmem:[%s204 + $0xad8] sm:$0xff]
        %v669 = vld [vmem:[%s204 + $0xae0] sm:$0xff]
        %v670 = vld [vmem:[%s204 + $0xae8] sm:$0xff]
        %v671 = vld [vmem:[%s204 + $0xaf0] sm:$0xff]
        %v672 = vld [vmem:[%s204 + $0xaf8] sm:$0xff]
        %v673 = vld [vmem:[%s204 + $0xb00] sm:$0xff]
        %v674 = vld [vmem:[%s204 + $0xb08] sm:$0xff]
        %v675 = vld [vmem:[%s204 + $0xb10] sm:$0xff]
        %v676 = vld [vmem:[%s204 + $0xb18] sm:$0xff]
        %v677 = vld [vmem:[%s204 + $0xb20] sm:$0xff]
        %v678 = vld [vmem:[%s204 + $0xb28] sm:$0xff]
        %v679 = vld [vmem:[%s204 + $0xb30] sm:$0xff]
        %v680 = vld [vmem:[%s204 + $0xb38] sm:$0xff]
        %v681 = vld [vmem:[%s204 + $0xb40] sm:$0xff]
        %v682 = vld [vmem:[%s204 + $0xb48] sm:$0xff]
        %v683 = vld [vmem:[%s204 + $0xb50] sm:$0xff]
        %v684 = vld [vmem:[%s204 + $0xb58] sm:$0xff]
        %v685 = vld [vmem:[%s204 + $0xb60] sm:$0xff]
        %v686 = vld [vmem:[%s204 + $0xb68] sm:$0xff]
        %v687 = vld [vmem:[%s204 + $0xb70] sm:$0xff]
        %v688 = vld [vmem:[%s204 + $0xb78] sm:$0xff]
        %v689 = vld [vmem:[%s204 + $0xb80] sm:$0xff]
        %v690 = vld [vmem:[%s204 + $0xb88] sm:$0xff]
        %v691 = vld [vmem:[%s204 + $0xb90] sm:$0xff]
        %v692 = vld [vmem:[%s204 + $0xb98] sm:$0xff]
        %v693 = vld [vmem:[%s204 + $0xba0] sm:$0xff]
        %v694 = vld [vmem:[%s204 + $0xba8] sm:$0xff]
        %v695 = vld [vmem:[%s204 + $0xbb0] sm:$0xff]
        %v696 = vld [vmem:[%s204 + $0xbb8] sm:$0xff]
        %v697 = vld [vmem:[%s204 + $0xbc0] sm:$0xff]
        %v698 = vld [vmem:[%s204 + $0xbc8] sm:$0xff]
        %v699 = vld [vmem:[%s204 + $0xbd0] sm:$0xff]
        %v700 = vld [vmem:[%s204 + $0xbd8] sm:$0xff]
        %v701 = vld [vmem:[%s204 + $0xbe0] sm:$0xff]
        %v702 = vld [vmem:[%s204 + $0xbe8] sm:$0xff]
        %v703 = vld [vmem:[%s204 + $0xbf0] sm:$0xff]
        %v704 = vld [vmem:[%s204 + $0xbf8] sm:$0xff]
        %v705 = vld [vmem:[%s204 + $0xc00] sm:$0xff]
        %v706 = vld [vmem:[%s204 + $0xc08] sm:$0xff]
        %v707 = vld [vmem:[%s204 + $0xc10] sm:$0xff]
        %v708 = vld [vmem:[%s204 + $0xc18] sm:$0xff]
        %v709 = vld [vmem:[%s204 + $0xc20] sm:$0xff]
        %v710 = vld [vmem:[%s204 + $0xc28] sm:$0xff]
        %v711 = vld [vmem:[%s204 + $0xc30] sm:$0xff]
        %v712 = vld [vmem:[%s204 + $0xc38] sm:$0xff]
        %v713 = vld [vmem:[%s204 + $0xc40] sm:$0xff]
        %v714 = vld [vmem:[%s204 + $0xc48] sm:$0xff]
        %v715 = vld [vmem:[%s204 + $0xc50] sm:$0xff]
        %v716 = vld [vmem:[%s204 + $0xc58] sm:$0xff]
        %v717 = vld [vmem:[%s204 + $0xc60] sm:$0xff]
        %v718 = vld [vmem:[%s204 + $0xc68] sm:$0xff]
        %v719 = vld [vmem:[%s204 + $0xc70] sm:$0xff]
        %v720 = vld [vmem:[%s204 + $0xc78] sm:$0xff]
        %v721 = vld [vmem:[%s204 + $0xc80] sm:$0xff]
        %v722 = vld [vmem:[%s204 + $0xc88] sm:$0xff]
        %v723 = vld [vmem:[%s204 + $0xc90] sm:$0xff]
        %v724 = vld [vmem:[%s204 + $0xc98] sm:$0xff]
        %v725 = vld [vmem:[%s204 + $0xca0] sm:$0xff]
        %v726 = vld [vmem:[%s204 + $0xca8] sm:$0xff]
        %v727 = vld [vmem:[%s204 + $0xcb0] sm:$0xff]
        %v728 = vld [vmem:[%s204 + $0xcb8] sm:$0xff]
        %v729 = vld [vmem:[%s204 + $0xcc0] sm:$0xff]
        %v730 = vld [vmem:[%s204 + $0xcc8] sm:$0xff]
        %v731 = vld [vmem:[%s204 + $0xcd0] sm:$0xff]
        %v732 = vld [vmem:[%s204 + $0xcd8] sm:$0xff]
        %v733 = vld [vmem:[%s204 + $0xce0] sm:$0xff]
        %v734 = vld [vmem:[%s204 + $0xce8] sm:$0xff]
        %v735 = vld [vmem:[%s204 + $0xcf0] sm:$0xff]
        %v736 = vld [vmem:[%s204 + $0xcf8] sm:$0xff]
        %v737 = vld [vmem:[%s204 + $0xd00] sm:$0xff]
        %v738 = vld [vmem:[%s204 + $0xd08] sm:$0xff]
        %v739 = vld [vmem:[%s204 + $0xd10] sm:$0xff]
        %v740 = vld [vmem:[%s204 + $0xd18] sm:$0xff]
        %v741 = vld [vmem:[%s204 + $0xd20] sm:$0xff]
        %v742 = vld [vmem:[%s204 + $0xd28] sm:$0xff]
        %v743 = vld [vmem:[%s204 + $0xd30] sm:$0xff]
        %v744 = vld [vmem:[%s204 + $0xd38] sm:$0xff]
        %v745 = vld [vmem:[%s204 + $0xd40] sm:$0xff]
        %v746 = vld [vmem:[%s204 + $0xd48] sm:$0xff]
        %v747 = vld [vmem:[%s204 + $0xd50] sm:$0xff]
        %v748 = vld [vmem:[%s204 + $0xd58] sm:$0xff]
        %v749 = vld [vmem:[%s204 + $0xd60] sm:$0xff]
        %v750 = vld [vmem:[%s204 + $0xd68] sm:$0xff]
        %v751 = vld [vmem:[%s204 + $0xd70] sm:$0xff]
        %v752 = vld [vmem:[%s204 + $0xd78] sm:$0xff]
        %v753 = vld [vmem:[%s204 + $0xd80] sm:$0xff]
        %v754 = vld [vmem:[%s204 + $0xd88] sm:$0xff]
        %v755 = vld [vmem:[%s204 + $0xd90] sm:$0xff]
        %v756 = vld [vmem:[%s204 + $0xd98] sm:$0xff]
        %v757 = vld [vmem:[%s204 + $0xda0] sm:$0xff]
        %v758 = vld [vmem:[%s204 + $0xda8] sm:$0xff]
        %v759 = vld [vmem:[%s204 + $0xdb0] sm:$0xff]
        %v760 = vld [vmem:[%s204 + $0xdb8] sm:$0xff]
        %v761 = vld [vmem:[%s204 + $0xdc0] sm:$0xff]
        %v762 = vld [vmem:[%s204 + $0xdc8] sm:$0xff]
        %v763 = vld [vmem:[%s204 + $0xdd0] sm:$0xff]
        %v764 = vld [vmem:[%s204 + $0xdd8] sm:$0xff]
        %v765 = vld [vmem:[%s204 + $0xde0] sm:$0xff]
        %v766 = vld [vmem:[%s204 + $0xde8] sm:$0xff]
        %v767 = vld [vmem:[%s204 + $0xdf0] sm:$0xff]
        %v768 = vld [vmem:[%s204 + $0xdf8] sm:$0xff]
        %v769 = vld [vmem:[%s204 + $0xe00] sm:$0xff]
        %v770 = vld [vmem:[%s204 + $0xe08] sm:$0xff]
        %v771 = vld [vmem:[%s204 + $0xe10] sm:$0xff]
        %v772 = vld [vmem:[%s204 + $0xe18] sm:$0xff]
        %v773 = vld [vmem:[%s204 + $0xe20] sm:$0xff]
        %v774 = vld [vmem:[%s204 + $0xe28] sm:$0xff]
        %v775 = vld [vmem:[%s204 + $0xe30] sm:$0xff]
        %v776 = vld [vmem:[%s204 + $0xe38] sm:$0xff]
        %v777 = vld [vmem:[%s204 + $0xe40] sm:$0xff]
        %v778 = vld [vmem:[%s204 + $0xe48] sm:$0xff]
        %v779 = vld [vmem:[%s204 + $0xe50] sm:$0xff]
        %v780 = vld [vmem:[%s204 + $0xe58] sm:$0xff]
        %v781 = vld [vmem:[%s204 + $0xe60] sm:$0xff]
        %v782 = vld [vmem:[%s204 + $0xe68] sm:$0xff]
        %v783 = vld [vmem:[%s204 + $0xe70] sm:$0xff]
        %v784 = vld [vmem:[%s204 + $0xe78] sm:$0xff]
        %v785 = vld [vmem:[%s204 + $0xe80] sm:$0xff]
        %v786 = vld [vmem:[%s204 + $0xe88] sm:$0xff]
        %v787 = vld [vmem:[%s204 + $0xe90] sm:$0xff]
        %v788 = vld [vmem:[%s204 + $0xe98] sm:$0xff]
        %v789 = vld [vmem:[%s204 + $0xea0] sm:$0xff]
        %v790 = vld [vmem:[%s204 + $0xea8] sm:$0xff]
        %v791 = vld [vmem:[%s204 + $0xeb0] sm:$0xff]
        %v792 = vld [vmem:[%s204 + $0xeb8] sm:$0xff]
        %v793 = vld [vmem:[%s204 + $0xec0] sm:$0xff]
        %v794 = vld [vmem:[%s204 + $0xec8] sm:$0xff]
        %v795 = vld [vmem:[%s204 + $0xed0] sm:$0xff]
        %v796 = vld [vmem:[%s204 + $0xed8] sm:$0xff]
        %v797 = vld [vmem:[%s204 + $0xee0] sm:$0xff]
        %v798 = vld [vmem:[%s204 + $0xee8] sm:$0xff]
        %v799 = vld [vmem:[%s204 + $0xef0] sm:$0xff]
        %v800 = vld [vmem:[%s204 + $0xef8] sm:$0xff]
        %v801 = vld [vmem:[%s204 + $0xf00] sm:$0xff]
        %v802 = vld [vmem:[%s204 + $0xf08] sm:$0xff]
        %v803 = vld [vmem:[%s204 + $0xf10] sm:$0xff]
        %v804 = vld [vmem:[%s204 + $0xf18] sm:$0xff]
        %v805 = vld [vmem:[%s204 + $0xf20] sm:$0xff]
        %v806 = vld [vmem:[%s204 + $0xf28] sm:$0xff]
        %v807 = vld [vmem:[%s204 + $0xf30] sm:$0xff]
        %v808 = vld [vmem:[%s204 + $0xf38] sm:$0xff]
        %v809 = vld [vmem:[%s204 + $0xf40] sm:$0xff]
        %v810 = vld [vmem:[%s204 + $0xf48] sm:$0xff]
        %v811 = vld [vmem:[%s204 + $0xf50] sm:$0xff]
        %v812 = vld [vmem:[%s204 + $0xf58] sm:$0xff]
        %v813 = vld [vmem:[%s204 + $0xf60] sm:$0xff]
        %v814 = vld [vmem:[%s204 + $0xf68] sm:$0xff]
        %v815 = vld [vmem:[%s204 + $0xf70] sm:$0xff]
        %v816 = vld [vmem:[%s204 + $0xf78] sm:$0xff]
        %v817 = vld [vmem:[%s204 + $0xf80] sm:$0xff]
        %v818 = vld [vmem:[%s204 + $0xf88] sm:$0xff]
        %v819 = vld [vmem:[%s204 + $0xf90] sm:$0xff]
        %v820 = vld [vmem:[%s204 + $0xf98] sm:$0xff]
        %v821 = vld [vmem:[%s204 + $0xfa0] sm:$0xff]
        %v822 = vld [vmem:[%s204 + $0xfa8] sm:$0xff]
        %v823 = vld [vmem:[%s204 + $0xfb0] sm:$0xff]
        %v824 = vld [vmem:[%s204 + $0xfb8] sm:$0xff]
        %v825 = vld [vmem:[%s204 + $0xfc0] sm:$0xff]
        %v826 = vld [vmem:[%s204 + $0xfc8] sm:$0xff]
        %v827 = vld [vmem:[%s204 + $0xfd0] sm:$0xff]
        %v828 = vld [vmem:[%s204 + $0xfd8] sm:$0xff]
        %v829 = vld [vmem:[%s204 + $0xfe0] sm:$0xff]
        %v830 = vld [vmem:[%s204 + $0xfe8] sm:$0xff]
        %v831 = vld [vmem:[%s204 + $0xff0] sm:$0xff]
        %v832 = vld [vmem:[%s204 + $0xff8] sm:$0xff]
        %v833 = vld [vmem:[%s204 + $0x1000] sm:$0xff]
        %v834 = vld [vmem:[%s204 + $0x1008] sm:$0xff]
        %v835 = vld [vmem:[%s204 + $0x1010] sm:$0xff]
        %v836 = vld [vmem:[%s204 + $0x1018] sm:$0xff]
        %v837 = vld [vmem:[%s204 + $0x1020] sm:$0xff]
        %v838 = vld [vmem:[%s204 + $0x1028] sm:$0xff]
        %v839 = vld [vmem:[%s204 + $0x1030] sm:$0xff]
        %v840 = vld [vmem:[%s204 + $0x1038] sm:$0xff]
        %v841 = vld [vmem:[%s204 + $0x1040] sm:$0xff]
        %v842 = vld [vmem:[%s204 + $0x1048] sm:$0xff]
        %v843 = vld [vmem:[%s204 + $0x1050] sm:$0xff]
        %v844 = vld [vmem:[%s204 + $0x1058] sm:$0xff]
        %v845 = vld [vmem:[%s204 + $0x1060] sm:$0xff]
        %v846 = vld [vmem:[%s204 + $0x1068] sm:$0xff]
        %v847 = vld [vmem:[%s204 + $0x1070] sm:$0xff]
        %v848 = vld [vmem:[%s204 + $0x1078] sm:$0xff]
        %v849 = vld [vmem:[%s204 + $0x1080] sm:$0xff]
        %v850 = vld [vmem:[%s204 + $0x1088] sm:$0xff]
        %v851 = vld [vmem:[%s204 + $0x1090] sm:$0xff]
        %v852 = vld [vmem:[%s204 + $0x1098] sm:$0xff]
        %v853 = vld [vmem:[%s204 + $0x10a0] sm:$0xff]
        %v854 = vld [vmem:[%s204 + $0x10a8] sm:$0xff]
        %v855 = vld [vmem:[%s204 + $0x10b0] sm:$0xff]
        %v856 = vld [vmem:[%s204 + $0x10b8] sm:$0xff]
        %v857 = vld [vmem:[%s204 + $0x10c0] sm:$0xff]
        %v858 = vld [vmem:[%s204 + $0x10c8] sm:$0xff]
        %v859 = vld [vmem:[%s204 + $0x10d0] sm:$0xff]
        %v860 = vld [vmem:[%s204 + $0x10d8] sm:$0xff]
        %v861 = vld [vmem:[%s204 + $0x10e0] sm:$0xff]
        %v862 = vld [vmem:[%s204 + $0x10e8] sm:$0xff]
        %v863 = vld [vmem:[%s204 + $0x10f0] sm:$0xff]
        %v864 = vld [vmem:[%s204 + $0x10f8] sm:$0xff]
        %v865 = vld [vmem:[%s204 + $0x1100] sm:$0xff]
        %v866 = vld [vmem:[%s204 + $0x1108] sm:$0xff]
        %v867 = vld [vmem:[%s204 + $0x1110] sm:$0xff]
        %v868 = vld [vmem:[%s204 + $0x1118] sm:$0xff]
        %v869 = vld [vmem:[%s204 + $0x1120] sm:$0xff]
        %v870 = vld [vmem:[%s204 + $0x1128] sm:$0xff]
        %v871 = vld [vmem:[%s204 + $0x1130] sm:$0xff]
        %v872 = vld [vmem:[%s204 + $0x1138] sm:$0xff]
        %v873 = vld [vmem:[%s204 + $0x1140] sm:$0xff]
        %v874 = vld [vmem:[%s204 + $0x1148] sm:$0xff]
        %v875 = vld [vmem:[%s204 + $0x1150] sm:$0xff]
        %v876 = vld [vmem:[%s204 + $0x1158] sm:$0xff]
        %v877 = vld [vmem:[%s204 + $0x1160] sm:$0xff]
        %v878 = vld [vmem:[%s204 + $0x1168] sm:$0xff]
        %v879 = vld [vmem:[%s204 + $0x1170] sm:$0xff]
        %v880 = vld [vmem:[%s204 + $0x1178] sm:$0xff]
        %v881 = vld [vmem:[%s204 + $0x1180] sm:$0xff]
        %v882 = vld [vmem:[%s204 + $0x1188] sm:$0xff]
        %v883 = vld [vmem:[%s204 + $0x1190] sm:$0xff]
        %v884 = vld [vmem:[%s204 + $0x1198] sm:$0xff]
        %v885 = vld [vmem:[%s204 + $0x11a0] sm:$0xff]
        %v886 = vld [vmem:[%s204 + $0x11a8] sm:$0xff]
        %v887 = vld [vmem:[%s204 + $0x11b0] sm:$0xff]
        %v888 = vld [vmem:[%s204 + $0x11b8] sm:$0xff]
        %v889 = vld [vmem:[%s204 + $0x11c0] sm:$0xff]
        %v890 = vld [vmem:[%s204 + $0x11c8] sm:$0xff]
        %v891 = vld [vmem:[%s204 + $0x11d0] sm:$0xff]
        %v892 = vld [vmem:[%s204 + $0x11d8] sm:$0xff]
        %v893 = vld [vmem:[%s204 + $0x11e0] sm:$0xff]
        %v894 = vld [vmem:[%s204 + $0x11e8] sm:$0xff]
        %v895 = vld [vmem:[%s204 + $0x11f0] sm:$0xff]
        %v896 = vld [vmem:[%s204 + $0x11f8] sm:$0xff]
        %v897 = vld [vmem:[%s204 + $0x1200] sm:$0xff]
        %v898 = vld [vmem:[%s204 + $0x1208] sm:$0xff]
        %v899 = vld [vmem:[%s204 + $0x1210] sm:$0xff]
        %v900 = vld [vmem:[%s204 + $0x1218] sm:$0xff]
        %v901 = vld [vmem:[%s204 + $0x1220] sm:$0xff]
        %v902 = vld [vmem:[%s204 + $0x1228] sm:$0xff]
        %v903 = vld [vmem:[%s204 + $0x1230] sm:$0xff]
        %v904 = vld [vmem:[%s204 + $0x1238] sm:$0xff]
        %v905 = vld [vmem:[%s204 + $0x1240] sm:$0xff]
        %v906 = vld [vmem:[%s204 + $0x1248] sm:$0xff]
        %v907 = vld [vmem:[%s204 + $0x1250] sm:$0xff]
        %v908 = vld [vmem:[%s204 + $0x1258] sm:$0xff]
        %v909 = vld [vmem:[%s204 + $0x1260] sm:$0xff]
        %v910 = vld [vmem:[%s204 + $0x1268] sm:$0xff]
        %v911 = vld [vmem:[%s204 + $0x1270] sm:$0xff]
        %v912 = vld [vmem:[%s204 + $0x1278] sm:$0xff]
        %v913 = vld [vmem:[%s204 + $0x1280] sm:$0xff]
        %v914 = vld [vmem:[%s204 + $0x1288] sm:$0xff]
        %v915 = vld [vmem:[%s204 + $0x1290] sm:$0xff]
        %v916 = vld [vmem:[%s204 + $0x1298] sm:$0xff]
        %v917 = vld [vmem:[%s204 + $0x12a0] sm:$0xff]
        %v918 = vld [vmem:[%s204 + $0x12a8] sm:$0xff]
        %v919 = vld [vmem:[%s204 + $0x12b0] sm:$0xff]
        %v920 = vld [vmem:[%s204 + $0x12b8] sm:$0xff]
        %v921 = vld [vmem:[%s204 + $0x12c0] sm:$0xff]
        %v922 = vld [vmem:[%s204 + $0x12c8] sm:$0xff]
        %v923 = vld [vmem:[%s204 + $0x12d0] sm:$0xff]
        %v924 = vld [vmem:[%s204 + $0x12d8] sm:$0xff]
        %v925 = vld [vmem:[%s204 + $0x12e0] sm:$0xff]
        %v926 = vld [vmem:[%s204 + $0x12e8] sm:$0xff]
        %v927 = vld [vmem:[%s204 + $0x12f0] sm:$0xff]
        %v928 = vld [vmem:[%s204 + $0x12f8] sm:$0xff]
        %v929 = vld [vmem:[%s204 + $0x1300] sm:$0xff]
        %v930 = vld [vmem:[%s204 + $0x1308] sm:$0xff]
        %v931 = vld [vmem:[%s204 + $0x1310] sm:$0xff]
        %v932 = vld [vmem:[%s204 + $0x1318] sm:$0xff]
        %v933 = vld [vmem:[%s204 + $0x1320] sm:$0xff]
        %v934 = vld [vmem:[%s204 + $0x1328] sm:$0xff]
        %v935 = vld [vmem:[%s204 + $0x1330] sm:$0xff]
        %v936 = vld [vmem:[%s204 + $0x1338] sm:$0xff]
        %v937 = vld [vmem:[%s204 + $0x1340] sm:$0xff]
        %v938 = vld [vmem:[%s204 + $0x1348] sm:$0xff]
        %v939 = vld [vmem:[%s204 + $0x1350] sm:$0xff]
        %v940 = vld [vmem:[%s204 + $0x1358] sm:$0xff]
        %v941 = vld [vmem:[%s204 + $0x1360] sm:$0xff]
        %v942 = vld [vmem:[%s204 + $0x1368] sm:$0xff]
        %v943 = vld [vmem:[%s204 + $0x1370] sm:$0xff]
        %v944 = vld [vmem:[%s204 + $0x1378] sm:$0xff]
        %v945 = vld [vmem:[%s204 + $0x1380] sm:$0xff]
        %v946 = vld [vmem:[%s204 + $0x1388] sm:$0xff]
        %v947 = vld [vmem:[%s204 + $0x1390] sm:$0xff]
        %v948 = vld [vmem:[%s204 + $0x1398] sm:$0xff]
        %v949 = vld [vmem:[%s204 + $0x13a0] sm:$0xff]
        %v950 = vld [vmem:[%s204 + $0x13a8] sm:$0xff]
        %v951 = vld [vmem:[%s204 + $0x13b0] sm:$0xff]
        %v952 = vld [vmem:[%s204 + $0x13b8] sm:$0xff]
        %v953 = vld [vmem:[%s204 + $0x13c0] sm:$0xff]
        %v954 = vld [vmem:[%s204 + $0x13c8] sm:$0xff]
        %v955 = vld [vmem:[%s204 + $0x13d0] sm:$0xff]
        %v956 = vld [vmem:[%s204 + $0x13d8] sm:$0xff]
        %v957 = vld [vmem:[%s204 + $0x13e0] sm:$0xff]
        %v958 = vld [vmem:[%s204 + $0x13e8] sm:$0xff]
        %v959 = vld [vmem:[%s204 + $0x13f0] sm:$0xff]
        %v960 = vld [vmem:[%s204 + $0x13f8] sm:$0xff]
        %v961 = vld [vmem:[%s204 + $0x1400] sm:$0xff]
        %v962 = vld [vmem:[%s204 + $0x1408] sm:$0xff]
        %v963 = vld [vmem:[%s204 + $0x1410] sm:$0xff]
        %v964 = vld [vmem:[%s204 + $0x1418] sm:$0xff]
        %v965 = vld [vmem:[%s204 + $0x1420] sm:$0xff]
        %v966 = vld [vmem:[%s204 + $0x1428] sm:$0xff]
        %v967 = vld [vmem:[%s204 + $0x1430] sm:$0xff]
        %v968 = vld [vmem:[%s204 + $0x1438] sm:$0xff]
        %v969 = vld [vmem:[%s204 + $0x1440] sm:$0xff]
        %v970 = vld [vmem:[%s204 + $0x1448] sm:$0xff]
        %v971 = vld [vmem:[%s204 + $0x1450] sm:$0xff]
        %v972 = vld [vmem:[%s204 + $0x1458] sm:$0xff]
        %v973 = vld [vmem:[%s204 + $0x1460] sm:$0xff]
        %v974 = vld [vmem:[%s204 + $0x1468] sm:$0xff]
        %v975 = vld [vmem:[%s204 + $0x1470] sm:$0xff]
        %v976 = vld [vmem:[%s204 + $0x1478] sm:$0xff]
        %v977 = vld [vmem:[%s204 + $0x1480] sm:$0xff]
        %v978 = vld [vmem:[%s204 + $0x1488] sm:$0xff]
        %v979 = vld [vmem:[%s204 + $0x1490] sm:$0xff]
        %v980 = vld [vmem:[%s204 + $0x1498] sm:$0xff]
        %v981 = vld [vmem:[%s204 + $0x14a0] sm:$0xff]
        %v982 = vld [vmem:[%s204 + $0x14a8] sm:$0xff]
        %v983 = vld [vmem:[%s204 + $0x14b0] sm:$0xff]
        %v984 = vld [vmem:[%s204 + $0x14b8] sm:$0xff]
        %v985 = vld [vmem:[%s204 + $0x14c0] sm:$0xff]
        %v986 = vld [vmem:[%s204 + $0x14c8] sm:$0xff]
        %v987 = vld [vmem:[%s204 + $0x14d0] sm:$0xff]
        %v988 = vld [vmem:[%s204 + $0x14d8] sm:$0xff]
        %v989 = vld [vmem:[%s204 + $0x14e0] sm:$0xff]
        %v990 = vld [vmem:[%s204 + $0x14e8] sm:$0xff]
        %v991 = vld [vmem:[%s204 + $0x14f0] sm:$0xff]
        %v992 = vld [vmem:[%s204 + $0x14f8] sm:$0xff]
        %v993 = vld [vmem:[%s204 + $0x1500] sm:$0xff]
        %v994 = vld [vmem:[%s204 + $0x1508] sm:$0xff]
        %v995 = vld [vmem:[%s204 + $0x1510] sm:$0xff]
        %v996 = vld [vmem:[%s204 + $0x1518] sm:$0xff]
        %v997 = vld [vmem:[%s204 + $0x1520] sm:$0xff]
        %v998 = vld [vmem:[%s204 + $0x1528] sm:$0xff]
        %v999 = vld [vmem:[%s204 + $0x1530] sm:$0xff]
        %v1000 = vld [vmem:[%s204 + $0x1538] sm:$0xff]
        %v1001 = vld [vmem:[%s204 + $0x1540] sm:$0xff]
        %v1002 = vld [vmem:[%s204 + $0x1548] sm:$0xff]
        %v1003 = vld [vmem:[%s204 + $0x1550] sm:$0xff]
        %v1004 = vld [vmem:[%s204 + $0x1558] sm:$0xff]
        %v1005 = vld [vmem:[%s204 + $0x1560] sm:$0xff]
        %v1006 = vld [vmem:[%s204 + $0x1568] sm:$0xff]
        %v1007 = vld [vmem:[%s204 + $0x1570] sm:$0xff]
        %v1008 = vld [vmem:[%s204 + $0x1578] sm:$0xff]
        %v1009 = vld [vmem:[%s204 + $0x1580] sm:$0xff]
        %v1010 = vld [vmem:[%s204 + $0x1588] sm:$0xff]
        %v1011 = vld [vmem:[%s204 + $0x1590] sm:$0xff]
        %v1012 = vld [vmem:[%s204 + $0x1598] sm:$0xff]
        %v1013 = vld [vmem:[%s204 + $0x15a0] sm:$0xff]
        %v1014 = vld [vmem:[%s204 + $0x15a8] sm:$0xff]
        %v1015 = vld [vmem:[%s204 + $0x15b0] sm:$0xff]
        %v1016 = vld [vmem:[%s204 + $0x15b8] sm:$0xff]
        %v1017 = vld [vmem:[%s204 + $0x15c0] sm:$0xff]
        %v1018 = vld [vmem:[%s204 + $0x15c8] sm:$0xff]
        %v1019 = vld [vmem:[%s204 + $0x15d0] sm:$0xff]
        %v1020 = vld [vmem:[%s204 + $0x15d8] sm:$0xff]
        %v1021 = vld [vmem:[%s204 + $0x15e0] sm:$0xff]
        %v1022 = vld [vmem:[%s204 + $0x15e8] sm:$0xff]
        %v1023 = vld [vmem:[%s204 + $0x15f0] sm:$0xff]
        %v1024 = vld [vmem:[%s204 + $0x15f8] sm:$0xff]
        %v1025 = vld [vmem:[%s204 + $0x1600] sm:$0xff]
        %v1026 = vld [vmem:[%s204 + $0x1608] sm:$0xff]
        %v1027 = vld [vmem:[%s204 + $0x1610] sm:$0xff]
        %v1028 = vld [vmem:[%s204 + $0x1618] sm:$0xff]
        %v1029 = vld [vmem:[%s204 + $0x1620] sm:$0xff]
        %v1030 = vld [vmem:[%s204 + $0x1628] sm:$0xff]
        %v1031 = vld [vmem:[%s204 + $0x1630] sm:$0xff]
        %v1032 = vld [vmem:[%s204 + $0x1638] sm:$0xff]
        %v1033 = vld [vmem:[%s204 + $0x1640] sm:$0xff]
        %v1034 = vld [vmem:[%s204 + $0x1648] sm:$0xff]
        %v1035 = vld [vmem:[%s204 + $0x1650] sm:$0xff]
        %v1036 = vld [vmem:[%s204 + $0x1658] sm:$0xff]
        %v1037 = vld [vmem:[%s204 + $0x1660] sm:$0xff]
        %v1038 = vld [vmem:[%s204 + $0x1668] sm:$0xff]
        %v1039 = vld [vmem:[%s204 + $0x1670] sm:$0xff]
        %v1040 = vld [vmem:[%s204 + $0x1678] sm:$0xff]
        %v1041 = vld [vmem:[%s204 + $0x1680] sm:$0xff]
        %v1042 = vld [vmem:[%s204 + $0x1688] sm:$0xff]
        %v1043 = vld [vmem:[%s204 + $0x1690] sm:$0xff]
        %v1044 = vld [vmem:[%s204 + $0x1698] sm:$0xff]
        %v1045 = vld [vmem:[%s204 + $0x16a0] sm:$0xff]
        %v1046 = vld [vmem:[%s204 + $0x16a8] sm:$0xff]
        %v1047 = vld [vmem:[%s204 + $0x16b0] sm:$0xff]
        %v1048 = vld [vmem:[%s204 + $0x16b8] sm:$0xff]
        %v1049 = vld [vmem:[%s204 + $0x16c0] sm:$0xff]
        %v1050 = vld [vmem:[%s204 + $0x16c8] sm:$0xff]
        %v1051 = vld [vmem:[%s204 + $0x16d0] sm:$0xff]
        %v1052 = vld [vmem:[%s204 + $0x16d8] sm:$0xff]
        %v1053 = vld [vmem:[%s204 + $0x16e0] sm:$0xff]
        %v1054 = vld [vmem:[%s204 + $0x16e8] sm:$0xff]
        %v1055 = vld [vmem:[%s204 + $0x16f0] sm:$0xff]
        %v1056 = vld [vmem:[%s204 + $0x16f8] sm:$0xff]
        %v1057 = vld [vmem:[%s204 + $0x1700] sm:$0xff]
        %v1058 = vld [vmem:[%s204 + $0x1708] sm:$0xff]
        %v1059 = vld [vmem:[%s204 + $0x1710] sm:$0xff]
        %v1060 = vld [vmem:[%s204 + $0x1718] sm:$0xff]
        %v1061 = vld [vmem:[%s204 + $0x1720] sm:$0xff]
        %v1062 = vld [vmem:[%s204 + $0x1728] sm:$0xff]
        %v1063 = vld [vmem:[%s204 + $0x1730] sm:$0xff]
        %v1064 = vld [vmem:[%s204 + $0x1738] sm:$0xff]
        %v1065 = vld [vmem:[%s204 + $0x1740] sm:$0xff]
        %v1066 = vld [vmem:[%s204 + $0x1748] sm:$0xff]
        %v1067 = vld [vmem:[%s204 + $0x1750] sm:$0xff]
        %v1068 = vld [vmem:[%s204 + $0x1758] sm:$0xff]
        %v1069 = vld [vmem:[%s204 + $0x1760] sm:$0xff]
        %v1070 = vld [vmem:[%s204 + $0x1768] sm:$0xff]
        %v1071 = vld [vmem:[%s204 + $0x1770] sm:$0xff]
        %v1072 = vld [vmem:[%s204 + $0x1778] sm:$0xff]
        %v1073 = vld [vmem:[%s204 + $0x1780] sm:$0xff]
        %v1074 = vld [vmem:[%s204 + $0x1788] sm:$0xff]
        %v1075 = vld [vmem:[%s204 + $0x1790] sm:$0xff]
        %v1076 = vld [vmem:[%s204 + $0x1798] sm:$0xff]
        %v1077 = vld [vmem:[%s204 + $0x17a0] sm:$0xff]
        %v1078 = vld [vmem:[%s204 + $0x17a8] sm:$0xff]
        %v1079 = vld [vmem:[%s204 + $0x17b0] sm:$0xff]
        %v1080 = vld [vmem:[%s204 + $0x17b8] sm:$0xff]
        %v1081 = vld [vmem:[%s204 + $0x17c0] sm:$0xff]
        %v1082 = vld [vmem:[%s204 + $0x17c8] sm:$0xff]
        %v1083 = vld [vmem:[%s204 + $0x17d0] sm:$0xff]
        %v1084 = vld [vmem:[%s204 + $0x17d8] sm:$0xff]
        %v1085 = vld [vmem:[%s204 + $0x17e0] sm:$0xff]
        %v1086 = vld [vmem:[%s204 + $0x17e8] sm:$0xff]
        %v1087 = vld [vmem:[%s204 + $0x17f0] sm:$0xff]
        %v1088 = vld [vmem:[%s204 + $0x17f8] sm:$0xff]
        %v1089 = vld [vmem:[%s204 + $0x1800] sm:$0xff]
        %v1090 = vld [vmem:[%s204 + $0x1808] sm:$0xff]
        %v1091 = vld [vmem:[%s204 + $0x1810] sm:$0xff]
        %v1092 = vld [vmem:[%s204 + $0x1818] sm:$0xff]
        %v1093 = vld [vmem:[%s204 + $0x1820] sm:$0xff]
        %v1094 = vld [vmem:[%s204 + $0x1828] sm:$0xff]
        %v1095 = vld [vmem:[%s204 + $0x1830] sm:$0xff]
        %v1096 = vld [vmem:[%s204 + $0x1838] sm:$0xff]
        %v1097 = vld [vmem:[%s204 + $0x1840] sm:$0xff]
        %v1098 = vld [vmem:[%s204 + $0x1848] sm:$0xff]
        %v1099 = vld [vmem:[%s204 + $0x1850] sm:$0xff]
        %v1100 = vld [vmem:[%s204 + $0x1858] sm:$0xff]
        %v1101 = vld [vmem:[%s204 + $0x1860] sm:$0xff]
        %v1102 = vld [vmem:[%s204 + $0x1868] sm:$0xff]
        %v1103 = vld [vmem:[%s204 + $0x1870] sm:$0xff]
        %v1104 = vld [vmem:[%s204 + $0x1878] sm:$0xff]
        %v1105 = vld [vmem:[%s204 + $0x1880] sm:$0xff]
        %v1106 = vld [vmem:[%s204 + $0x1888] sm:$0xff]
        %v1107 = vld [vmem:[%s204 + $0x1890] sm:$0xff]
        %v1108 = vld [vmem:[%s204 + $0x1898] sm:$0xff]
        %v1109 = vld [vmem:[%s204 + $0x18a0] sm:$0xff]
        %v1110 = vld [vmem:[%s204 + $0x18a8] sm:$0xff]
        %v1111 = vld [vmem:[%s204 + $0x18b0] sm:$0xff]
        %v1112 = vld [vmem:[%s204 + $0x18b8] sm:$0xff]
        %v1113 = vld [vmem:[%s204 + $0x18c0] sm:$0xff]
        %v1114 = vld [vmem:[%s204 + $0x18c8] sm:$0xff]
        %v1115 = vld [vmem:[%s204 + $0x18d0] sm:$0xff]
        %v1116 = vld [vmem:[%s204 + $0x18d8] sm:$0xff]
        %v1117 = vld [vmem:[%s204 + $0x18e0] sm:$0xff]
        %v1118 = vld [vmem:[%s204 + $0x18e8] sm:$0xff]
        %v1119 = vld [vmem:[%s204 + $0x18f0] sm:$0xff]
        %v1120 = vld [vmem:[%s204 + $0x18f8] sm:$0xff]
        %v1121 = vld [vmem:[%s204 + $0x1900] sm:$0xff]
        %v1122 = vld [vmem:[%s204 + $0x1908] sm:$0xff]
        %v1123 = vld [vmem:[%s204 + $0x1910] sm:$0xff]
        %v1124 = vld [vmem:[%s204 + $0x1918] sm:$0xff]
        %v1125 = vld [vmem:[%s204 + $0x1920] sm:$0xff]
        %v1126 = vld [vmem:[%s204 + $0x1928] sm:$0xff]
        %v1127 = vld [vmem:[%s204 + $0x1930] sm:$0xff]
        %v1128 = vld [vmem:[%s204 + $0x1938] sm:$0xff]
        %v1129 = vld [vmem:[%s204 + $0x1940] sm:$0xff]
        %v1130 = vld [vmem:[%s204 + $0x1948] sm:$0xff]
        %v1131 = vld [vmem:[%s204 + $0x1950] sm:$0xff]
        %v1132 = vld [vmem:[%s204 + $0x1958] sm:$0xff]
        %v1133 = vld [vmem:[%s204 + $0x1960] sm:$0xff]
        %v1134 = vld [vmem:[%s204 + $0x1968] sm:$0xff]
        %v1135 = vld [vmem:[%s204 + $0x1970] sm:$0xff]
        %v1136 = vld [vmem:[%s204 + $0x1978] sm:$0xff]
        %v1137 = vld [vmem:[%s204 + $0x1980] sm:$0xff]
        %v1138 = vld [vmem:[%s204 + $0x1988] sm:$0xff]
        %v1139 = vld [vmem:[%s204 + $0x1990] sm:$0xff]
        %v1140 = vld [vmem:[%s204 + $0x1998] sm:$0xff]
        %v1141 = vld [vmem:[%s204 + $0x19a0] sm:$0xff]
        %v1142 = vld [vmem:[%s204 + $0x19a8] sm:$0xff]
        %v1143 = vld [vmem:[%s204 + $0x19b0] sm:$0xff]
        %v1144 = vld [vmem:[%s204 + $0x19b8] sm:$0xff]
        %v1145 = vld [vmem:[%s204 + $0x19c0] sm:$0xff]
        %v1146 = vld [vmem:[%s204 + $0x19c8] sm:$0xff]
        %v1147 = vld [vmem:[%s204 + $0x19d0] sm:$0xff]
        %v1148 = vld [vmem:[%s204 + $0x19d8] sm:$0xff]
        %v1149 = vld [vmem:[%s204 + $0x19e0] sm:$0xff]
        %v1150 = vld [vmem:[%s204 + $0x19e8] sm:$0xff]
        %v1151 = vld [vmem:[%s204 + $0x19f0] sm:$0xff]
        %v1152 = vld [vmem:[%s204 + $0x19f8] sm:$0xff]
        %v1153 = vld [vmem:[%s204 + $0x1a00] sm:$0xff]
        %v1154 = vld [vmem:[%s204 + $0x1a08] sm:$0xff]
        %v1155 = vld [vmem:[%s204 + $0x1a10] sm:$0xff]
        %v1156 = vld [vmem:[%s204 + $0x1a18] sm:$0xff]
        %v1157 = vld [vmem:[%s204 + $0x1a20] sm:$0xff]
        %v1158 = vld [vmem:[%s204 + $0x1a28] sm:$0xff]
        %v1159 = vld [vmem:[%s204 + $0x1a30] sm:$0xff]
        %v1160 = vld [vmem:[%s204 + $0x1a38] sm:$0xff]
        %v1161 = vld [vmem:[%s204 + $0x1a40] sm:$0xff]
        %v1162 = vld [vmem:[%s204 + $0x1a48] sm:$0xff]
        %v1163 = vld [vmem:[%s204 + $0x1a50] sm:$0xff]
        %v1164 = vld [vmem:[%s204 + $0x1a58] sm:$0xff]
        %v1165 = vld [vmem:[%s204 + $0x1a60] sm:$0xff]
        %v1166 = vld [vmem:[%s204 + $0x1a68] sm:$0xff]
        %v1167 = vld [vmem:[%s204 + $0x1a70] sm:$0xff]
        %v1168 = vld [vmem:[%s204 + $0x1a78] sm:$0xff]
        %v1169 = vld [vmem:[%s204 + $0x1a80] sm:$0xff]
        %v1170 = vld [vmem:[%s204 + $0x1a88] sm:$0xff]
        %v1171 = vld [vmem:[%s204 + $0x1a90] sm:$0xff]
        %v1172 = vld [vmem:[%s204 + $0x1a98] sm:$0xff]
        %v1173 = vld [vmem:[%s204 + $0x1aa0] sm:$0xff]
        %v1174 = vld [vmem:[%s204 + $0x1aa8] sm:$0xff]
        %v1175 = vld [vmem:[%s204 + $0x1ab0] sm:$0xff]
        %v1176 = vld [vmem:[%s204 + $0x1ab8] sm:$0xff]
        %v1177 = vld [vmem:[%s204 + $0x1ac0] sm:$0xff]
        %v1178 = vld [vmem:[%s204 + $0x1ac8] sm:$0xff]
        %v1179 = vld [vmem:[%s204 + $0x1ad0] sm:$0xff]
        %v1180 = vld [vmem:[%s204 + $0x1ad8] sm:$0xff]
        %v1181 = vld [vmem:[%s204 + $0x1ae0] sm:$0xff]
        %v1182 = vld [vmem:[%s204 + $0x1ae8] sm:$0xff]
        %v1183 = vld [vmem:[%s204 + $0x1af0] sm:$0xff]
        %v1184 = vld [vmem:[%s204 + $0x1af8] sm:$0xff]
        %v1185 = vld [vmem:[%s204 + $0x1b00] sm:$0xff]
        %v1186 = vld [vmem:[%s204 + $0x1b08] sm:$0xff]
        %v1187 = vld [vmem:[%s204 + $0x1b10] sm:$0xff]
        %v1188 = vld [vmem:[%s204 + $0x1b18] sm:$0xff]
        %v1189 = vld [vmem:[%s204 + $0x1b20] sm:$0xff]
        %v1190 = vld [vmem:[%s204 + $0x1b28] sm:$0xff]
        %v1191 = vld [vmem:[%s204 + $0x1b30] sm:$0xff]
        %v1192 = vld [vmem:[%s204 + $0x1b38] sm:$0xff]
        %v1193 = vld [vmem:[%s204 + $0x1b40] sm:$0xff]
        %v1194 = vld [vmem:[%s204 + $0x1b48] sm:$0xff]
        %v1195 = vld [vmem:[%s204 + $0x1b50] sm:$0xff]
        %v1196 = vld [vmem:[%s204 + $0x1b58] sm:$0xff]
        %v1197 = vld [vmem:[%s204 + $0x1b60] sm:$0xff]
        %v1198 = vld [vmem:[%s204 + $0x1b68] sm:$0xff]
        %v1199 = vld [vmem:[%s204 + $0x1b70] sm:$0xff]
        %v1200 = vld [vmem:[%s204 + $0x1b78] sm:$0xff]
        %v1201 = vld [vmem:[%s204 + $0x1b80] sm:$0xff]
        %v1202 = vld [vmem:[%s204 + $0x1b88] sm:$0xff]
        %v1203 = vld [vmem:[%s204 + $0x1b90] sm:$0xff]
        %v1204 = vld [vmem:[%s204 + $0x1b98] sm:$0xff]
        %v1205 = vld [vmem:[%s204 + $0x1ba0] sm:$0xff]
        %v1206 = vld [vmem:[%s204 + $0x1ba8] sm:$0xff]
        %v1207 = vld [vmem:[%s204 + $0x1bb0] sm:$0xff]
        %v1208 = vld [vmem:[%s204 + $0x1bb8] sm:$0xff]
        %v1209 = vld [vmem:[%s204 + $0x1bc0] sm:$0xff]
        %v1210 = vld [vmem:[%s204 + $0x1bc8] sm:$0xff]
        %v1211 = vld [vmem:[%s204 + $0x1bd0] sm:$0xff]
        %v1212 = vld [vmem:[%s204 + $0x1bd8] sm:$0xff]
        %v1213 = vld [vmem:[%s204 + $0x1be0] sm:$0xff]
        %v1214 = vld [vmem:[%s204 + $0x1be8] sm:$0xff]
        %v1215 = vld [vmem:[%s204 + $0x1bf0] sm:$0xff]
        %v1216 = vld [vmem:[%s204 + $0x1bf8] sm:$0xff]
        %v1217 = vld [vmem:[%s204 + $0x1c00] sm:$0xff]
        %v1218 = vld [vmem:[%s204 + $0x1c08] sm:$0xff]
        %v1219 = vld [vmem:[%s204 + $0x1c10] sm:$0xff]
        %v1220 = vld [vmem:[%s204 + $0x1c18] sm:$0xff]
        %v1221 = vld [vmem:[%s204 + $0x1c20] sm:$0xff]
        %v1222 = vld [vmem:[%s204 + $0x1c28] sm:$0xff]
        %v1223 = vld [vmem:[%s204 + $0x1c30] sm:$0xff]
        %v1224 = vld [vmem:[%s204 + $0x1c38] sm:$0xff]
        %v1225 = vld [vmem:[%s204 + $0x1c40] sm:$0xff]
        %v1226 = vld [vmem:[%s204 + $0x1c48] sm:$0xff]
        %v1227 = vld [vmem:[%s204 + $0x1c50] sm:$0xff]
        %v1228 = vld [vmem:[%s204 + $0x1c58] sm:$0xff]
        %v1229 = vld [vmem:[%s204 + $0x1c60] sm:$0xff]
        %v1230 = vld [vmem:[%s204 + $0x1c68] sm:$0xff]
        %v1231 = vld [vmem:[%s204 + $0x1c70] sm:$0xff]
        %v1232 = vld [vmem:[%s204 + $0x1c78] sm:$0xff]
        %v1233 = vld [vmem:[%s204 + $0x1c80] sm:$0xff]
        %v1234 = vld [vmem:[%s204 + $0x1c88] sm:$0xff]
        %v1235 = vld [vmem:[%s204 + $0x1c90] sm:$0xff]
        %v1236 = vld [vmem:[%s204 + $0x1c98] sm:$0xff]
        %v1237 = vld [vmem:[%s204 + $0x1ca0] sm:$0xff]
        %v1238 = vld [vmem:[%s204 + $0x1ca8] sm:$0xff]
        %v1239 = vld [vmem:[%s204 + $0x1cb0] sm:$0xff]
        %v1240 = vld [vmem:[%s204 + $0x1cb8] sm:$0xff]
        %v1241 = vld [vmem:[%s204 + $0x1cc0] sm:$0xff]
        %v1242 = vld [vmem:[%s204 + $0x1cc8] sm:$0xff]
        %v1243 = vld [vmem:[%s204 + $0x1cd0] sm:$0xff]
        %v1244 = vld [vmem:[%s204 + $0x1cd8] sm:$0xff]
        %v1245 = vld [vmem:[%s204 + $0x1ce0] sm:$0xff]
        %v1246 = vld [vmem:[%s204 + $0x1ce8] sm:$0xff]
        %v1247 = vld [vmem:[%s204 + $0x1cf0] sm:$0xff]
        %v1248 = vld [vmem:[%s204 + $0x1cf8] sm:$0xff]
        %v1249 = vld [vmem:[%s204 + $0x1d00] sm:$0xff]
        %v1250 = vld [vmem:[%s204 + $0x1d08] sm:$0xff]
        %v1251 = vld [vmem:[%s204 + $0x1d10] sm:$0xff]
        %v1252 = vld [vmem:[%s204 + $0x1d18] sm:$0xff]
        %v1253 = vld [vmem:[%s204 + $0x1d20] sm:$0xff]
        %v1254 = vld [vmem:[%s204 + $0x1d28] sm:$0xff]
        %v1255 = vld [vmem:[%s204 + $0x1d30] sm:$0xff]
        %v1256 = vld [vmem:[%s204 + $0x1d38] sm:$0xff]
        %v1257 = vld [vmem:[%s204 + $0x1d40] sm:$0xff]
        %v1258 = vld [vmem:[%s204 + $0x1d48] sm:$0xff]
        %v1259 = vld [vmem:[%s204 + $0x1d50] sm:$0xff]
        %v1260 = vld [vmem:[%s204 + $0x1d58] sm:$0xff]
        %v1261 = vld [vmem:[%s204 + $0x1d60] sm:$0xff]
        %v1262 = vld [vmem:[%s204 + $0x1d68] sm:$0xff]
        %v1263 = vld [vmem:[%s204 + $0x1d70] sm:$0xff]
        %v1264 = vld [vmem:[%s204 + $0x1d78] sm:$0xff]
        %v1265 = vld [vmem:[%s204 + $0x1d80] sm:$0xff]
        %v1266 = vld [vmem:[%s204 + $0x1d88] sm:$0xff]
        %v1267 = vld [vmem:[%s204 + $0x1d90] sm:$0xff]
        %v1268 = vld [vmem:[%s204 + $0x1d98] sm:$0xff]
        %v1269 = vld [vmem:[%s204 + $0x1da0] sm:$0xff]
        %v1270 = vld [vmem:[%s204 + $0x1da8] sm:$0xff]
        %v1271 = vld [vmem:[%s204 + $0x1db0] sm:$0xff]
        %v1272 = vld [vmem:[%s204 + $0x1db8] sm:$0xff]
        %v1273 = vld [vmem:[%s204 + $0x1dc0] sm:$0xff]
        %v1274 = vld [vmem:[%s204 + $0x1dc8] sm:$0xff]
        %v1275 = vld [vmem:[%s204 + $0x1dd0] sm:$0xff]
        %v1276 = vld [vmem:[%s204 + $0x1dd8] sm:$0xff]
        %v1277 = vld [vmem:[%s204 + $0x1de0] sm:$0xff]
        %v1278 = vld [vmem:[%s204 + $0x1de8] sm:$0xff]
        %v1279 = vld [vmem:[%s204 + $0x1df0] sm:$0xff]
        %v1280 = vld [vmem:[%s204 + $0x1df8] sm:$0xff]
        %v1281 = vld [vmem:[%s204 + $0x1e00] sm:$0xff]
        %v1282 = vld [vmem:[%s204 + $0x1e08] sm:$0xff]
        %v1283 = vld [vmem:[%s204 + $0x1e10] sm:$0xff]
        %v1284 = vld [vmem:[%s204 + $0x1e18] sm:$0xff]
        %v1285 = vld [vmem:[%s204 + $0x1e20] sm:$0xff]
        %v1286 = vld [vmem:[%s204 + $0x1e28] sm:$0xff]
        %v1287 = vld [vmem:[%s204 + $0x1e30] sm:$0xff]
        %v1288 = vld [vmem:[%s204 + $0x1e38] sm:$0xff]
        %v1289 = vld [vmem:[%s204 + $0x1e40] sm:$0xff]
        %v1290 = vld [vmem:[%s204 + $0x1e48] sm:$0xff]
        %v1291 = vld [vmem:[%s204 + $0x1e50] sm:$0xff]
        %v1292 = vld [vmem:[%s204 + $0x1e58] sm:$0xff]
        %v1293 = vld [vmem:[%s204 + $0x1e60] sm:$0xff]
        %v1294 = vld [vmem:[%s204 + $0x1e68] sm:$0xff]
        %v1295 = vld [vmem:[%s204 + $0x1e70] sm:$0xff]
        %v1296 = vld [vmem:[%s204 + $0x1e78] sm:$0xff]
        %v1297 = vld [vmem:[%s204 + $0x1e80] sm:$0xff]
        %v1298 = vld [vmem:[%s204 + $0x1e88] sm:$0xff]
        %v1299 = vld [vmem:[%s204 + $0x1e90] sm:$0xff]
        %v1300 = vld [vmem:[%s204 + $0x1e98] sm:$0xff]
        %v1301 = vld [vmem:[%s204 + $0x1ea0] sm:$0xff]
        %v1302 = vld [vmem:[%s204 + $0x1ea8] sm:$0xff]
        %v1303 = vld [vmem:[%s204 + $0x1eb0] sm:$0xff]
        %v1304 = vld [vmem:[%s204 + $0x1eb8] sm:$0xff]
        %v1305 = vld [vmem:[%s204 + $0x1ec0] sm:$0xff]
        %v1306 = vld [vmem:[%s204 + $0x1ec8] sm:$0xff]
        %v1307 = vld [vmem:[%s204 + $0x1ed0] sm:$0xff]
        %v1308 = vld [vmem:[%s204 + $0x1ed8] sm:$0xff]
        %v1309 = vld [vmem:[%s204 + $0x1ee0] sm:$0xff]
        %v1310 = vld [vmem:[%s204 + $0x1ee8] sm:$0xff]
        %v1311 = vld [vmem:[%s204 + $0x1ef0] sm:$0xff]
        %v1312 = vld [vmem:[%s204 + $0x1ef8] sm:$0xff]
        %v1313 = vld [vmem:[%s204 + $0x1f00] sm:$0xff]
        %v1314 = vld [vmem:[%s204 + $0x1f08] sm:$0xff]
        %v1315 = vld [vmem:[%s204 + $0x1f10] sm:$0xff]
        %v1316 = vld [vmem:[%s204 + $0x1f18] sm:$0xff]
        %v1317 = vld [vmem:[%s204 + $0x1f20] sm:$0xff]
        %v1318 = vld [vmem:[%s204 + $0x1f28] sm:$0xff]
        %v1319 = vld [vmem:[%s204 + $0x1f30] sm:$0xff]
        %v1320 = vld [vmem:[%s204 + $0x1f38] sm:$0xff]
        %v1321 = vld [vmem:[%s204 + $0x1f40] sm:$0xff]
        %v1322 = vld [vmem:[%s204 + $0x1f48] sm:$0xff]
        %v1323 = vld [vmem:[%s204 + $0x1f50] sm:$0xff]
        %v1324 = vld [vmem:[%s204 + $0x1f58] sm:$0xff]
        %v1325 = vld [vmem:[%s204 + $0x1f60] sm:$0xff]
        %v1326 = vld [vmem:[%s204 + $0x1f68] sm:$0xff]
        %v1327 = vld [vmem:[%s204 + $0x1f70] sm:$0xff]
        %v1328 = vld [vmem:[%s204 + $0x1f78] sm:$0xff]
        %v1329 = vld [vmem:[%s204 + $0x1f80] sm:$0xff]
        %v1330 = vld [vmem:[%s204 + $0x1f88] sm:$0xff]
        %v1331 = vld [vmem:[%s204 + $0x1f90] sm:$0xff]
        %v1332 = vld [vmem:[%s204 + $0x1f98] sm:$0xff]
        %v1333 = vld [vmem:[%s204 + $0x1fa0] sm:$0xff]
        %v1334 = vld [vmem:[%s204 + $0x1fa8] sm:$0xff]
        %v1335 = vld [vmem:[%s204 + $0x1fb0] sm:$0xff]
        %v1336 = vld [vmem:[%s204 + $0x1fb8] sm:$0xff]
        %v1337 = vld [vmem:[%s204 + $0x1fc0] sm:$0xff]
        %v1338 = vld [vmem:[%s204 + $0x1fc8] sm:$0xff]
        %v1339 = vld [vmem:[%s204 + $0x1fd0] sm:$0xff]
        %v1340 = vld [vmem:[%s204 + $0x1fd8] sm:$0xff]
        %v1341 = vld [vmem:[%s204 + $0x1fe0] sm:$0xff]
        %v1342 = vld [vmem:[%s204 + $0x1fe8] sm:$0xff]
        %v1343 = vld [vmem:[%s204 + $0x1ff0] sm:$0xff]
        %v1344 = vld [vmem:[%s204 + $0x1ff8] sm:$0xff]
        %v1345 = vld [vmem:[%s204 + $0x2000] sm:$0xff]
        %v1346 = vld [vmem:[%s204 + $0x2008] sm:$0xff]
        %v1347 = vld [vmem:[%s204 + $0x2010] sm:$0xff]
        %v1348 = vld [vmem:[%s204 + $0x2018] sm:$0xff]
        %v1349 = vld [vmem:[%s204 + $0x2020] sm:$0xff]
        %v1350 = vld [vmem:[%s204 + $0x2028] sm:$0xff]
        %v1351 = vld [vmem:[%s204 + $0x2030] sm:$0xff]
        %v1352 = vld [vmem:[%s204 + $0x2038] sm:$0xff]
        %v1353 = vld [vmem:[%s204 + $0x2040] sm:$0xff]
        %v1354 = vld [vmem:[%s204 + $0x2048] sm:$0xff]
        %v1355 = vld [vmem:[%s204 + $0x2050] sm:$0xff]
        %v1356 = vld [vmem:[%s204 + $0x2058] sm:$0xff]
        %v1357 = vld [vmem:[%s204 + $0x2060] sm:$0xff]
        %v1358 = vld [vmem:[%s204 + $0x2068] sm:$0xff]
        %v1359 = vld [vmem:[%s204 + $0x2070] sm:$0xff]
        %v1360 = vld [vmem:[%s204 + $0x2078] sm:$0xff]
        %v1361 = vld [vmem:[%s204 + $0x2080] sm:$0xff]
        %v1362 = vld [vmem:[%s204 + $0x2088] sm:$0xff]
        %v1363 = vld [vmem:[%s204 + $0x2090] sm:$0xff]
        %v1364 = vld [vmem:[%s204 + $0x2098] sm:$0xff]
        %v1365 = vld [vmem:[%s204 + $0x20a0] sm:$0xff]
        %v1366 = vld [vmem:[%s204 + $0x20a8] sm:$0xff]
        %v1367 = vld [vmem:[%s204 + $0x20b0] sm:$0xff]
        %v1368 = vld [vmem:[%s204 + $0x20b8] sm:$0xff]
        %v1369 = vld [vmem:[%s204 + $0x20c0] sm:$0xff]
        %v1370 = vld [vmem:[%s204 + $0x20c8] sm:$0xff]
        %v1371 = vld [vmem:[%s204 + $0x20d0] sm:$0xff]
        %v1372 = vld [vmem:[%s204 + $0x20d8] sm:$0xff]
        %v1373 = vld [vmem:[%s204 + $0x20e0] sm:$0xff]
        %v1374 = vld [vmem:[%s204 + $0x20e8] sm:$0xff]
        %v1375 = vld [vmem:[%s204 + $0x20f0] sm:$0xff]
        %v1376 = vld [vmem:[%s204 + $0x20f8] sm:$0xff]
        %v1377 = vld [vmem:[%s204 + $0x2100] sm:$0xff]
        %v1378 = vld [vmem:[%s204 + $0x2108] sm:$0xff]
        %v1379 = vld [vmem:[%s204 + $0x2110] sm:$0xff]
        %v1380 = vld [vmem:[%s204 + $0x2118] sm:$0xff]
        %v1381 = vld [vmem:[%s204 + $0x2120] sm:$0xff]
        %v1382 = vld [vmem:[%s204 + $0x2128] sm:$0xff]
        %v1383 = vld [vmem:[%s204 + $0x2130] sm:$0xff]
        %v1384 = vld [vmem:[%s204 + $0x2138] sm:$0xff]
        %v1385 = vld [vmem:[%s204 + $0x2140] sm:$0xff]
        %v1386 = vld [vmem:[%s204 + $0x2148] sm:$0xff]
        %v1387 = vld [vmem:[%s204 + $0x2150] sm:$0xff]
        %v1388 = vld [vmem:[%s204 + $0x2158] sm:$0xff]
        %v1389 = vld [vmem:[%s204 + $0x2160] sm:$0xff]
        %v1390 = vld [vmem:[%s204 + $0x2168] sm:$0xff]
        %v1391 = vld [vmem:[%s204 + $0x2170] sm:$0xff]
        %v1392 = vld [vmem:[%s204 + $0x2178] sm:$0xff]
        %v1393 = vld [vmem:[%s204 + $0x2180] sm:$0xff]
        %v1394 = vld [vmem:[%s204 + $0x2188] sm:$0xff]
        %v1395 = vld [vmem:[%s204 + $0x2190] sm:$0xff]
        %v1396 = vld [vmem:[%s204 + $0x2198] sm:$0xff]
        %v1397 = vld [vmem:[%s204 + $0x21a0] sm:$0xff]
        %v1398 = vld [vmem:[%s204 + $0x21a8] sm:$0xff]
        %v1399 = vld [vmem:[%s204 + $0x21b0] sm:$0xff]
        %v1400 = vld [vmem:[%s204 + $0x21b8] sm:$0xff]
        %v1401 = vld [vmem:[%s204 + $0x21c0] sm:$0xff]
        %v1402 = vld [vmem:[%s204 + $0x21c8] sm:$0xff]
        %v1403 = vld [vmem:[%s204 + $0x21d0] sm:$0xff]
        %v1404 = vld [vmem:[%s204 + $0x21d8] sm:$0xff]
        %v1405 = vld [vmem:[%s204 + $0x21e0] sm:$0xff]
        %v1406 = vld [vmem:[%s204 + $0x21e8] sm:$0xff]
        %v1407 = vld [vmem:[%s204 + $0x21f0] sm:$0xff]
        %v1408 = vld [vmem:[%s204 + $0x21f8] sm:$0xff]
        %v1409 = vld [vmem:[%s204 + $0x2200] sm:$0xff]
        %v1410 = vld [vmem:[%s204 + $0x2208] sm:$0xff]
        %v1411 = vld [vmem:[%s204 + $0x2210] sm:$0xff]
        %v1412 = vld [vmem:[%s204 + $0x2218] sm:$0xff]
        %v1413 = vld [vmem:[%s204 + $0x2220] sm:$0xff]
        %v1414 = vld [vmem:[%s204 + $0x2228] sm:$0xff]
        %v1415 = vld [vmem:[%s204 + $0x2230] sm:$0xff]
        %v1416 = vld [vmem:[%s204 + $0x2238] sm:$0xff]
        %v1417 = vld [vmem:[%s204 + $0x2240] sm:$0xff]
        %v1418 = vld [vmem:[%s204 + $0x2248] sm:$0xff]
        %v1419 = vld [vmem:[%s204 + $0x2250] sm:$0xff]
        %v1420 = vld [vmem:[%s204 + $0x2258] sm:$0xff]
        %v1421 = vld [vmem:[%s204 + $0x2260] sm:$0xff]
        %v1422 = vld [vmem:[%s204 + $0x2268] sm:$0xff]
        %v1423 = vld [vmem:[%s204 + $0x2270] sm:$0xff]
        %v1424 = vld [vmem:[%s204 + $0x2278] sm:$0xff]
        %v1425 = vld [vmem:[%s204 + $0x2280] sm:$0xff]
        %v1426 = vld [vmem:[%s204 + $0x2288] sm:$0xff]
        %v1427 = vld [vmem:[%s204 + $0x2290] sm:$0xff]
        %v1428 = vld [vmem:[%s204 + $0x2298] sm:$0xff]
        %v1429 = vld [vmem:[%s204 + $0x22a0] sm:$0xff]
        %v1430 = vld [vmem:[%s204 + $0x22a8] sm:$0xff]
        %v1431 = vld [vmem:[%s204 + $0x22b0] sm:$0xff]
        %v1432 = vld [vmem:[%s204 + $0x22b8] sm:$0xff]
        %v1433 = vld [vmem:[%s204 + $0x22c0] sm:$0xff]
        %v1434 = vld [vmem:[%s204 + $0x22c8] sm:$0xff]
        %v1435 = vld [vmem:[%s204 + $0x22d0] sm:$0xff]
        %v1436 = vld [vmem:[%s204 + $0x22d8] sm:$0xff]
        %v1437 = vld [vmem:[%s204 + $0x22e0] sm:$0xff]
        %v1438 = vld [vmem:[%s204 + $0x22e8] sm:$0xff]
        %v1439 = vld [vmem:[%s204 + $0x22f0] sm:$0xff]
        %v1440 = vld [vmem:[%s204 + $0x22f8] sm:$0xff]
        %v1441 = vld [vmem:[%s204 + $0x2300] sm:$0xff]
        %v1442 = vld [vmem:[%s204 + $0x2308] sm:$0xff]
        %v1443 = vld [vmem:[%s204 + $0x2310] sm:$0xff]
        %v1444 = vld [vmem:[%s204 + $0x2318] sm:$0xff]
        %v1445 = vld [vmem:[%s204 + $0x2320] sm:$0xff]
        %v1446 = vld [vmem:[%s204 + $0x2328] sm:$0xff]
        %v1447 = vld [vmem:[%s204 + $0x2330] sm:$0xff]
        %v1448 = vld [vmem:[%s204 + $0x2338] sm:$0xff]
        %v1449 = vld [vmem:[%s204 + $0x2340] sm:$0xff]
        %v1450 = vld [vmem:[%s204 + $0x2348] sm:$0xff]
        %v1451 = vld [vmem:[%s204 + $0x2350] sm:$0xff]
        %v1452 = vld [vmem:[%s204 + $0x2358] sm:$0xff]
        %v1453 = vld [vmem:[%s204 + $0x2360] sm:$0xff]
        %v1454 = vld [vmem:[%s204 + $0x2368] sm:$0xff]
        %v1455 = vld [vmem:[%s204 + $0x2370] sm:$0xff]
        %v1456 = vld [vmem:[%s204 + $0x2378] sm:$0xff]
        %v1457 = vld [vmem:[%s204 + $0x2380] sm:$0xff]
        %v1458 = vld [vmem:[%s204 + $0x2388] sm:$0xff]
        %v1459 = vld [vmem:[%s204 + $0x2390] sm:$0xff]
        %v1460 = vld [vmem:[%s204 + $0x2398] sm:$0xff]
        %v1461 = vld [vmem:[%s204 + $0x23a0] sm:$0xff]
        %v1462 = vld [vmem:[%s204 + $0x23a8] sm:$0xff]
        %v1463 = vld [vmem:[%s204 + $0x23b0] sm:$0xff]
        %v1464 = vld [vmem:[%s204 + $0x23b8] sm:$0xff]
        %v1465 = vld [vmem:[%s204 + $0x23c0] sm:$0xff]
        %v1466 = vld [vmem:[%s204 + $0x23c8] sm:$0xff]
        %v1467 = vld [vmem:[%s204 + $0x23d0] sm:$0xff]
        %v1468 = vld [vmem:[%s204 + $0x23d8] sm:$0xff]
        %v1469 = vld [vmem:[%s204 + $0x23e0] sm:$0xff]
        %v1470 = vld [vmem:[%s204 + $0x23e8] sm:$0xff]
        %v1471 = vld [vmem:[%s204 + $0x23f0] sm:$0xff]
        %v1472 = vld [vmem:[%s204 + $0x23f8] sm:$0xff]
        %v1473 = vld [vmem:[%s204 + $0x2400] sm:$0xff]
        %v1474 = vld [vmem:[%s204 + $0x2408] sm:$0xff]
        %v1475 = vld [vmem:[%s204 + $0x2410] sm:$0xff]
        %v1476 = vld [vmem:[%s204 + $0x2418] sm:$0xff]
        %v1477 = vld [vmem:[%s204 + $0x2420] sm:$0xff]
        %v1478 = vld [vmem:[%s204 + $0x2428] sm:$0xff]
        %v1479 = vld [vmem:[%s204 + $0x2430] sm:$0xff]
        %v1480 = vld [vmem:[%s204 + $0x2438] sm:$0xff]
        %v1481 = vld [vmem:[%s204 + $0x2440] sm:$0xff]
        %v1482 = vld [vmem:[%s204 + $0x2448] sm:$0xff]
        %v1483 = vld [vmem:[%s204 + $0x2450] sm:$0xff]
        %v1484 = vld [vmem:[%s204 + $0x2458] sm:$0xff]
        %v1485 = vld [vmem:[%s204 + $0x2460] sm:$0xff]
        %v1486 = vld [vmem:[%s204 + $0x2468] sm:$0xff]
        %v1487 = vld [vmem:[%s204 + $0x2470] sm:$0xff]
        %v1488 = vld [vmem:[%s204 + $0x2478] sm:$0xff]
        %v1489 = vld [vmem:[%s204 + $0x2480] sm:$0xff]
        %v1490 = vld [vmem:[%s204 + $0x2488] sm:$0xff]
        %v1491 = vld [vmem:[%s204 + $0x2490] sm:$0xff]
        %v1492 = vld [vmem:[%s204 + $0x2498] sm:$0xff]
        %v1493 = vld [vmem:[%s204 + $0x24a0] sm:$0xff]
        %v1494 = vld [vmem:[%s204 + $0x24a8] sm:$0xff]
        %v1495 = vld [vmem:[%s204 + $0x24b0] sm:$0xff]
        %v1496 = vld [vmem:[%s204 + $0x24b8] sm:$0xff]
        %v1497 = vld [vmem:[%s204 + $0x24c0] sm:$0xff]
        %v1498 = vld [vmem:[%s204 + $0x24c8] sm:$0xff]
        %v1499 = vld [vmem:[%s204 + $0x24d0] sm:$0xff]
        %v1500 = vld [vmem:[%s204 + $0x24d8] sm:$0xff]
        %v1501 = vld [vmem:[%s204 + $0x24e0] sm:$0xff]
        %v1502 = vld [vmem:[%s204 + $0x24e8] sm:$0xff]
        %v1503 = vld [vmem:[%s204 + $0x24f0] sm:$0xff]
        %v1504 = vld [vmem:[%s204 + $0x24f8] sm:$0xff]
        %v1505 = vld [vmem:[%s204 + $0x2500] sm:$0xff]
        %v1506 = vld [vmem:[%s204 + $0x2508] sm:$0xff]
        %v1507 = vld [vmem:[%s204 + $0x2510] sm:$0xff]
        %v1508 = vld [vmem:[%s204 + $0x2518] sm:$0xff]
        %v1509 = vld [vmem:[%s204 + $0x2520] sm:$0xff]
        %v1510 = vld [vmem:[%s204 + $0x2528] sm:$0xff]
        %v1511 = vld [vmem:[%s204 + $0x2530] sm:$0xff]
        %v1512 = vld [vmem:[%s204 + $0x2538] sm:$0xff]
        %v1513 = vld [vmem:[%s204 + $0x2540] sm:$0xff]
        %v1514 = vld [vmem:[%s204 + $0x2548] sm:$0xff]
        %v1515 = vld [vmem:[%s204 + $0x2550] sm:$0xff]
        %v1516 = vld [vmem:[%s204 + $0x2558] sm:$0xff]
        %v1517 = vld [vmem:[%s204 + $0x2560] sm:$0xff]
        %v1518 = vld [vmem:[%s204 + $0x2568] sm:$0xff]
        %v1519 = vld [vmem:[%s204 + $0x2570] sm:$0xff]
        %v1520 = vld [vmem:[%s204 + $0x2578] sm:$0xff]
        %v1521 = vld [vmem:[%s204 + $0x2580] sm:$0xff]
        %v1522 = vld [vmem:[%s204 + $0x2588] sm:$0xff]
        %v1523 = vld [vmem:[%s204 + $0x2590] sm:$0xff]
        %v1524 = vld [vmem:[%s204 + $0x2598] sm:$0xff]
        %v1525 = vld [vmem:[%s204 + $0x25a0] sm:$0xff]
        %v1526 = vld [vmem:[%s204 + $0x25a8] sm:$0xff]
        %v1527 = vld [vmem:[%s204 + $0x25b0] sm:$0xff]
        %v1528 = vld [vmem:[%s204 + $0x25b8] sm:$0xff]
        %v1529 = vld [vmem:[%s204 + $0x25c0] sm:$0xff]
        %v1530 = vld [vmem:[%s204 + $0x25c8] sm:$0xff]
        %v1531 = vld [vmem:[%s204 + $0x25d0] sm:$0xff]
        %v1532 = vld [vmem:[%s204 + $0x25d8] sm:$0xff]
        %v1533 = vld [vmem:[%s204 + $0x25e0] sm:$0xff]
        %v1534 = vld [vmem:[%s204 + $0x25e8] sm:$0xff]
        %v1535 = vld [vmem:[%s204 + $0x25f0] sm:$0xff]
        %v1536 = vld [vmem:[%s204 + $0x25f8] sm:$0xff]
        %v1537 = vld [vmem:[%s204 + $0x2600] sm:$0xff]
        %v1538 = vld [vmem:[%s204 + $0x2608] sm:$0xff]
        %v1539 = vld [vmem:[%s204 + $0x2610] sm:$0xff]
        %v1540 = vld [vmem:[%s204 + $0x2618] sm:$0xff]
        %v1541 = vld [vmem:[%s204 + $0x2620] sm:$0xff]
        %v1542 = vld [vmem:[%s204 + $0x2628] sm:$0xff]
        %v1543 = vld [vmem:[%s204 + $0x2630] sm:$0xff]
        %v1544 = vld [vmem:[%s204 + $0x2638] sm:$0xff]
        %v1545 = vld [vmem:[%s204 + $0x2640] sm:$0xff]
        %v1546 = vld [vmem:[%s204 + $0x2648] sm:$0xff]
        %v1547 = vld [vmem:[%s204 + $0x2650] sm:$0xff]
        %v1548 = vld [vmem:[%s204 + $0x2658] sm:$0xff]
        %v1549 = vld [vmem:[%s204 + $0x2660] sm:$0xff]
        %v1550 = vld [vmem:[%s204 + $0x2668] sm:$0xff]
        %v1551 = vld [vmem:[%s204 + $0x2670] sm:$0xff]
        %v1552 = vld [vmem:[%s204 + $0x2678] sm:$0xff]
        %v1553 = vld [vmem:[%s204 + $0x2680] sm:$0xff]
        %v1554 = vld [vmem:[%s204 + $0x2688] sm:$0xff]
        %v1555 = vld [vmem:[%s204 + $0x2690] sm:$0xff]
        %v1556 = vld [vmem:[%s204 + $0x2698] sm:$0xff]
        %v1557 = vld [vmem:[%s204 + $0x26a0] sm:$0xff]
        %v1558 = vld [vmem:[%s204 + $0x26a8] sm:$0xff]
        %v1559 = vld [vmem:[%s204 + $0x26b0] sm:$0xff]
        %v1560 = vld [vmem:[%s204 + $0x26b8] sm:$0xff]
        %v1561 = vld [vmem:[%s204 + $0x26c0] sm:$0xff]
        %v1562 = vld [vmem:[%s204 + $0x26c8] sm:$0xff]
        %v1563 = vld [vmem:[%s204 + $0x26d0] sm:$0xff]
        %v1564 = vld [vmem:[%s204 + $0x26d8] sm:$0xff]
        %v1565 = vld [vmem:[%s204 + $0x26e0] sm:$0xff]
        %v1566 = vld [vmem:[%s204 + $0x26e8] sm:$0xff]
        %v1567 = vld [vmem:[%s204 + $0x26f0] sm:$0xff]
        %v1568 = vld [vmem:[%s204 + $0x26f8] sm:$0xff]
        %v1569 = vld [vmem:[%s204 + $0x2700] sm:$0xff]
        %v1570 = vld [vmem:[%s204 + $0x2708] sm:$0xff]
        %v1571 = vld [vmem:[%s204 + $0x2710] sm:$0xff]
        %v1572 = vld [vmem:[%s204 + $0x2718] sm:$0xff]
        %v1573 = vld [vmem:[%s204 + $0x2720] sm:$0xff]
        %v1574 = vld [vmem:[%s204 + $0x2728] sm:$0xff]
        %v1575 = vld [vmem:[%s204 + $0x2730] sm:$0xff]
        %v1576 = vld [vmem:[%s204 + $0x2738] sm:$0xff]
        %v1577 = vld [vmem:[%s204 + $0x2740] sm:$0xff]
        %v1578 = vld [vmem:[%s204 + $0x2748] sm:$0xff]
        %v1579 = vld [vmem:[%s204 + $0x2750] sm:$0xff]
        %v1580 = vld [vmem:[%s204 + $0x2758] sm:$0xff]
        %v1581 = vld [vmem:[%s204 + $0x2760] sm:$0xff]
        %v1582 = vld [vmem:[%s204 + $0x2768] sm:$0xff]
        %v1583 = vld [vmem:[%s204 + $0x2770] sm:$0xff]
        %v1584 = vld [vmem:[%s204 + $0x2778] sm:$0xff]
        %v1585 = vld [vmem:[%s204 + $0x2780] sm:$0xff]
        %v1586 = vld [vmem:[%s204 + $0x2788] sm:$0xff]
        %v1587 = vld [vmem:[%s204 + $0x2790] sm:$0xff]
        %v1588 = vld [vmem:[%s204 + $0x2798] sm:$0xff]
        %v1589 = vld [vmem:[%s204 + $0x27a0] sm:$0xff]
        %v1590 = vld [vmem:[%s204 + $0x27a8] sm:$0xff]
        %v1591 = vld [vmem:[%s204 + $0x27b0] sm:$0xff]
        %v1592 = vld [vmem:[%s204 + $0x27b8] sm:$0xff]
        %v1593 = vld [vmem:[%s204 + $0x27c0] sm:$0xff]
        %v1594 = vld [vmem:[%s204 + $0x27c8] sm:$0xff]
        %v1595 = vld [vmem:[%s204 + $0x27d0] sm:$0xff]
        %v1596 = vld [vmem:[%s204 + $0x27d8] sm:$0xff]
        %v1597 = vld [vmem:[%s204 + $0x27e0] sm:$0xff]
        %v1598 = vld [vmem:[%s204 + $0x27e8] sm:$0xff]
        %v1599 = vld [vmem:[%s204 + $0x27f0] sm:$0xff]
        %v1600 = vld [vmem:[%s204 + $0x27f8] sm:$0xff]
        %v1601 = vld [vmem:[%s204 + $0x2800] sm:$0xff]
        %v1602 = vld [vmem:[%s204 + $0x2808] sm:$0xff]
        %v1603 = vld [vmem:[%s204 + $0x2810] sm:$0xff]
        %v1604 = vld [vmem:[%s204 + $0x2818] sm:$0xff]
        %v1605 = vld [vmem:[%s204 + $0x2820] sm:$0xff]
        %v1606 = vld [vmem:[%s204 + $0x2828] sm:$0xff]
        %v1607 = vld [vmem:[%s204 + $0x2830] sm:$0xff]
        %v1608 = vld [vmem:[%s204 + $0x2838] sm:$0xff]
        %v1609 = vld [vmem:[%s204 + $0x2840] sm:$0xff]
        %v1610 = vld [vmem:[%s204 + $0x2848] sm:$0xff]
        %v1611 = vld [vmem:[%s204 + $0x2850] sm:$0xff]
        %v1612 = vld [vmem:[%s204 + $0x2858] sm:$0xff]
        %v1613 = vld [vmem:[%s204 + $0x2860] sm:$0xff]
        %v1614 = vld [vmem:[%s204 + $0x2868] sm:$0xff]
        %v1615 = vld [vmem:[%s204 + $0x2870] sm:$0xff]
        %v1616 = vld [vmem:[%s204 + $0x2878] sm:$0xff]
        %v1617 = vld [vmem:[%s204 + $0x2880] sm:$0xff]
        %v1618 = vld [vmem:[%s204 + $0x2888] sm:$0xff]
        %v1619 = vld [vmem:[%s204 + $0x2890] sm:$0xff]
        %v1620 = vld [vmem:[%s204 + $0x2898] sm:$0xff]
        %v1621 = vld [vmem:[%s204 + $0x28a0] sm:$0xff]
        %v1622 = vld [vmem:[%s204 + $0x28a8] sm:$0xff]
        %v1623 = vld [vmem:[%s204 + $0x28b0] sm:$0xff]
        %v1624 = vld [vmem:[%s204 + $0x28b8] sm:$0xff]
        %v1625 = vld [vmem:[%s204 + $0x28c0] sm:$0xff]
        %v1626 = vld [vmem:[%s204 + $0x28c8] sm:$0xff]
        %v1627 = vld [vmem:[%s204 + $0x28d0] sm:$0xff]
        %v1628 = vld [vmem:[%s204 + $0x28d8] sm:$0xff]
        %v1629 = vld [vmem:[%s204 + $0x28e0] sm:$0xff]
        %v1630 = vld [vmem:[%s204 + $0x28e8] sm:$0xff]
        %v1631 = vld [vmem:[%s204 + $0x28f0] sm:$0xff]
        %v1632 = vld [vmem:[%s204 + $0x28f8] sm:$0xff]
        %v1633 = vld [vmem:[%s204 + $0x2900] sm:$0xff]
        %v1634 = vld [vmem:[%s204 + $0x2908] sm:$0xff]
        %v1635 = vld [vmem:[%s204 + $0x2910] sm:$0xff]
        %v1636 = vld [vmem:[%s204 + $0x2918] sm:$0xff]
        %v1637 = vld [vmem:[%s204 + $0x2920] sm:$0xff]
        %v1638 = vld [vmem:[%s204 + $0x2928] sm:$0xff]
        %v1639 = vld [vmem:[%s204 + $0x2930] sm:$0xff]
        %v1640 = vld [vmem:[%s204 + $0x2938] sm:$0xff]
        %v1641 = vld [vmem:[%s204 + $0x2940] sm:$0xff]
        %v1642 = vld [vmem:[%s204 + $0x2948] sm:$0xff]
        %v1643 = vld [vmem:[%s204 + $0x2950] sm:$0xff]
        %v1644 = vld [vmem:[%s204 + $0x2958] sm:$0xff]
        %v1645 = vld [vmem:[%s204 + $0x2960] sm:$0xff]
        %v1646 = vld [vmem:[%s204 + $0x2968] sm:$0xff]
        %v1647 = vld [vmem:[%s204 + $0x2970] sm:$0xff]
        %v1648 = vld [vmem:[%s204 + $0x2978] sm:$0xff]
        %v1649 = vld [vmem:[%s204 + $0x2980] sm:$0xff]
        %v1650 = vld [vmem:[%s204 + $0x2988] sm:$0xff]
        %v1651 = vld [vmem:[%s204 + $0x2990] sm:$0xff]
        %v1652 = vld [vmem:[%s204 + $0x2998] sm:$0xff]
        %v1653 = vld [vmem:[%s204 + $0x29a0] sm:$0xff]
        %v1654 = vld [vmem:[%s204 + $0x29a8] sm:$0xff]
        %v1655 = vld [vmem:[%s204 + $0x29b0] sm:$0xff]
        %v1656 = vld [vmem:[%s204 + $0x29b8] sm:$0xff]
        %v1657 = vld [vmem:[%s204 + $0x29c0] sm:$0xff]
        %v1658 = vld [vmem:[%s204 + $0x29c8] sm:$0xff]
        %v1659 = vld [vmem:[%s204 + $0x29d0] sm:$0xff]
        %v1660 = vld [vmem:[%s204 + $0x29d8] sm:$0xff]
        %v1661 = vld [vmem:[%s204 + $0x29e0] sm:$0xff]
        %v1662 = vld [vmem:[%s204 + $0x29e8] sm:$0xff]
        %v1663 = vld [vmem:[%s204 + $0x29f0] sm:$0xff]
        %v1664 = vld [vmem:[%s204 + $0x29f8] sm:$0xff]
        %v1665 = vld [vmem:[%s204 + $0x2a00] sm:$0xff]
        %v1666 = vld [vmem:[%s204 + $0x2a08] sm:$0xff]
        %v1667 = vld [vmem:[%s204 + $0x2a10] sm:$0xff]
        %v1668 = vld [vmem:[%s204 + $0x2a18] sm:$0xff]
        %v1669 = vld [vmem:[%s204 + $0x2a20] sm:$0xff]
        %v1670 = vld [vmem:[%s204 + $0x2a28] sm:$0xff]
        %v1671 = vld [vmem:[%s204 + $0x2a30] sm:$0xff]
        %v1672 = vld [vmem:[%s204 + $0x2a38] sm:$0xff]
        %v1673 = vld [vmem:[%s204 + $0x2a40] sm:$0xff]
        %v1674 = vld [vmem:[%s204 + $0x2a48] sm:$0xff]
        %v1675 = vld [vmem:[%s204 + $0x2a50] sm:$0xff]
        %v1676 = vld [vmem:[%s204 + $0x2a58] sm:$0xff]
        %v1677 = vld [vmem:[%s204 + $0x2a60] sm:$0xff]
        %v1678 = vld [vmem:[%s204 + $0x2a68] sm:$0xff]
        %v1679 = vld [vmem:[%s204 + $0x2a70] sm:$0xff]
        %v1680 = vld [vmem:[%s204 + $0x2a78] sm:$0xff]
        %v1681 = vld [vmem:[%s204 + $0x2a80] sm:$0xff]
        %v1682 = vld [vmem:[%s204 + $0x2a88] sm:$0xff]
        %v1683 = vld [vmem:[%s204 + $0x2a90] sm:$0xff]
        %v1684 = vld [vmem:[%s204 + $0x2a98] sm:$0xff]
        %v1685 = vld [vmem:[%s204 + $0x2aa0] sm:$0xff]
        %v1686 = vld [vmem:[%s204 + $0x2aa8] sm:$0xff]
        %v1687 = vld [vmem:[%s204 + $0x2ab0] sm:$0xff]
        %v1688 = vld [vmem:[%s204 + $0x2ab8] sm:$0xff]
        %v1689 = vld [vmem:[%s204 + $0x2ac0] sm:$0xff]
        %v1690 = vld [vmem:[%s204 + $0x2ac8] sm:$0xff]
        %v1691 = vld [vmem:[%s204 + $0x2ad0] sm:$0xff]
        %v1692 = vld [vmem:[%s204 + $0x2ad8] sm:$0xff]
        %v1693 = vld [vmem:[%s204 + $0x2ae0] sm:$0xff]
        %v1694 = vld [vmem:[%s204 + $0x2ae8] sm:$0xff]
        %v1695 = vld [vmem:[%s204 + $0x2af0] sm:$0xff]
        %v1696 = vld [vmem:[%s204 + $0x2af8] sm:$0xff]
        %v1697 = vld [vmem:[%s204 + $0x2b00] sm:$0xff]
        %v1698 = vld [vmem:[%s204 + $0x2b08] sm:$0xff]
        %v1699 = vld [vmem:[%s204 + $0x2b10] sm:$0xff]
        %v1700 = vld [vmem:[%s204 + $0x2b18] sm:$0xff]
        %v1701 = vld [vmem:[%s204 + $0x2b20] sm:$0xff]
        %v1702 = vld [vmem:[%s204 + $0x2b28] sm:$0xff]
        %v1703 = vld [vmem:[%s204 + $0x2b30] sm:$0xff]
        %v1704 = vld [vmem:[%s204 + $0x2b38] sm:$0xff]
        %v1705 = vld [vmem:[%s204 + $0x2b40] sm:$0xff]
        %v1706 = vld [vmem:[%s204 + $0x2b48] sm:$0xff]
        %v1707 = vld [vmem:[%s204 + $0x2b50] sm:$0xff]
        %v1708 = vld [vmem:[%s204 + $0x2b58] sm:$0xff]
        %v1709 = vld [vmem:[%s204 + $0x2b60] sm:$0xff]
        %v1710 = vld [vmem:[%s204 + $0x2b68] sm:$0xff]
        %v1711 = vld [vmem:[%s204 + $0x2b70] sm:$0xff]
        %v1712 = vld [vmem:[%s204 + $0x2b78] sm:$0xff]
        %v1713 = vld [vmem:[%s204 + $0x2b80] sm:$0xff]
        %v1714 = vld [vmem:[%s204 + $0x2b88] sm:$0xff]
        %v1715 = vld [vmem:[%s204 + $0x2b90] sm:$0xff]
        %v1716 = vld [vmem:[%s204 + $0x2b98] sm:$0xff]
        %v1717 = vld [vmem:[%s204 + $0x2ba0] sm:$0xff]
        %v1718 = vld [vmem:[%s204 + $0x2ba8] sm:$0xff]
        %v1719 = vld [vmem:[%s204 + $0x2bb0] sm:$0xff]
        %v1720 = vld [vmem:[%s204 + $0x2bb8] sm:$0xff]
        %v1721 = vld [vmem:[%s204 + $0x2bc0] sm:$0xff]
        %v1722 = vld [vmem:[%s204 + $0x2bc8] sm:$0xff]
        %v1723 = vld [vmem:[%s204 + $0x2bd0] sm:$0xff]
        %v1724 = vld [vmem:[%s204 + $0x2bd8] sm:$0xff]
        %v1725 = vld [vmem:[%s204 + $0x2be0] sm:$0xff]
        %v1726 = vld [vmem:[%s204 + $0x2be8] sm:$0xff]
        %v1727 = vld [vmem:[%s204 + $0x2bf0] sm:$0xff]
        %v1728 = vld [vmem:[%s204 + $0x2bf8] sm:$0xff]
        %v1729 = vld [vmem:[%s204 + $0x2c00] sm:$0xff]
        %v1730 = vld [vmem:[%s204 + $0x2c08] sm:$0xff]
        %v1731 = vld [vmem:[%s204 + $0x2c10] sm:$0xff]
        %v1732 = vld [vmem:[%s204 + $0x2c18] sm:$0xff]
        %v1733 = vld [vmem:[%s204 + $0x2c20] sm:$0xff]
        %v1734 = vld [vmem:[%s204 + $0x2c28] sm:$0xff]
        %v1735 = vld [vmem:[%s204 + $0x2c30] sm:$0xff]
        %v1736 = vld [vmem:[%s204 + $0x2c38] sm:$0xff]
        %v1737 = vld [vmem:[%s204 + $0x2c40] sm:$0xff]
        %v1738 = vld [vmem:[%s204 + $0x2c48] sm:$0xff]
        %v1739 = vld [vmem:[%s204 + $0x2c50] sm:$0xff]
        %v1740 = vld [vmem:[%s204 + $0x2c58] sm:$0xff]
        %v1741 = vld [vmem:[%s204 + $0x2c60] sm:$0xff]
        %v1742 = vld [vmem:[%s204 + $0x2c68] sm:$0xff]
        %v1743 = vld [vmem:[%s204 + $0x2c70] sm:$0xff]
        %v1744 = vld [vmem:[%s204 + $0x2c78] sm:$0xff]
        %v1745 = vld [vmem:[%s204 + $0x2c80] sm:$0xff]
        %v1746 = vld [vmem:[%s204 + $0x2c88] sm:$0xff]
        %v1747 = vld [vmem:[%s204 + $0x2c90] sm:$0xff]
        %v1748 = vld [vmem:[%s204 + $0x2c98] sm:$0xff]
        %v1749 = vld [vmem:[%s204 + $0x2ca0] sm:$0xff]
        %v1750 = vld [vmem:[%s204 + $0x2ca8] sm:$0xff]
        %v1751 = vld [vmem:[%s204 + $0x2cb0] sm:$0xff]
        %v1752 = vld [vmem:[%s204 + $0x2cb8] sm:$0xff]
        %v1753 = vld [vmem:[%s204 + $0x2cc0] sm:$0xff]
        %v1754 = vld [vmem:[%s204 + $0x2cc8] sm:$0xff]
        %v1755 = vld [vmem:[%s204 + $0x2cd0] sm:$0xff]
        %v1756 = vld [vmem:[%s204 + $0x2cd8] sm:$0xff]
        %v1757 = vld [vmem:[%s204 + $0x2ce0] sm:$0xff]
        %v1758 = vld [vmem:[%s204 + $0x2ce8] sm:$0xff]
        %v1759 = vld [vmem:[%s204 + $0x2cf0] sm:$0xff]
        %v1760 = vld [vmem:[%s204 + $0x2cf8] sm:$0xff]
        %v1761 = vld [vmem:[%s204 + $0x2d00] sm:$0xff]
        %v1762 = vld [vmem:[%s204 + $0x2d08] sm:$0xff]
        %v1763 = vld [vmem:[%s204 + $0x2d10] sm:$0xff]
        %v1764 = vld [vmem:[%s204 + $0x2d18] sm:$0xff]
        %v1765 = vld [vmem:[%s204 + $0x2d20] sm:$0xff]
        %v1766 = vld [vmem:[%s204 + $0x2d28] sm:$0xff]
        %v1767 = vld [vmem:[%s204 + $0x2d30] sm:$0xff]
        %v1768 = vld [vmem:[%s204 + $0x2d38] sm:$0xff]
        %v1769 = vld [vmem:[%s204 + $0x2d40] sm:$0xff]
        %v1770 = vld [vmem:[%s204 + $0x2d48] sm:$0xff]
        %v1771 = vld [vmem:[%s204 + $0x2d50] sm:$0xff]
        %v1772 = vld [vmem:[%s204 + $0x2d58] sm:$0xff]
        %v1773 = vld [vmem:[%s204 + $0x2d60] sm:$0xff]
        %v1774 = vld [vmem:[%s204 + $0x2d68] sm:$0xff]
        %v1775 = vld [vmem:[%s204 + $0x2d70] sm:$0xff]
        %v1776 = vld [vmem:[%s204 + $0x2d78] sm:$0xff]
        %v1777 = vld [vmem:[%s204 + $0x2d80] sm:$0xff]
        %v1778 = vld [vmem:[%s204 + $0x2d88] sm:$0xff]
        %v1779 = vld [vmem:[%s204 + $0x2d90] sm:$0xff]
        %v1780 = vld [vmem:[%s204 + $0x2d98] sm:$0xff]
        %v1781 = vld [vmem:[%s204 + $0x2da0] sm:$0xff]
        %v1782 = vld [vmem:[%s204 + $0x2da8] sm:$0xff]
        %v1783 = vld [vmem:[%s204 + $0x2db0] sm:$0xff]
        %v1784 = vld [vmem:[%s204 + $0x2db8] sm:$0xff]
        %v1785 = vld [vmem:[%s204 + $0x2dc0] sm:$0xff]
        %v1786 = vld [vmem:[%s204 + $0x2dc8] sm:$0xff]
        %v1787 = vld [vmem:[%s204 + $0x2dd0] sm:$0xff]
        %v1788 = vld [vmem:[%s204 + $0x2dd8] sm:$0xff]
        %v1789 = vld [vmem:[%s204 + $0x2de0] sm:$0xff]
        %v1790 = vld [vmem:[%s204 + $0x2de8] sm:$0xff]
        %v1791 = vld [vmem:[%s204 + $0x2df0] sm:$0xff]
        %v1792 = vld [vmem:[%s204 + $0x2df8] sm:$0xff]
        %v1793 = vld [vmem:[%s204 + $0x2e00] sm:$0xff]
        %v1794 = vld [vmem:[%s204 + $0x2e08] sm:$0xff]
        %v1795 = vld [vmem:[%s204 + $0x2e10] sm:$0xff]
        %v1796 = vld [vmem:[%s204 + $0x2e18] sm:$0xff]
        %v1797 = vld [vmem:[%s204 + $0x2e20] sm:$0xff]
        %v1798 = vld [vmem:[%s204 + $0x2e28] sm:$0xff]
        %v1799 = vld [vmem:[%s204 + $0x2e30] sm:$0xff]
        %v1800 = vld [vmem:[%s204 + $0x2e38] sm:$0xff]
        %v1801 = vld [vmem:[%s204 + $0x2e40] sm:$0xff]
        %v1802 = vld [vmem:[%s204 + $0x2e48] sm:$0xff]
        %v1803 = vld [vmem:[%s204 + $0x2e50] sm:$0xff]
        %v1804 = vld [vmem:[%s204 + $0x2e58] sm:$0xff]
        %v1805 = vld [vmem:[%s204 + $0x2e60] sm:$0xff]
        %v1806 = vld [vmem:[%s204 + $0x2e68] sm:$0xff]
        %v1807 = vld [vmem:[%s204 + $0x2e70] sm:$0xff]
        %v1808 = vld [vmem:[%s204 + $0x2e78] sm:$0xff]
        %v1809 = vld [vmem:[%s204 + $0x2e80] sm:$0xff]
        %v1810 = vld [vmem:[%s204 + $0x2e88] sm:$0xff]
        %v1811 = vld [vmem:[%s204 + $0x2e90] sm:$0xff]
        %v1812 = vld [vmem:[%s204 + $0x2e98] sm:$0xff]
        %v1813 = vld [vmem:[%s204 + $0x2ea0] sm:$0xff]
        %v1814 = vld [vmem:[%s204 + $0x2ea8] sm:$0xff]
        %v1815 = vld [vmem:[%s204 + $0x2eb0] sm:$0xff]
        %v1816 = vld [vmem:[%s204 + $0x2eb8] sm:$0xff]
        %v1817 = vld [vmem:[%s204 + $0x2ec0] sm:$0xff]
        %v1818 = vld [vmem:[%s204 + $0x2ec8] sm:$0xff]
        %v1819 = vld [vmem:[%s204 + $0x2ed0] sm:$0xff]
        %v1820 = vld [vmem:[%s204 + $0x2ed8] sm:$0xff]
        %v1821 = vld [vmem:[%s204 + $0x2ee0] sm:$0xff]
        %v1822 = vld [vmem:[%s204 + $0x2ee8] sm:$0xff]
        %v1823 = vld [vmem:[%s204 + $0x2ef0] sm:$0xff]
        %v1824 = vld [vmem:[%s204 + $0x2ef8] sm:$0xff]
        %v1825 = vld [vmem:[%s204 + $0x2f00] sm:$0xff]
        %v1826 = vld [vmem:[%s204 + $0x2f08] sm:$0xff]
        %v1827 = vld [vmem:[%s204 + $0x2f10] sm:$0xff]
        %v1828 = vld [vmem:[%s204 + $0x2f18] sm:$0xff]
        %v1829 = vld [vmem:[%s204 + $0x2f20] sm:$0xff]
        %v1830 = vld [vmem:[%s204 + $0x2f28] sm:$0xff]
        %v1831 = vld [vmem:[%s204 + $0x2f30] sm:$0xff]
        %v1832 = vld [vmem:[%s204 + $0x2f38] sm:$0xff]
        %v1833 = vld [vmem:[%s204 + $0x2f40] sm:$0xff]
        %v1834 = vld [vmem:[%s204 + $0x2f48] sm:$0xff]
        %v1835 = vld [vmem:[%s204 + $0x2f50] sm:$0xff]
        %v1836 = vld [vmem:[%s204 + $0x2f58] sm:$0xff]
        %v1837 = vld [vmem:[%s204 + $0x2f60] sm:$0xff]
        %v1838 = vld [vmem:[%s204 + $0x2f68] sm:$0xff]
        %v1839 = vld [vmem:[%s204 + $0x2f70] sm:$0xff]
        %v1840 = vld [vmem:[%s204 + $0x2f78] sm:$0xff]
        %v1841 = vld [vmem:[%s204 + $0x2f80] sm:$0xff]
        %v1842 = vld [vmem:[%s204 + $0x2f88] sm:$0xff]
        %v1843 = vld [vmem:[%s204 + $0x2f90] sm:$0xff]
        %v1844 = vld [vmem:[%s204 + $0x2f98] sm:$0xff]
        %v1845 = vld [vmem:[%s204 + $0x2fa0] sm:$0xff]
        %v1846 = vld [vmem:[%s204 + $0x2fa8] sm:$0xff]
        %v1847 = vld [vmem:[%s204 + $0x2fb0] sm:$0xff]
        %v1848 = vld [vmem:[%s204 + $0x2fb8] sm:$0xff]
        %v1849 = vld [vmem:[%s204 + $0x2fc0] sm:$0xff]
        %v1850 = vld [vmem:[%s204 + $0x2fc8] sm:$0xff]
        %v1851 = vld [vmem:[%s204 + $0x2fd0] sm:$0xff]
        %v1852 = vld [vmem:[%s204 + $0x2fd8] sm:$0xff]
        %v1853 = vld [vmem:[%s204 + $0x2fe0] sm:$0xff]
        %v1854 = vld [vmem:[%s204 + $0x2fe8] sm:$0xff]
        %v1855 = vld [vmem:[%s204 + $0x2ff0] sm:$0xff]
        %v1856 = vld [vmem:[%s204 + $0x2ff8] sm:$0xff]
        %v1857 = vld [vmem:[%s204 + $0x3000] sm:$0xff]
        %v1858 = vld [vmem:[%s204 + $0x3008] sm:$0xff]
        %v1859 = vld [vmem:[%s204 + $0x3010] sm:$0xff]
        %v1860 = vld [vmem:[%s204 + $0x3018] sm:$0xff]
        %v1861 = vld [vmem:[%s204 + $0x3020] sm:$0xff]
        %v1862 = vld [vmem:[%s204 + $0x3028] sm:$0xff]
        %v1863 = vld [vmem:[%s204 + $0x3030] sm:$0xff]
        %v1864 = vld [vmem:[%s204 + $0x3038] sm:$0xff]
        %v1865 = vld [vmem:[%s204 + $0x3040] sm:$0xff]
        %v1866 = vld [vmem:[%s204 + $0x3048] sm:$0xff]
        %v1867 = vld [vmem:[%s204 + $0x3050] sm:$0xff]
        %v1868 = vld [vmem:[%s204 + $0x3058] sm:$0xff]
        %v1869 = vld [vmem:[%s204 + $0x3060] sm:$0xff]
        %v1870 = vld [vmem:[%s204 + $0x3068] sm:$0xff]
        %v1871 = vld [vmem:[%s204 + $0x3070] sm:$0xff]
        %v1872 = vld [vmem:[%s204 + $0x3078] sm:$0xff]
        %v1873 = vld [vmem:[%s204 + $0x3080] sm:$0xff]
        %v1874 = vld [vmem:[%s204 + $0x3088] sm:$0xff]
        %v1875 = vld [vmem:[%s204 + $0x3090] sm:$0xff]
        %v1876 = vld [vmem:[%s204 + $0x3098] sm:$0xff]
        %v1877 = vld [vmem:[%s204 + $0x30a0] sm:$0xff]
        %v1878 = vld [vmem:[%s204 + $0x30a8] sm:$0xff]
        %v1879 = vld [vmem:[%s204 + $0x30b0] sm:$0xff]
        %v1880 = vld [vmem:[%s204 + $0x30b8] sm:$0xff]
        %v1881 = vld [vmem:[%s204 + $0x30c0] sm:$0xff]
        %v1882 = vld [vmem:[%s204 + $0x30c8] sm:$0xff]
        %v1883 = vld [vmem:[%s204 + $0x30d0] sm:$0xff]
        %v1884 = vld [vmem:[%s204 + $0x30d8] sm:$0xff]
        %v1885 = vld [vmem:[%s204 + $0x30e0] sm:$0xff]
        %v1886 = vld [vmem:[%s204 + $0x30e8] sm:$0xff]
        %v1887 = vld [vmem:[%s204 + $0x30f0] sm:$0xff]
        %v1888 = vld [vmem:[%s204 + $0x30f8] sm:$0xff]
        %v1889 = vld [vmem:[%s204 + $0x3100] sm:$0xff]
        %v1890 = vld [vmem:[%s204 + $0x3108] sm:$0xff]
        %v1891 = vld [vmem:[%s204 + $0x3110] sm:$0xff]
        %v1892 = vld [vmem:[%s204 + $0x3118] sm:$0xff]
        %v1893 = vld [vmem:[%s204 + $0x3120] sm:$0xff]
        %v1894 = vld [vmem:[%s204 + $0x3128] sm:$0xff]
        %v1895 = vld [vmem:[%s204 + $0x3130] sm:$0xff]
        %v1896 = vld [vmem:[%s204 + $0x3138] sm:$0xff]
        %v1897 = vld [vmem:[%s204 + $0x3140] sm:$0xff]
        %v1898 = vld [vmem:[%s204 + $0x3148] sm:$0xff]
        %v1899 = vld [vmem:[%s204 + $0x3150] sm:$0xff]
        %v1900 = vld [vmem:[%s204 + $0x3158] sm:$0xff]
        %v1901 = vld [vmem:[%s204 + $0x3160] sm:$0xff]
        %v1902 = vld [vmem:[%s204 + $0x3168] sm:$0xff]
        %v1903 = vld [vmem:[%s204 + $0x3170] sm:$0xff]
        %v1904 = vld [vmem:[%s204 + $0x3178] sm:$0xff]
        %v1905 = vld [vmem:[%s204 + $0x3180] sm:$0xff]
        %v1906 = vld [vmem:[%s204 + $0x3188] sm:$0xff]
        %v1907 = vld [vmem:[%s204 + $0x3190] sm:$0xff]
        %v1908 = vld [vmem:[%s204 + $0x3198] sm:$0xff]
        %v1909 = vld [vmem:[%s204 + $0x31a0] sm:$0xff]
        %v1910 = vld [vmem:[%s204 + $0x31a8] sm:$0xff]
        %v1911 = vld [vmem:[%s204 + $0x31b0] sm:$0xff]
        %v1912 = vld [vmem:[%s204 + $0x31b8] sm:$0xff]
        %v1913 = vld [vmem:[%s204 + $0x31c0] sm:$0xff]
        %v1914 = vld [vmem:[%s204 + $0x31c8] sm:$0xff]
        %v1915 = vld [vmem:[%s204 + $0x31d0] sm:$0xff]
        %v1916 = vld [vmem:[%s204 + $0x31d8] sm:$0xff]
        %v1917 = vld [vmem:[%s204 + $0x31e0] sm:$0xff]
        %v1918 = vld [vmem:[%s204 + $0x31e8] sm:$0xff]
        %v1919 = vld [vmem:[%s204 + $0x31f0] sm:$0xff]
        %v1920 = vld [vmem:[%s204 + $0x31f8] sm:$0xff]
        %v1921 = vld [vmem:[%s204 + $0x3200] sm:$0xff]
        %v1922 = vld [vmem:[%s204 + $0x3208] sm:$0xff]
        %v1923 = vld [vmem:[%s204 + $0x3210] sm:$0xff]
        %v1924 = vld [vmem:[%s204 + $0x3218] sm:$0xff]
        %v1925 = vld [vmem:[%s204 + $0x3220] sm:$0xff]
        %v1926 = vld [vmem:[%s204 + $0x3228] sm:$0xff]
        %v1927 = vld [vmem:[%s204 + $0x3230] sm:$0xff]
        %v1928 = vld [vmem:[%s204 + $0x3238] sm:$0xff]
        %v1929 = vld [vmem:[%s204 + $0x3240] sm:$0xff]
        %v1930 = vld [vmem:[%s204 + $0x3248] sm:$0xff]
        %v1931 = vld [vmem:[%s204 + $0x3250] sm:$0xff]
        %v1932 = vld [vmem:[%s204 + $0x3258] sm:$0xff]
        %v1933 = vld [vmem:[%s204 + $0x3260] sm:$0xff]
        %v1934 = vld [vmem:[%s204 + $0x3268] sm:$0xff]
        %v1935 = vld [vmem:[%s204 + $0x3270] sm:$0xff]
        %v1936 = vld [vmem:[%s204 + $0x3278] sm:$0xff]
        %v1937 = vld [vmem:[%s204 + $0x3280] sm:$0xff]
        %v1938 = vld [vmem:[%s204 + $0x3288] sm:$0xff]
        %v1939 = vld [vmem:[%s204 + $0x3290] sm:$0xff]
        %v1940 = vld [vmem:[%s204 + $0x3298] sm:$0xff]
        %v1941 = vld [vmem:[%s204 + $0x32a0] sm:$0xff]
        %v1942 = vld [vmem:[%s204 + $0x32a8] sm:$0xff]
        %v1943 = vld [vmem:[%s204 + $0x32b0] sm:$0xff]
        %v1944 = vld [vmem:[%s204 + $0x32b8] sm:$0xff]
        %v1945 = vld [vmem:[%s204 + $0x32c0] sm:$0xff]
        %v1946 = vld [vmem:[%s204 + $0x32c8] sm:$0xff]
        %v1947 = vld [vmem:[%s204 + $0x32d0] sm:$0xff]
        %v1948 = vld [vmem:[%s204 + $0x32d8] sm:$0xff]
        %v1949 = vld [vmem:[%s204 + $0x32e0] sm:$0xff]
        %v1950 = vld [vmem:[%s204 + $0x32e8] sm:$0xff]
        %v1951 = vld [vmem:[%s204 + $0x32f0] sm:$0xff]
        %v1952 = vld [vmem:[%s204 + $0x32f8] sm:$0xff]
        %v1953 = vld [vmem:[%s204 + $0x3300] sm:$0xff]
        %v1954 = vld [vmem:[%s204 + $0x3308] sm:$0xff]
        %v1955 = vld [vmem:[%s204 + $0x3310] sm:$0xff]
        %v1956 = vld [vmem:[%s204 + $0x3318] sm:$0xff]
        %v1957 = vld [vmem:[%s204 + $0x3320] sm:$0xff]
        %v1958 = vld [vmem:[%s204 + $0x3328] sm:$0xff]
        %v1959 = vld [vmem:[%s204 + $0x3330] sm:$0xff]
        %v1960 = vld [vmem:[%s204 + $0x3338] sm:$0xff]
        %v1961 = vld [vmem:[%s204 + $0x3340] sm:$0xff]
        %v1962 = vld [vmem:[%s204 + $0x3348] sm:$0xff]
        %v1963 = vld [vmem:[%s204 + $0x3350] sm:$0xff]
        %v1964 = vld [vmem:[%s204 + $0x3358] sm:$0xff]
        %v1965 = vld [vmem:[%s204 + $0x3360] sm:$0xff]
        %v1966 = vld [vmem:[%s204 + $0x3368] sm:$0xff]
        %v1967 = vld [vmem:[%s204 + $0x3370] sm:$0xff]
        %v1968 = vld [vmem:[%s204 + $0x3378] sm:$0xff]
        %v1969 = vld [vmem:[%s204 + $0x3380] sm:$0xff]
        %v1970 = vld [vmem:[%s204 + $0x3388] sm:$0xff]
        %v1971 = vld [vmem:[%s204 + $0x3390] sm:$0xff]
        %v1972 = vld [vmem:[%s204 + $0x3398] sm:$0xff]
        %v1973 = vld [vmem:[%s204 + $0x33a0] sm:$0xff]
        %v1974 = vld [vmem:[%s204 + $0x33a8] sm:$0xff]
        %v1975 = vld [vmem:[%s204 + $0x33b0] sm:$0xff]
        %v1976 = vld [vmem:[%s204 + $0x33b8] sm:$0xff]
        %v1977 = vld [vmem:[%s204 + $0x33c0] sm:$0xff]
        %v1978 = vld [vmem:[%s204 + $0x33c8] sm:$0xff]
        %v1979 = vld [vmem:[%s204 + $0x33d0] sm:$0xff]
        %v1980 = vld [vmem:[%s204 + $0x33d8] sm:$0xff]
        %v1981 = vld [vmem:[%s204 + $0x33e0] sm:$0xff]
        %v1982 = vld [vmem:[%s204 + $0x33e8] sm:$0xff]
        %v1983 = vld [vmem:[%s204 + $0x33f0] sm:$0xff]
        %v1984 = vld [vmem:[%s204 + $0x33f8] sm:$0xff]
        %v1985 = vld [vmem:[%s204 + $0x3400] sm:$0xff]
        %v1986 = vld [vmem:[%s204 + $0x3408] sm:$0xff]
        %v1987 = vld [vmem:[%s204 + $0x3410] sm:$0xff]
        %v1988 = vld [vmem:[%s204 + $0x3418] sm:$0xff]
        %v1989 = vld [vmem:[%s204 + $0x3420] sm:$0xff]
        %v1990 = vld [vmem:[%s204 + $0x3428] sm:$0xff]
        %v1991 = vld [vmem:[%s204 + $0x3430] sm:$0xff]
        %v1992 = vld [vmem:[%s204 + $0x3438] sm:$0xff]
        %v1993 = vld [vmem:[%s204 + $0x3440] sm:$0xff]
        %v1994 = vld [vmem:[%s204 + $0x3448] sm:$0xff]
        %v1995 = vld [vmem:[%s204 + $0x3450] sm:$0xff]
        %v1996 = vld [vmem:[%s204 + $0x3458] sm:$0xff]
        %v1997 = vld [vmem:[%s204 + $0x3460] sm:$0xff]
        %v1998 = vld [vmem:[%s204 + $0x3468] sm:$0xff]
        %v1999 = vld [vmem:[%s204 + $0x3470] sm:$0xff]
        %v2000 = vld [vmem:[%s204 + $0x3478] sm:$0xff]
        %v2001 = vld [vmem:[%s204 + $0x3480] sm:$0xff]
        %v2002 = vld [vmem:[%s204 + $0x3488] sm:$0xff]
        %v2003 = vld [vmem:[%s204 + $0x3490] sm:$0xff]
        %v2004 = vld [vmem:[%s204 + $0x3498] sm:$0xff]
        %v2005 = vld [vmem:[%s204 + $0x34a0] sm:$0xff]
        %v2006 = vld [vmem:[%s204 + $0x34a8] sm:$0xff]
        %v2007 = vld [vmem:[%s204 + $0x34b0] sm:$0xff]
        %v2008 = vld [vmem:[%s204 + $0x34b8] sm:$0xff]
        %v2009 = vld [vmem:[%s204 + $0x34c0] sm:$0xff]
        %v2010 = vld [vmem:[%s204 + $0x34c8] sm:$0xff]
        %v2011 = vld [vmem:[%s204 + $0x34d0] sm:$0xff]
        %v2012 = vld [vmem:[%s204 + $0x34d8] sm:$0xff]
        %v2013 = vld [vmem:[%s204 + $0x34e0] sm:$0xff]
        %v2014 = vld [vmem:[%s204 + $0x34e8] sm:$0xff]
        %v2015 = vld [vmem:[%s204 + $0x34f0] sm:$0xff]
        %v2016 = vld [vmem:[%s204 + $0x34f8] sm:$0xff]
        %v2017 = vld [vmem:[%s204 + $0x3500] sm:$0xff]
        %v2018 = vld [vmem:[%s204 + $0x3508] sm:$0xff]
        %v2019 = vld [vmem:[%s204 + $0x3510] sm:$0xff]
        %v2020 = vld [vmem:[%s204 + $0x3518] sm:$0xff]
        %v2021 = vld [vmem:[%s204 + $0x3520] sm:$0xff]
        %v2022 = vld [vmem:[%s204 + $0x3528] sm:$0xff]
        %v2023 = vld [vmem:[%s204 + $0x3530] sm:$0xff]
        %v2024 = vld [vmem:[%s204 + $0x3538] sm:$0xff]
        %v2025 = vld [vmem:[%s204 + $0x3540] sm:$0xff]
        %v2026 = vld [vmem:[%s204 + $0x3548] sm:$0xff]
        %v2027 = vld [vmem:[%s204 + $0x3550] sm:$0xff]
        %v2028 = vld [vmem:[%s204 + $0x3558] sm:$0xff]
        %v2029 = vld [vmem:[%s204 + $0x3560] sm:$0xff]
        %v2030 = vld [vmem:[%s204 + $0x3568] sm:$0xff]
        %v2031 = vld [vmem:[%s204 + $0x3570] sm:$0xff]
        %v2032 = vld [vmem:[%s204 + $0x3578] sm:$0xff]
        %v2033 = vld [vmem:[%s204 + $0x3580] sm:$0xff]
        %v2034 = vld [vmem:[%s204 + $0x3588] sm:$0xff]
        %v2035 = vld [vmem:[%s204 + $0x3590] sm:$0xff]
        %v2036 = vld [vmem:[%s204 + $0x3598] sm:$0xff]
        %v2037 = vld [vmem:[%s204 + $0x35a0] sm:$0xff]
        %v2038 = vld [vmem:[%s204 + $0x35a8] sm:$0xff]
        %v2039 = vld [vmem:[%s204 + $0x35b0] sm:$0xff]
        %v2040 = vld [vmem:[%s204 + $0x35b8] sm:$0xff]
        %v2041 = vld [vmem:[%s204 + $0x35c0] sm:$0xff]
        %v2042 = vld [vmem:[%s204 + $0x35c8] sm:$0xff]
        %v2043 = vld [vmem:[%s204 + $0x35d0] sm:$0xff]
        %v2044 = vld [vmem:[%s204 + $0x35d8] sm:$0xff]
        %v2045 = vld [vmem:[%s204 + $0x35e0] sm:$0xff]
        %v2046 = vld [vmem:[%s204 + $0x35e8] sm:$0xff]
        %v2047 = vld [vmem:[%s204 + $0x35f0] sm:$0xff]
        %v2048 = vld [vmem:[%s204 + $0x35f8] sm:$0xff]
        %v2049 = vld [vmem:[%s204 + $0x3600] sm:$0xff]
        %v2050 = vld [vmem:[%s204 + $0x3608] sm:$0xff]
        %v2051 = vld [vmem:[%s204 + $0x3610] sm:$0xff]
        %v2052 = vld [vmem:[%s204 + $0x3618] sm:$0xff]
        %v2053 = vld [vmem:[%s204 + $0x3620] sm:$0xff]
        %v2054 = vld [vmem:[%s204 + $0x3628] sm:$0xff]
        %v2055 = vld [vmem:[%s204 + $0x3630] sm:$0xff]
        %v2056 = vld [vmem:[%s204 + $0x3638] sm:$0xff]
        %v2057 = vld [vmem:[%s204 + $0x3640] sm:$0xff]
        %v2058 = vld [vmem:[%s204 + $0x3648] sm:$0xff]
        %v2059 = vld [vmem:[%s204 + $0x3650] sm:$0xff]
        %v2060 = vld [vmem:[%s204 + $0x3658] sm:$0xff]
        %v2061 = vld [vmem:[%s204 + $0x3660] sm:$0xff]
        %v2062 = vld [vmem:[%s204 + $0x3668] sm:$0xff]
        %v2063 = vld [vmem:[%s204 + $0x3670] sm:$0xff]
        %v2064 = vld [vmem:[%s204 + $0x3678] sm:$0xff]
        %v2065 = vld [vmem:[%s204 + $0x3680] sm:$0xff]
        %v2066 = vld [vmem:[%s204 + $0x3688] sm:$0xff]
        %v2067 = vld [vmem:[%s204 + $0x3690] sm:$0xff]
        %v2068 = vld [vmem:[%s204 + $0x3698] sm:$0xff]
        %v2069 = vld [vmem:[%s204 + $0x36a0] sm:$0xff]
        %v2070 = vld [vmem:[%s204 + $0x36a8] sm:$0xff]
        %v2071 = vld [vmem:[%s204 + $0x36b0] sm:$0xff]
        %v2072 = vld [vmem:[%s204 + $0x36b8] sm:$0xff]
        %v2073 = vld [vmem:[%s204 + $0x36c0] sm:$0xff]
        %v2074 = vld [vmem:[%s204 + $0x36c8] sm:$0xff]
        %v2075 = vld [vmem:[%s204 + $0x36d0] sm:$0xff]
        %v2076 = vld [vmem:[%s204 + $0x36d8] sm:$0xff]
        %v2077 = vld [vmem:[%s204 + $0x36e0] sm:$0xff]
        %v2078 = vld [vmem:[%s204 + $0x36e8] sm:$0xff]
        %v2079 = vld [vmem:[%s204 + $0x36f0] sm:$0xff]
        %v2080 = vld [vmem:[%s204 + $0x36f8] sm:$0xff]
        %v2081 = vld [vmem:[%s204 + $0x3700] sm:$0xff]
        %v2082 = vld [vmem:[%s204 + $0x3708] sm:$0xff]
        %v2083 = vld [vmem:[%s204 + $0x3710] sm:$0xff]
        %v2084 = vld [vmem:[%s204 + $0x3718] sm:$0xff]
        %v2085 = vld [vmem:[%s204 + $0x3720] sm:$0xff]
        %v2086 = vld [vmem:[%s204 + $0x3728] sm:$0xff]
        %v2087 = vld [vmem:[%s204 + $0x3730] sm:$0xff]
        %v2088 = vld [vmem:[%s204 + $0x3738] sm:$0xff]
        %v2089 = vld [vmem:[%s204 + $0x3740] sm:$0xff]
        %v2090 = vld [vmem:[%s204 + $0x3748] sm:$0xff]
        %v2091 = vld [vmem:[%s204 + $0x3750] sm:$0xff]
        %v2092 = vld [vmem:[%s204 + $0x3758] sm:$0xff]
        %v2093 = vld [vmem:[%s204 + $0x3760] sm:$0xff]
        %v2094 = vld [vmem:[%s204 + $0x3768] sm:$0xff]
        %v2095 = vld [vmem:[%s204 + $0x3770] sm:$0xff]
        %v2096 = vld [vmem:[%s204 + $0x3778] sm:$0xff]
        %v2097 = vld [vmem:[%s204 + $0x3780] sm:$0xff]
        %v2098 = vld [vmem:[%s204 + $0x3788] sm:$0xff]
        %v2099 = vld [vmem:[%s204 + $0x3790] sm:$0xff]
        %v2100 = vld [vmem:[%s204 + $0x3798] sm:$0xff]
        %v2101 = vld [vmem:[%s204 + $0x37a0] sm:$0xff]
        %v2102 = vld [vmem:[%s204 + $0x37a8] sm:$0xff]
        %v2103 = vld [vmem:[%s204 + $0x37b0] sm:$0xff]
        %v2104 = vld [vmem:[%s204 + $0x37b8] sm:$0xff]
        %v2105 = vld [vmem:[%s204 + $0x37c0] sm:$0xff]
        %v2106 = vld [vmem:[%s204 + $0x37c8] sm:$0xff]
        %v2107 = vld [vmem:[%s204 + $0x37d0] sm:$0xff]
        %v2108 = vld [vmem:[%s204 + $0x37d8] sm:$0xff]
        %v2109 = vld [vmem:[%s204 + $0x37e0] sm:$0xff]
        %v2110 = vld [vmem:[%s204 + $0x37e8] sm:$0xff]
        %v2111 = vld [vmem:[%s204 + $0x37f0] sm:$0xff]
        %v2112 = vld [vmem:[%s204 + $0x37f8] sm:$0xff]
        %v2113 = vld [vmem:[%s204 + $0x3800] sm:$0xff]
        %v2114 = vld [vmem:[%s204 + $0x3808] sm:$0xff]
        %v2115 = vld [vmem:[%s204 + $0x3810] sm:$0xff]
        %v2116 = vld [vmem:[%s204 + $0x3818] sm:$0xff]
        %v2117 = vld [vmem:[%s204 + $0x3820] sm:$0xff]
        %v2118 = vld [vmem:[%s204 + $0x3828] sm:$0xff]
        %v2119 = vld [vmem:[%s204 + $0x3830] sm:$0xff]
        %v2120 = vld [vmem:[%s204 + $0x3838] sm:$0xff]
        %v2121 = vld [vmem:[%s204 + $0x3840] sm:$0xff]
        %v2122 = vld [vmem:[%s204 + $0x3848] sm:$0xff]
        %v2123 = vld [vmem:[%s204 + $0x3850] sm:$0xff]
        %v2124 = vld [vmem:[%s204 + $0x3858] sm:$0xff]
        %v2125 = vld [vmem:[%s204 + $0x3860] sm:$0xff]
        %v2126 = vld [vmem:[%s204 + $0x3868] sm:$0xff]
        %v2127 = vld [vmem:[%s204 + $0x3870] sm:$0xff]
        %v2128 = vld [vmem:[%s204 + $0x3878] sm:$0xff]
        %v2129 = vld [vmem:[%s204 + $0x3880] sm:$0xff]
        %v2130 = vld [vmem:[%s204 + $0x3888] sm:$0xff]
        %v2131 = vld [vmem:[%s204 + $0x3890] sm:$0xff]
        %v2132 = vld [vmem:[%s204 + $0x3898] sm:$0xff]
        %v2133 = vld [vmem:[%s204 + $0x38a0] sm:$0xff]
        %v2134 = vld [vmem:[%s204 + $0x38a8] sm:$0xff]
        %v2135 = vld [vmem:[%s204 + $0x38b0] sm:$0xff]
        %v2136 = vld [vmem:[%s204 + $0x38b8] sm:$0xff]
        %v2137 = vld [vmem:[%s204 + $0x38c0] sm:$0xff]
        %v2138 = vld [vmem:[%s204 + $0x38c8] sm:$0xff]
        %v2139 = vld [vmem:[%s204 + $0x38d0] sm:$0xff]
        %v2140 = vld [vmem:[%s204 + $0x38d8] sm:$0xff]
        %v2141 = vld [vmem:[%s204 + $0x38e0] sm:$0xff]
        %v2142 = vld [vmem:[%s204 + $0x38e8] sm:$0xff]
        %v2143 = vld [vmem:[%s204 + $0x38f0] sm:$0xff]
        %v2144 = vld [vmem:[%s204 + $0x38f8] sm:$0xff]
        %v2145 = vld [vmem:[%s204 + $0x3900] sm:$0xff]
        %v2146 = vld [vmem:[%s204 + $0x3908] sm:$0xff]
        %v2147 = vld [vmem:[%s204 + $0x3910] sm:$0xff]
        %v2148 = vld [vmem:[%s204 + $0x3918] sm:$0xff]
        %v2149 = vld [vmem:[%s204 + $0x3920] sm:$0xff]
        %v2150 = vld [vmem:[%s204 + $0x3928] sm:$0xff]
        %v2151 = vld [vmem:[%s204 + $0x3930] sm:$0xff]
        %v2152 = vld [vmem:[%s204 + $0x3938] sm:$0xff]
        %v2153 = vld [vmem:[%s204 + $0x3940] sm:$0xff]
        %v2154 = vld [vmem:[%s204 + $0x3948] sm:$0xff]
        %v2155 = vld [vmem:[%s204 + $0x3950] sm:$0xff]
        %v2156 = vld [vmem:[%s204 + $0x3958] sm:$0xff]
        %v2157 = vld [vmem:[%s204 + $0x3960] sm:$0xff]
        %v2158 = vld [vmem:[%s204 + $0x3968] sm:$0xff]
        %v2159 = vld [vmem:[%s204 + $0x3970] sm:$0xff]
        %v2160 = vld [vmem:[%s204 + $0x3978] sm:$0xff]
        %v2161 = vld [vmem:[%s204 + $0x3980] sm:$0xff]
        %v2162 = vld [vmem:[%s204 + $0x3988] sm:$0xff]
        %v2163 = vld [vmem:[%s204 + $0x3990] sm:$0xff]
        %v2164 = vld [vmem:[%s204 + $0x3998] sm:$0xff]
        %v2165 = vld [vmem:[%s204 + $0x39a0] sm:$0xff]
        %v2166 = vld [vmem:[%s204 + $0x39a8] sm:$0xff]
        %v2167 = vld [vmem:[%s204 + $0x39b0] sm:$0xff]
        %v2168 = vld [vmem:[%s204 + $0x39b8] sm:$0xff]
        %v2169 = vld [vmem:[%s204 + $0x39c0] sm:$0xff]
        %v2170 = vld [vmem:[%s204 + $0x39c8] sm:$0xff]
        %v2171 = vld [vmem:[%s204 + $0x39d0] sm:$0xff]
        %v2172 = vld [vmem:[%s204 + $0x39d8] sm:$0xff]
        %v2173 = vld [vmem:[%s204 + $0x39e0] sm:$0xff]
        %v2174 = vld [vmem:[%s204 + $0x39e8] sm:$0xff]
        %v2175 = vld [vmem:[%s204 + $0x39f0] sm:$0xff]
        %v2176 = vld [vmem:[%s204 + $0x39f8] sm:$0xff]
        %v2177 = vld [vmem:[%s204 + $0x3a00] sm:$0xff]
        %v2178 = vld [vmem:[%s204 + $0x3a08] sm:$0xff]
        %v2179 = vld [vmem:[%s204 + $0x3a10] sm:$0xff]
        %v2180 = vld [vmem:[%s204 + $0x3a18] sm:$0xff]
        %v2181 = vld [vmem:[%s204 + $0x3a20] sm:$0xff]
        %v2182 = vld [vmem:[%s204 + $0x3a28] sm:$0xff]
        %v2183 = vld [vmem:[%s204 + $0x3a30] sm:$0xff]
        %v2184 = vld [vmem:[%s204 + $0x3a38] sm:$0xff]
        %v2185 = vld [vmem:[%s204 + $0x3a40] sm:$0xff]
        %v2186 = vld [vmem:[%s204 + $0x3a48] sm:$0xff]
        %v2187 = vld [vmem:[%s204 + $0x3a50] sm:$0xff]
        %v2188 = vld [vmem:[%s204 + $0x3a58] sm:$0xff]
        %v2189 = vld [vmem:[%s204 + $0x3a60] sm:$0xff]
        %v2190 = vld [vmem:[%s204 + $0x3a68] sm:$0xff]
        %v2191 = vld [vmem:[%s204 + $0x3a70] sm:$0xff]
        %v2192 = vld [vmem:[%s204 + $0x3a78] sm:$0xff]
        %v2193 = vld [vmem:[%s204 + $0x3a80] sm:$0xff]
        %v2194 = vld [vmem:[%s204 + $0x3a88] sm:$0xff]
        %v2195 = vld [vmem:[%s204 + $0x3a90] sm:$0xff]
        %v2196 = vld [vmem:[%s204 + $0x3a98] sm:$0xff]
        %v2197 = vld [vmem:[%s204 + $0x3aa0] sm:$0xff]
        %v2198 = vld [vmem:[%s204 + $0x3aa8] sm:$0xff]
        %v2199 = vld [vmem:[%s204 + $0x3ab0] sm:$0xff]
        %v2200 = vld [vmem:[%s204 + $0x3ab8] sm:$0xff]
        %v2201 = vld [vmem:[%s204 + $0x3ac0] sm:$0xff]
        %v2202 = vld [vmem:[%s204 + $0x3ac8] sm:$0xff]
        %v2203 = vld [vmem:[%s204 + $0x3ad0] sm:$0xff]
        %v2204 = vld [vmem:[%s204 + $0x3ad8] sm:$0xff]
        %v2205 = vld [vmem:[%s204 + $0x3ae0] sm:$0xff]
        %v2206 = vld [vmem:[%s204 + $0x3ae8] sm:$0xff]
        %v2207 = vld [vmem:[%s204 + $0x3af0] sm:$0xff]
        %v2208 = vld [vmem:[%s204 + $0x3af8] sm:$0xff]
        %v2209 = vld [vmem:[%s204 + $0x3b00] sm:$0xff]
        %v2210 = vld [vmem:[%s204 + $0x3b08] sm:$0xff]
        %v2211 = vld [vmem:[%s204 + $0x3b10] sm:$0xff]
        %v2212 = vld [vmem:[%s204 + $0x3b18] sm:$0xff]
        %v2213 = vld [vmem:[%s204 + $0x3b20] sm:$0xff]
        %v2214 = vld [vmem:[%s204 + $0x3b28] sm:$0xff]
        %v2215 = vld [vmem:[%s204 + $0x3b30] sm:$0xff]
        %v2216 = vld [vmem:[%s204 + $0x3b38] sm:$0xff]
        %v2217 = vld [vmem:[%s204 + $0x3b40] sm:$0xff]
        %v2218 = vld [vmem:[%s204 + $0x3b48] sm:$0xff]
        %v2219 = vld [vmem:[%s204 + $0x3b50] sm:$0xff]
        %v2220 = vld [vmem:[%s204 + $0x3b58] sm:$0xff]
        %v2221 = vld [vmem:[%s204 + $0x3b60] sm:$0xff]
        %v2222 = vld [vmem:[%s204 + $0x3b68] sm:$0xff]
        %v2223 = vld [vmem:[%s204 + $0x3b70] sm:$0xff]
        %v2224 = vld [vmem:[%s204 + $0x3b78] sm:$0xff]
        %v2225 = vld [vmem:[%s204 + $0x3b80] sm:$0xff]
        %v2226 = vld [vmem:[%s204 + $0x3b88] sm:$0xff]
        %v2227 = vld [vmem:[%s204 + $0x3b90] sm:$0xff]
        %v2228 = vld [vmem:[%s204 + $0x3b98] sm:$0xff]
        %v2229 = vld [vmem:[%s204 + $0x3ba0] sm:$0xff]
        %v2230 = vld [vmem:[%s204 + $0x3ba8] sm:$0xff]
        %v2231 = vld [vmem:[%s204 + $0x3bb0] sm:$0xff]
        %v2232 = vld [vmem:[%s204 + $0x3bb8] sm:$0xff]
        %v2233 = vld [vmem:[%s204 + $0x3bc0] sm:$0xff]
        %v2234 = vld [vmem:[%s204 + $0x3bc8] sm:$0xff]
        %v2235 = vld [vmem:[%s204 + $0x3bd0] sm:$0xff]
        %v2236 = vld [vmem:[%s204 + $0x3bd8] sm:$0xff]
        %v2237 = vld [vmem:[%s204 + $0x3be0] sm:$0xff]
        %v2238 = vld [vmem:[%s204 + $0x3be8] sm:$0xff]
        %v2239 = vld [vmem:[%s204 + $0x3bf0] sm:$0xff]
        %v2240 = vld [vmem:[%s204 + $0x3bf8] sm:$0xff]
        %v2241 = vld [vmem:[%s204 + $0x3c00] sm:$0xff]
        %v2242 = vld [vmem:[%s204 + $0x3c08] sm:$0xff]
        %v2243 = vld [vmem:[%s204 + $0x3c10] sm:$0xff]
        %v2244 = vld [vmem:[%s204 + $0x3c18] sm:$0xff]
        %v2245 = vld [vmem:[%s204 + $0x3c20] sm:$0xff]
        %v2246 = vld [vmem:[%s204 + $0x3c28] sm:$0xff]
        %v2247 = vld [vmem:[%s204 + $0x3c30] sm:$0xff]
        %v2248 = vld [vmem:[%s204 + $0x3c38] sm:$0xff]
        %v2249 = vld [vmem:[%s204 + $0x3c40] sm:$0xff]
        %v2250 = vld [vmem:[%s204 + $0x3c48] sm:$0xff]
        %v2251 = vld [vmem:[%s204 + $0x3c50] sm:$0xff]
        %v2252 = vld [vmem:[%s204 + $0x3c58] sm:$0xff]
        %v2253 = vld [vmem:[%s204 + $0x3c60] sm:$0xff]
        %v2254 = vld [vmem:[%s204 + $0x3c68] sm:$0xff]
        %v2255 = vld [vmem:[%s204 + $0x3c70] sm:$0xff]
        %v2256 = vld [vmem:[%s204 + $0x3c78] sm:$0xff]
        %v2257 = vld [vmem:[%s204 + $0x3c80] sm:$0xff]
        %v2258 = vld [vmem:[%s204 + $0x3c88] sm:$0xff]
        %v2259 = vld [vmem:[%s204 + $0x3c90] sm:$0xff]
        %v2260 = vld [vmem:[%s204 + $0x3c98] sm:$0xff]
        %v2261 = vld [vmem:[%s204 + $0x3ca0] sm:$0xff]
        %v2262 = vld [vmem:[%s204 + $0x3ca8] sm:$0xff]
        %v2263 = vld [vmem:[%s204 + $0x3cb0] sm:$0xff]
        %v2264 = vld [vmem:[%s204 + $0x3cb8] sm:$0xff]
        %v2265 = vld [vmem:[%s204 + $0x3cc0] sm:$0xff]
        %v2266 = vld [vmem:[%s204 + $0x3cc8] sm:$0xff]
        %v2267 = vld [vmem:[%s204 + $0x3cd0] sm:$0xff]
        %v2268 = vld [vmem:[%s204 + $0x3cd8] sm:$0xff]
        %v2269 = vld [vmem:[%s204 + $0x3ce0] sm:$0xff]
        %v2270 = vld [vmem:[%s204 + $0x3ce8] sm:$0xff]
        %v2271 = vld [vmem:[%s204 + $0x3cf0] sm:$0xff]
        %v2272 = vld [vmem:[%s204 + $0x3cf8] sm:$0xff]
        %v2273 = vld [vmem:[%s204 + $0x3d00] sm:$0xff]
        %v2274 = vld [vmem:[%s204 + $0x3d08] sm:$0xff]
        %v2275 = vld [vmem:[%s204 + $0x3d10] sm:$0xff]
        %v2276 = vld [vmem:[%s204 + $0x3d18] sm:$0xff]
        %v2277 = vld [vmem:[%s204 + $0x3d20] sm:$0xff]
        %v2278 = vld [vmem:[%s204 + $0x3d28] sm:$0xff]
        %v2279 = vld [vmem:[%s204 + $0x3d30] sm:$0xff]
        %v2280 = vld [vmem:[%s204 + $0x3d38] sm:$0xff]
        %v2281 = vld [vmem:[%s204 + $0x3d40] sm:$0xff]
        %v2282 = vld [vmem:[%s204 + $0x3d48] sm:$0xff]
        %v2283 = vld [vmem:[%s204 + $0x3d50] sm:$0xff]
        %v2284 = vld [vmem:[%s204 + $0x3d58] sm:$0xff]
        %v2285 = vld [vmem:[%s204 + $0x3d60] sm:$0xff]
        %v2286 = vld [vmem:[%s204 + $0x3d68] sm:$0xff]
        %v2287 = vld [vmem:[%s204 + $0x3d70] sm:$0xff]
        %v2288 = vld [vmem:[%s204 + $0x3d78] sm:$0xff]
        %v2289 = vld [vmem:[%s204 + $0x3d80] sm:$0xff]
        %v2290 = vld [vmem:[%s204 + $0x3d88] sm:$0xff]
        %v2291 = vld [vmem:[%s204 + $0x3d90] sm:$0xff]
        %v2292 = vld [vmem:[%s204 + $0x3d98] sm:$0xff]
        %v2293 = vld [vmem:[%s204 + $0x3da0] sm:$0xff]
        %v2294 = vld [vmem:[%s204 + $0x3da8] sm:$0xff]
        %v2295 = vld [vmem:[%s204 + $0x3db0] sm:$0xff]
        %v2296 = vld [vmem:[%s204 + $0x3db8] sm:$0xff]
        %v2297 = vld [vmem:[%s204 + $0x3dc0] sm:$0xff]
        %v2298 = vld [vmem:[%s204 + $0x3dc8] sm:$0xff]
        %v2299 = vld [vmem:[%s204 + $0x3dd0] sm:$0xff]
        %v2300 = vld [vmem:[%s204 + $0x3dd8] sm:$0xff]
        %v2301 = vld [vmem:[%s204 + $0x3de0] sm:$0xff]
        %v2302 = vld [vmem:[%s204 + $0x3de8] sm:$0xff]
        %v2303 = vld [vmem:[%s204 + $0x3df0] sm:$0xff]
        %v2304 = vld [vmem:[%s204 + $0x3df8] sm:$0xff]
        %v2305 = vld [vmem:[%s204 + $0x3e00] sm:$0xff]
        %v2306 = vld [vmem:[%s204 + $0x3e08] sm:$0xff]
        %v2307 = vld [vmem:[%s204 + $0x3e10] sm:$0xff]
        %v2308 = vld [vmem:[%s204 + $0x3e18] sm:$0xff]
        %v2309 = vld [vmem:[%s204 + $0x3e20] sm:$0xff]
        %v2310 = vld [vmem:[%s204 + $0x3e28] sm:$0xff]
        %v2311 = vld [vmem:[%s204 + $0x3e30] sm:$0xff]
        %v2312 = vld [vmem:[%s204 + $0x3e38] sm:$0xff]
        %v2313 = vld [vmem:[%s204 + $0x3e40] sm:$0xff]
        %v2314 = vld [vmem:[%s204 + $0x3e48] sm:$0xff]
        %v2315 = vld [vmem:[%s204 + $0x3e50] sm:$0xff]
        %v2316 = vld [vmem:[%s204 + $0x3e58] sm:$0xff]
        %v2317 = vld [vmem:[%s204 + $0x3e60] sm:$0xff]
        %v2318 = vld [vmem:[%s204 + $0x3e68] sm:$0xff]
        %v2319 = vld [vmem:[%s204 + $0x3e70] sm:$0xff]
        %v2320 = vld [vmem:[%s204 + $0x3e78] sm:$0xff]
        %v2321 = vld [vmem:[%s204 + $0x3e80] sm:$0xff]
        %v2322 = vld [vmem:[%s204 + $0x3e88] sm:$0xff]
        %v2323 = vld [vmem:[%s204 + $0x3e90] sm:$0xff]
        %v2324 = vld [vmem:[%s204 + $0x3e98] sm:$0xff]
        %v2325 = vld [vmem:[%s204 + $0x3ea0] sm:$0xff]
        %v2326 = vld [vmem:[%s204 + $0x3ea8] sm:$0xff]
        %v2327 = vld [vmem:[%s204 + $0x3eb0] sm:$0xff]
        %v2328 = vld [vmem:[%s204 + $0x3eb8] sm:$0xff]
        %v2329 = vld [vmem:[%s204 + $0x3ec0] sm:$0xff]
        %v2330 = vld [vmem:[%s204 + $0x3ec8] sm:$0xff]
        %v2331 = vld [vmem:[%s204 + $0x3ed0] sm:$0xff]
        %v2332 = vld [vmem:[%s204 + $0x3ed8] sm:$0xff]
        %v2333 = vld [vmem:[%s204 + $0x3ee0] sm:$0xff]
        %v2334 = vld [vmem:[%s204 + $0x3ee8] sm:$0xff]
        %v2335 = vld [vmem:[%s204 + $0x3ef0] sm:$0xff]
        %v2336 = vld [vmem:[%s204 + $0x3ef8] sm:$0xff]
        %v2337 = vld [vmem:[%s204 + $0x3f00] sm:$0xff]
        %v2338 = vld [vmem:[%s204 + $0x3f08] sm:$0xff]
        %v2339 = vld [vmem:[%s204 + $0x3f10] sm:$0xff]
        %v2340 = vld [vmem:[%s204 + $0x3f18] sm:$0xff]
        %v2341 = vld [vmem:[%s204 + $0x3f20] sm:$0xff]
        %v2342 = vld [vmem:[%s204 + $0x3f28] sm:$0xff]
        %v2343 = vld [vmem:[%s204 + $0x3f30] sm:$0xff]
        %v2344 = vld [vmem:[%s204 + $0x3f38] sm:$0xff]
        %v2345 = vld [vmem:[%s204 + $0x3f40] sm:$0xff]
        %v2346 = vld [vmem:[%s204 + $0x3f48] sm:$0xff]
        %v2347 = vld [vmem:[%s204 + $0x3f50] sm:$0xff]
        %v2348 = vld [vmem:[%s204 + $0x3f58] sm:$0xff]
        %v2349 = vld [vmem:[%s204 + $0x3f60] sm:$0xff]
        %v2350 = vld [vmem:[%s204 + $0x3f68] sm:$0xff]
        %v2351 = vld [vmem:[%s204 + $0x3f70] sm:$0xff]
        %v2352 = vld [vmem:[%s204 + $0x3f78] sm:$0xff]
        %v2353 = vld [vmem:[%s204 + $0x3f80] sm:$0xff]
        %v2354 = vld [vmem:[%s204 + $0x3f88] sm:$0xff]
        %v2355 = vld [vmem:[%s204 + $0x3f90] sm:$0xff]
        %v2356 = vld [vmem:[%s204 + $0x3f98] sm:$0xff]
        %v2357 = vld [vmem:[%s204 + $0x3fa0] sm:$0xff]
        %v2358 = vld [vmem:[%s204 + $0x3fa8] sm:$0xff]
        %v2359 = vld [vmem:[%s204 + $0x3fb0] sm:$0xff]
        %v2360 = vld [vmem:[%s204 + $0x3fb8] sm:$0xff]
        %v2361 = vld [vmem:[%s204 + $0x3fc0] sm:$0xff]
        %v2362 = vld [vmem:[%s204 + $0x3fc8] sm:$0xff]
        %v2363 = vld [vmem:[%s204 + $0x3fd0] sm:$0xff]
        %v2364 = vld [vmem:[%s204 + $0x3fd8] sm:$0xff]
        %v2365 = vld [vmem:[%s204 + $0x3fe0] sm:$0xff]
        %v2366 = vld [vmem:[%s204 + $0x3fe8] sm:$0xff]
        %v2367 = vld [vmem:[%s204 + $0x3ff0] sm:$0xff]
        %v2368 = vld [vmem:[%s204 + $0x3ff8] sm:$0xff]
        %2369 = vmatprep.subr.mxu0 %v322
        %2370 = vmatpush1.msra.mxu0 %v321
        %2371 = vmatprep.subr.mxu0 %v326
        %2372 = vmatpush1.msra.mxu0 %v325
        %2373 = vmatprep.subr.mxu0 %v330
        %2374 = vmatpush1.msra.mxu0 %v329
        %2375 = vmatprep.subr.mxu0 %v334
        %2376 = vmatpush1.msra.mxu0 %v333
        %2377 = vmatprep.subr.mxu0 %v338
        %2378 = vmatpush1.msra.mxu0 %v337
        %2379 = vmatprep.subr.mxu0 %v342
        %2380 = vmatpush1.msra.mxu0 %v341
        %2381 = vmatprep.subr.mxu0 %v346
        %2382 = vmatpush1.msra.mxu0 %v345
        %2383 = vmatprep.subr.mxu0 %v350
        %2384 = vmatpush1.msra.mxu0 %v349
        %2385 = vmatprep.subr.mxu0 %v354
        %2386 = vmatpush1.msra.mxu0 %v353
        %2387 = vmatprep.subr.mxu0 %v358
        %2388 = vmatpush1.msra.mxu0 %v357
        %2389 = vmatprep.subr.mxu0 %v362
        %2390 = vmatpush1.msra.mxu0 %v361
        %2391 = vmatprep.subr.mxu0 %v366
        %2392 = vmatpush1.msra.mxu0 %v365
        %2393 = vmatprep.subr.mxu0 %v370
        %2394 = vmatpush1.msra.mxu0 %v369
        %2395 = vmatprep.subr.mxu0 %v374
        %2396 = vmatpush1.msra.mxu0 %v373
        %2397 = vmatprep.subr.mxu0 %v378
        %2398 = vmatpush1.msra.mxu0 %v377
        %2399 = vmatprep.subr.mxu0 %v382
        %2400 = vmatpush1.msra.mxu0 %v381
        %2401 = vmatprep.subr.mxu0 %v386
        %2402 = vmatpush1.msra.mxu0 %v385
        %2403 = vmatprep.subr.mxu0 %v390
        %2404 = vmatpush1.msra.mxu0 %v389
        %2405 = vmatprep.subr.mxu0 %v394
        %2406 = vmatpush1.msra.mxu0 %v393
        %2407 = vmatprep.subr.mxu0 %v398
        %2408 = vmatpush1.msra.mxu0 %v397
        %2409 = vmatprep.subr.mxu0 %v402
        %2410 = vmatpush1.msra.mxu0 %v401
        %2411 = vmatprep.subr.mxu0 %v406
        %2412 = vmatpush1.msra.mxu0 %v405
        %2413 = vmatprep.subr.mxu0 %v410
        %2414 = vmatpush1.msra.mxu0 %v409
        %2415 = vmatprep.subr.mxu0 %v414
        %2416 = vmatpush1.msra.mxu0 %v413
        %2417 = vmatprep.subr.mxu0 %v418
        %2418 = vmatpush1.msra.mxu0 %v417
        %2419 = vmatprep.subr.mxu0 %v422
        %2420 = vmatpush1.msra.mxu0 %v421
        %2421 = vmatprep.subr.mxu0 %v426
        %2422 = vmatpush1.msra.mxu0 %v425
        %2423 = vmatprep.subr.mxu0 %v430
        %2424 = vmatpush1.msra.mxu0 %v429
        %2425 = vmatprep.subr.mxu0 %v434
        %2426 = vmatpush1.msra.mxu0 %v433
        %2427 = vmatprep.subr.mxu0 %v438
        %2428 = vmatpush1.msra.mxu0 %v437
        %2429 = vmatprep.subr.mxu0 %v442
        %2430 = vmatpush1.msra.mxu0 %v441
        %2431 = vmatprep.subr.mxu0 %v446
        %2432 = vmatpush1.msra.mxu0 %v445
        %2433 = vmatprep.mubr.f32.mxu0 %v286
        %2434 = vmatmul.mubr.f32.gmra.mrb[0].mxu0 %v285
        %v2435 = vpop.f32.mrb[0].mxu0
        %v2436 = vadd.f32 0.0, %v2435
        %v2437 = vpop.f32.mrb[0].mxu0
        %v2438 = vadd.f32 0.0, %v2437
        %2439 = vdwg.mxu0
        %2440 = vmatprep.subr.mxu0 %v450
        %2441 = vmatpush1.msra.mxu0 %v449
        %2442 = vmatprep.subr.mxu0 %v454
        %2443 = vmatpush1.msra.mxu0 %v453
        %2444 = vmatprep.subr.mxu0 %v458
        %2445 = vmatpush1.msra.mxu0 %v457
        %2446 = vmatprep.subr.mxu0 %v462
        %2447 = vmatpush1.msra.mxu0 %v461
        %2448 = vmatprep.subr.mxu0 %v466
        %2449 = vmatpush1.msra.mxu0 %v465
        %2450 = vmatprep.subr.mxu0 %v470
        %2451 = vmatpush1.msra.mxu0 %v469
        %2452 = vmatprep.subr.mxu0 %v474
        %2453 = vmatpush1.msra.mxu0 %v473
        %2454 = vmatprep.subr.mxu0 %v478
        %2455 = vmatpush1.msra.mxu0 %v477
        %2456 = vmatprep.subr.mxu0 %v482
        %2457 = vmatpush1.msra.mxu0 %v481
        %2458 = vmatprep.subr.mxu0 %v486
        %2459 = vmatpush1.msra.mxu0 %v485
        %2460 = vmatprep.subr.mxu0 %v490
        %2461 = vmatpush1.msra.mxu0 %v489
        %2462 = vmatprep.subr.mxu0 %v494
        %2463 = vmatpush1.msra.mxu0 %v493
        %2464 = vmatprep.subr.mxu0 %v498
        %2465 = vmatpush1.msra.mxu0 %v497
        %2466 = vmatprep.subr.mxu0 %v502
        %2467 = vmatpush1.msra.mxu0 %v501
        %2468 = vmatprep.subr.mxu0 %v506
        %2469 = vmatpush1.msra.mxu0 %v505
        %2470 = vmatprep.subr.mxu0 %v510
        %2471 = vmatpush1.msra.mxu0 %v509
        %2472 = vmatprep.subr.mxu0 %v514
        %2473 = vmatpush1.msra.mxu0 %v513
        %2474 = vmatprep.subr.mxu0 %v518
        %2475 = vmatpush1.msra.mxu0 %v517
        %2476 = vmatprep.subr.mxu0 %v522
        %2477 = vmatpush1.msra.mxu0 %v521
        %2478 = vmatprep.subr.mxu0 %v526
        %2479 = vmatpush1.msra.mxu0 %v525
        %2480 = vmatprep.subr.mxu0 %v530
        %2481 = vmatpush1.msra.mxu0 %v529
        %2482 = vmatprep.subr.mxu0 %v534
        %2483 = vmatpush1.msra.mxu0 %v533
        %2484 = vmatprep.subr.mxu0 %v538
        %2485 = vmatpush1.msra.mxu0 %v537
        %2486 = vmatprep.subr.mxu0 %v542
        %2487 = vmatpush1.msra.mxu0 %v541
        %2488 = vmatprep.subr.mxu0 %v546
        %2489 = vmatpush1.msra.mxu0 %v545
        %2490 = vmatprep.subr.mxu0 %v550
        %2491 = vmatpush1.msra.mxu0 %v549
        %2492 = vmatprep.subr.mxu0 %v554
        %2493 = vmatpush1.msra.mxu0 %v553
        %2494 = vmatprep.subr.mxu0 %v558
        %2495 = vmatpush1.msra.mxu0 %v557
        %2496 = vmatprep.subr.mxu0 %v562
        %2497 = vmatpush1.msra.mxu0 %v561
        %2498 = vmatprep.subr.mxu0 %v566
        %2499 = vmatpush1.msra.mxu0 %v565
        %2500 = vmatprep.subr.mxu0 %v570
        %2501 = vmatpush1.msra.mxu0 %v569
        %2502 = vmatprep.subr.mxu0 %v574
        %2503 = vmatpush1.msra.mxu0 %v573
        %2504 = vmatprep.mubr.f32.mxu0 %v288
        %2505 = vmatmul.mubr.f32.gmra.mrb[0].mxu0 %v287
        %v2506 = vpop.f32.mrb[0].mxu0
        %v2507 = vadd.f32 %v2436, %v2506
        %v2508 = vpop.f32.mrb[0].mxu0
        %v2509 = vadd.f32 %v2438, %v2508
        %2510 = vdwg.mxu0
        %2511 = vmatprep.subr.mxu0 %v578
        %2512 = vmatpush1.msra.mxu0 %v577
        %2513 = vmatprep.subr.mxu0 %v582
        %2514 = vmatpush1.msra.mxu0 %v581
        %2515 = vmatprep.subr.mxu0 %v586
        %2516 = vmatpush1.msra.mxu0 %v585
        %2517 = vmatprep.subr.mxu0 %v590
        %2518 = vmatpush1.msra.mxu0 %v589
        %2519 = vmatprep.subr.mxu0 %v594
        %2520 = vmatpush1.msra.mxu0 %v593
        %2521 = vmatprep.subr.mxu0 %v598
        %2522 = vmatpush1.msra.mxu0 %v597
        %2523 = vmatprep.subr.mxu0 %v602
        %2524 = vmatpush1.msra.mxu0 %v601
        %2525 = vmatprep.subr.mxu0 %v606
        %2526 = vmatpush1.msra.mxu0 %v605
        %2527 = vmatprep.subr.mxu0 %v610
        %2528 = vmatpush1.msra.mxu0 %v609
        %2529 = vmatprep.subr.mxu0 %v614
        %2530 = vmatpush1.msra.mxu0 %v613
        %2531 = vmatprep.subr.mxu0 %v618
        %2532 = vmatpush1.msra.mxu0 %v617
        %2533 = vmatprep.subr.mxu0 %v622
        %2534 = vmatpush1.msra.mxu0 %v621
        %2535 = vmatprep.subr.mxu0 %v626
        %2536 = vmatpush1.msra.mxu0 %v625
        %2537 = vmatprep.subr.mxu0 %v630
        %2538 = vmatpush1.msra.mxu0 %v629
        %2539 = vmatprep.subr.mxu0 %v634
        %2540 = vmatpush1.msra.mxu0 %v633
        %2541 = vmatprep.subr.mxu0 %v638
        %2542 = vmatpush1.msra.mxu0 %v637
        %2543 = vmatprep.subr.mxu0 %v642
        %2544 = vmatpush1.msra.mxu0 %v641
        %2545 = vmatprep.subr.mxu0 %v646
        %2546 = vmatpush1.msra.mxu0 %v645
        %2547 = vmatprep.subr.mxu0 %v650
        %2548 = vmatpush1.msra.mxu0 %v649
        %2549 = vmatprep.subr.mxu0 %v654
        %2550 = vmatpush1.msra.mxu0 %v653
        %2551 = vmatprep.subr.mxu0 %v658
        %2552 = vmatpush1.msra.mxu0 %v657
        %2553 = vmatprep.subr.mxu0 %v662
        %2554 = vmatpush1.msra.mxu0 %v661
        %2555 = vmatprep.subr.mxu0 %v666
        %2556 = vmatpush1.msra.mxu0 %v665
        %2557 = vmatprep.subr.mxu0 %v670
        %2558 = vmatpush1.msra.mxu0 %v669
        %2559 = vmatprep.subr.mxu0 %v674
        %2560 = vmatpush1.msra.mxu0 %v673
        %2561 = vmatprep.subr.mxu0 %v678
        %2562 = vmatpush1.msra.mxu0 %v677
        %2563 = vmatprep.subr.mxu0 %v682
        %2564 = vmatpush1.msra.mxu0 %v681
        %2565 = vmatprep.subr.mxu0 %v686
        %2566 = vmatpush1.msra.mxu0 %v685
        %2567 = vmatprep.subr.mxu0 %v690
        %2568 = vmatpush1.msra.mxu0 %v689
        %2569 = vmatprep.subr.mxu0 %v694
        %2570 = vmatpush1.msra.mxu0 %v693
        %2571 = vmatprep.subr.mxu0 %v698
        %2572 = vmatpush1.msra.mxu0 %v697
        %2573 = vmatprep.subr.mxu0 %v702
        %2574 = vmatpush1.msra.mxu0 %v701
        %2575 = vmatprep.mubr.f32.mxu0 %v290
        %2576 = vmatmul.mubr.f32.gmra.mrb[0].mxu0 %v289
        %v2577 = vpop.f32.mrb[0].mxu0
        %v2578 = vadd.f32 %v2507, %v2577
        %v2579 = vpop.f32.mrb[0].mxu0
        %v2580 = vadd.f32 %v2509, %v2579
        %2581 = vdwg.mxu0
        %2582 = vmatprep.subr.mxu0 %v706
        %2583 = vmatpush1.msra.mxu0 %v705
        %2584 = vmatprep.subr.mxu0 %v710
        %2585 = vmatpush1.msra.mxu0 %v709
        %2586 = vmatprep.subr.mxu0 %v714
        %2587 = vmatpush1.msra.mxu0 %v713
        %2588 = vmatprep.subr.mxu0 %v718
        %2589 = vmatpush1.msra.mxu0 %v717
        %2590 = vmatprep.subr.mxu0 %v722
        %2591 = vmatpush1.msra.mxu0 %v721
        %2592 = vmatprep.subr.mxu0 %v726
        %2593 = vmatpush1.msra.mxu0 %v725
        %2594 = vmatprep.subr.mxu0 %v730
        %2595 = vmatpush1.msra.mxu0 %v729
        %2596 = vmatprep.subr.mxu0 %v734
        %2597 = vmatpush1.msra.mxu0 %v733
        %2598 = vmatprep.subr.mxu0 %v738
        %2599 = vmatpush1.msra.mxu0 %v737
        %2600 = vmatprep.subr.mxu0 %v742
        %2601 = vmatpush1.msra.mxu0 %v741
        %2602 = vmatprep.subr.mxu0 %v746
        %2603 = vmatpush1.msra.mxu0 %v745
        %2604 = vmatprep.subr.mxu0 %v750
        %2605 = vmatpush1.msra.mxu0 %v749
        %2606 = vmatprep.subr.mxu0 %v754
        %2607 = vmatpush1.msra.mxu0 %v753
        %2608 = vmatprep.subr.mxu0 %v758
        %2609 = vmatpush1.msra.mxu0 %v757
        %2610 = vmatprep.subr.mxu0 %v762
        %2611 = vmatpush1.msra.mxu0 %v761
        %2612 = vmatprep.subr.mxu0 %v766
        %2613 = vmatpush1.msra.mxu0 %v765
        %2614 = vmatprep.subr.mxu0 %v770
        %2615 = vmatpush1.msra.mxu0 %v769
        %2616 = vmatprep.subr.mxu0 %v774
        %2617 = vmatpush1.msra.mxu0 %v773
        %2618 = vmatprep.subr.mxu0 %v778
        %2619 = vmatpush1.msra.mxu0 %v777
        %2620 = vmatprep.subr.mxu0 %v782
        %2621 = vmatpush1.msra.mxu0 %v781
        %2622 = vmatprep.subr.mxu0 %v786
        %2623 = vmatpush1.msra.mxu0 %v785
        %2624 = vmatprep.subr.mxu0 %v790
        %2625 = vmatpush1.msra.mxu0 %v789
        %2626 = vmatprep.subr.mxu0 %v794
        %2627 = vmatpush1.msra.mxu0 %v793
        %2628 = vmatprep.subr.mxu0 %v798
        %2629 = vmatpush1.msra.mxu0 %v797
        %2630 = vmatprep.subr.mxu0 %v802
        %2631 = vmatpush1.msra.mxu0 %v801
        %2632 = vmatprep.subr.mxu0 %v806
        %2633 = vmatpush1.msra.mxu0 %v805
        %2634 = vmatprep.subr.mxu0 %v810
        %2635 = vmatpush1.msra.mxu0 %v809
        %2636 = vmatprep.subr.mxu0 %v814
        %2637 = vmatpush1.msra.mxu0 %v813
        %2638 = vmatprep.subr.mxu0 %v818
        %2639 = vmatpush1.msra.mxu0 %v817
        %2640 = vmatprep.subr.mxu0 %v822
        %2641 = vmatpush1.msra.mxu0 %v821
        %2642 = vmatprep.subr.mxu0 %v826
        %2643 = vmatpush1.msra.mxu0 %v825
        %2644 = vmatprep.subr.mxu0 %v830
        %2645 = vmatpush1.msra.mxu0 %v829
        %2646 = vmatprep.mubr.f32.mxu0 %v292
        %2647 = vmatmul.mubr.f32.gmra.mrb[0].mxu0 %v291
        %v2648 = vpop.f32.mrb[0].mxu0
        %v2649 = vadd.f32 %v2578, %v2648
        %v2650 = vpop.f32.mrb[0].mxu0
        %v2651 = vadd.f32 %v2580, %v2650
        %2652 = vdwg.mxu0
        %2653 = vmatprep.subr.mxu0 %v834
        %2654 = vmatpush1.msra.mxu0 %v833
        %2655 = vmatprep.subr.mxu0 %v838
        %2656 = vmatpush1.msra.mxu0 %v837
        %2657 = vmatprep.subr.mxu0 %v842
        %2658 = vmatpush1.msra.mxu0 %v841
        %2659 = vmatprep.subr.mxu0 %v846
        %2660 = vmatpush1.msra.mxu0 %v845
        %2661 = vmatprep.subr.mxu0 %v850
        %2662 = vmatpush1.msra.mxu0 %v849
        %2663 = vmatprep.subr.mxu0 %v854
        %2664 = vmatpush1.msra.mxu0 %v853
        %2665 = vmatprep.subr.mxu0 %v858
        %2666 = vmatpush1.msra.mxu0 %v857
        %2667 = vmatprep.subr.mxu0 %v862
        %2668 = vmatpush1.msra.mxu0 %v861
        %2669 = vmatprep.subr.mxu0 %v866
        %2670 = vmatpush1.msra.mxu0 %v865
        %2671 = vmatprep.subr.mxu0 %v870
        %2672 = vmatpush1.msra.mxu0 %v869
        %2673 = vmatprep.subr.mxu0 %v874
        %2674 = vmatpush1.msra.mxu0 %v873
        %2675 = vmatprep.subr.mxu0 %v878
        %2676 = vmatpush1.msra.mxu0 %v877
        %2677 = vmatprep.subr.mxu0 %v882
        %2678 = vmatpush1.msra.mxu0 %v881
        %2679 = vmatprep.subr.mxu0 %v886
        %2680 = vmatpush1.msra.mxu0 %v885
        %2681 = vmatprep.subr.mxu0 %v890
        %2682 = vmatpush1.msra.mxu0 %v889
        %2683 = vmatprep.subr.mxu0 %v894
        %2684 = vmatpush1.msra.mxu0 %v893
        %2685 = vmatprep.subr.mxu0 %v898
        %2686 = vmatpush1.msra.mxu0 %v897
        %2687 = vmatprep.subr.mxu0 %v902
        %2688 = vmatpush1.msra.mxu0 %v901
        %2689 = vmatprep.subr.mxu0 %v906
        %2690 = vmatpush1.msra.mxu0 %v905
        %2691 = vmatprep.subr.mxu0 %v910
        %2692 = vmatpush1.msra.mxu0 %v909
        %2693 = vmatprep.subr.mxu0 %v914
        %2694 = vmatpush1.msra.mxu0 %v913
        %2695 = vmatprep.subr.mxu0 %v918
        %2696 = vmatpush1.msra.mxu0 %v917
        %2697 = vmatprep.subr.mxu0 %v922
        %2698 = vmatpush1.msra.mxu0 %v921
        %2699 = vmatprep.subr.mxu0 %v926
        %2700 = vmatpush1.msra.mxu0 %v925
        %2701 = vmatprep.subr.mxu0 %v930
        %2702 = vmatpush1.msra.mxu0 %v929
        %2703 = vmatprep.subr.mxu0 %v934
        %2704 = vmatpush1.msra.mxu0 %v933
        %2705 = vmatprep.subr.mxu0 %v938
        %2706 = vmatpush1.msra.mxu0 %v937
        %2707 = vmatprep.subr.mxu0 %v942
        %2708 = vmatpush1.msra.mxu0 %v941
        %2709 = vmatprep.subr.mxu0 %v946
        %2710 = vmatpush1.msra.mxu0 %v945
        %2711 = vmatprep.subr.mxu0 %v950
        %2712 = vmatpush1.msra.mxu0 %v949
        %2713 = vmatprep.subr.mxu0 %v954
        %2714 = vmatpush1.msra.mxu0 %v953
        %2715 = vmatprep.subr.mxu0 %v958
        %2716 = vmatpush1.msra.mxu0 %v957
        %2717 = vmatprep.mubr.f32.mxu0 %v294
        %2718 = vmatmul.mubr.f32.gmra.mrb[0].mxu0 %v293
        %v2719 = vpop.f32.mrb[0].mxu0
        %v2720 = vadd.f32 %v2649, %v2719
        %v2721 = vpop.f32.mrb[0].mxu0
        %v2722 = vadd.f32 %v2651, %v2721
        %2723 = vdwg.mxu0
        %2724 = vmatprep.subr.mxu0 %v962
        %2725 = vmatpush1.msra.mxu0 %v961
        %2726 = vmatprep.subr.mxu0 %v966
        %2727 = vmatpush1.msra.mxu0 %v965
        %2728 = vmatprep.subr.mxu0 %v970
        %2729 = vmatpush1.msra.mxu0 %v969
        %2730 = vmatprep.subr.mxu0 %v974
        %2731 = vmatpush1.msra.mxu0 %v973
        %2732 = vmatprep.subr.mxu0 %v978
        %2733 = vmatpush1.msra.mxu0 %v977
        %2734 = vmatprep.subr.mxu0 %v982
        %2735 = vmatpush1.msra.mxu0 %v981
        %2736 = vmatprep.subr.mxu0 %v986
        %2737 = vmatpush1.msra.mxu0 %v985
        %2738 = vmatprep.subr.mxu0 %v990
        %2739 = vmatpush1.msra.mxu0 %v989
        %2740 = vmatprep.subr.mxu0 %v994
        %2741 = vmatpush1.msra.mxu0 %v993
        %2742 = vmatprep.subr.mxu0 %v998
        %2743 = vmatpush1.msra.mxu0 %v997
        %2744 = vmatprep.subr.mxu0 %v1002
        %2745 = vmatpush1.msra.mxu0 %v1001
        %2746 = vmatprep.subr.mxu0 %v1006
        %2747 = vmatpush1.msra.mxu0 %v1005
        %2748 = vmatprep.subr.mxu0 %v1010
        %2749 = vmatpush1.msra.mxu0 %v1009
        %2750 = vmatprep.subr.mxu0 %v1014
        %2751 = vmatpush1.msra.mxu0 %v1013
        %2752 = vmatprep.subr.mxu0 %v1018
        %2753 = vmatpush1.msra.mxu0 %v1017
        %2754 = vmatprep.subr.mxu0 %v1022
        %2755 = vmatpush1.msra.mxu0 %v1021
        %2756 = vmatprep.subr.mxu0 %v1026
        %2757 = vmatpush1.msra.mxu0 %v1025
        %2758 = vmatprep.subr.mxu0 %v1030
        %2759 = vmatpush1.msra.mxu0 %v1029
        %2760 = vmatprep.subr.mxu0 %v1034
        %2761 = vmatpush1.msra.mxu0 %v1033
        %2762 = vmatprep.subr.mxu0 %v1038
        %2763 = vmatpush1.msra.mxu0 %v1037
        %2764 = vmatprep.subr.mxu0 %v1042
        %2765 = vmatpush1.msra.mxu0 %v1041
        %2766 = vmatprep.subr.mxu0 %v1046
        %2767 = vmatpush1.msra.mxu0 %v1045
        %2768 = vmatprep.subr.mxu0 %v1050
        %2769 = vmatpush1.msra.mxu0 %v1049
        %2770 = vmatprep.subr.mxu0 %v1054
        %2771 = vmatpush1.msra.mxu0 %v1053
        %2772 = vmatprep.subr.mxu0 %v1058
        %2773 = vmatpush1.msra.mxu0 %v1057
        %2774 = vmatprep.subr.mxu0 %v1062
        %2775 = vmatpush1.msra.mxu0 %v1061
        %2776 = vmatprep.subr.mxu0 %v1066
        %2777 = vmatpush1.msra.mxu0 %v1065
        %2778 = vmatprep.subr.mxu0 %v1070
        %2779 = vmatpush1.msra.mxu0 %v1069
        %2780 = vmatprep.subr.mxu0 %v1074
        %2781 = vmatpush1.msra.mxu0 %v1073
        %2782 = vmatprep.subr.mxu0 %v1078
        %2783 = vmatpush1.msra.mxu0 %v1077
        %2784 = vmatprep.subr.mxu0 %v1082
        %2785 = vmatpush1.msra.mxu0 %v1081
        %2786 = vmatprep.subr.mxu0 %v1086
        %2787 = vmatpush1.msra.mxu0 %v1085
        %2788 = vmatprep.mubr.f32.mxu0 %v296
        %2789 = vmatmul.mubr.f32.gmra.mrb[0].mxu0 %v295
        %v2790 = vpop.f32.mrb[0].mxu0
        %v2791 = vadd.f32 %v2720, %v2790
        %v2792 = vpop.f32.mrb[0].mxu0
        %v2793 = vadd.f32 %v2722, %v2792
        %2794 = vdwg.mxu0
        %2795 = vmatprep.subr.mxu0 %v1090
        %2796 = vmatpush1.msra.mxu0 %v1089
        %2797 = vmatprep.subr.mxu0 %v1094
        %2798 = vmatpush1.msra.mxu0 %v1093
        %2799 = vmatprep.subr.mxu0 %v1098
        %2800 = vmatpush1.msra.mxu0 %v1097
        %2801 = vmatprep.subr.mxu0 %v1102
        %2802 = vmatpush1.msra.mxu0 %v1101
        %2803 = vmatprep.subr.mxu0 %v1106
        %2804 = vmatpush1.msra.mxu0 %v1105
        %2805 = vmatprep.subr.mxu0 %v1110
        %2806 = vmatpush1.msra.mxu0 %v1109
        %2807 = vmatprep.subr.mxu0 %v1114
        %2808 = vmatpush1.msra.mxu0 %v1113
        %2809 = vmatprep.subr.mxu0 %v1118
        %2810 = vmatpush1.msra.mxu0 %v1117
        %2811 = vmatprep.subr.mxu0 %v1122
        %2812 = vmatpush1.msra.mxu0 %v1121
        %2813 = vmatprep.subr.mxu0 %v1126
        %2814 = vmatpush1.msra.mxu0 %v1125
        %2815 = vmatprep.subr.mxu0 %v1130
        %2816 = vmatpush1.msra.mxu0 %v1129
        %2817 = vmatprep.subr.mxu0 %v1134
        %2818 = vmatpush1.msra.mxu0 %v1133
        %2819 = vmatprep.subr.mxu0 %v1138
        %2820 = vmatpush1.msra.mxu0 %v1137
        %2821 = vmatprep.subr.mxu0 %v1142
        %2822 = vmatpush1.msra.mxu0 %v1141
        %2823 = vmatprep.subr.mxu0 %v1146
        %2824 = vmatpush1.msra.mxu0 %v1145
        %2825 = vmatprep.subr.mxu0 %v1150
        %2826 = vmatpush1.msra.mxu0 %v1149
        %2827 = vmatprep.subr.mxu0 %v1154
        %2828 = vmatpush1.msra.mxu0 %v1153
        %2829 = vmatprep.subr.mxu0 %v1158
        %2830 = vmatpush1.msra.mxu0 %v1157
        %2831 = vmatprep.subr.mxu0 %v1162
        %2832 = vmatpush1.msra.mxu0 %v1161
        %2833 = vmatprep.subr.mxu0 %v1166
        %2834 = vmatpush1.msra.mxu0 %v1165
        %2835 = vmatprep.subr.mxu0 %v1170
        %2836 = vmatpush1.msra.mxu0 %v1169
        %2837 = vmatprep.subr.mxu0 %v1174
        %2838 = vmatpush1.msra.mxu0 %v1173
        %2839 = vmatprep.subr.mxu0 %v1178
        %2840 = vmatpush1.msra.mxu0 %v1177
        %2841 = vmatprep.subr.mxu0 %v1182
        %2842 = vmatpush1.msra.mxu0 %v1181
        %2843 = vmatprep.subr.mxu0 %v1186
        %2844 = vmatpush1.msra.mxu0 %v1185
        %2845 = vmatprep.subr.mxu0 %v1190
        %2846 = vmatpush1.msra.mxu0 %v1189
        %2847 = vmatprep.subr.mxu0 %v1194
        %2848 = vmatpush1.msra.mxu0 %v1193
        %2849 = vmatprep.subr.mxu0 %v1198
        %2850 = vmatpush1.msra.mxu0 %v1197
        %2851 = vmatprep.subr.mxu0 %v1202
        %2852 = vmatpush1.msra.mxu0 %v1201
        %2853 = vmatprep.subr.mxu0 %v1206
        %2854 = vmatpush1.msra.mxu0 %v1205
        %2855 = vmatprep.subr.mxu0 %v1210
        %2856 = vmatpush1.msra.mxu0 %v1209
        %2857 = vmatprep.subr.mxu0 %v1214
        %2858 = vmatpush1.msra.mxu0 %v1213
        %2859 = vmatprep.mubr.f32.mxu0 %v298
        %2860 = vmatmul.mubr.f32.gmra.mrb[0].mxu0 %v297
        %v2861 = vpop.f32.mrb[0].mxu0
        %v2862 = vadd.f32 %v2791, %v2861
        %v2863 = vpop.f32.mrb[0].mxu0
        %v2864 = vadd.f32 %v2793, %v2863
        %2865 = vdwg.mxu0
        %2866 = vmatprep.subr.mxu0 %v1218
        %2867 = vmatpush1.msra.mxu0 %v1217
        %2868 = vmatprep.subr.mxu0 %v1222
        %2869 = vmatpush1.msra.mxu0 %v1221
        %2870 = vmatprep.subr.mxu0 %v1226
        %2871 = vmatpush1.msra.mxu0 %v1225
        %2872 = vmatprep.subr.mxu0 %v1230
        %2873 = vmatpush1.msra.mxu0 %v1229
        %2874 = vmatprep.subr.mxu0 %v1234
        %2875 = vmatpush1.msra.mxu0 %v1233
        %2876 = vmatprep.subr.mxu0 %v1238
        %2877 = vmatpush1.msra.mxu0 %v1237
        %2878 = vmatprep.subr.mxu0 %v1242
        %2879 = vmatpush1.msra.mxu0 %v1241
        %2880 = vmatprep.subr.mxu0 %v1246
        %2881 = vmatpush1.msra.mxu0 %v1245
        %2882 = vmatprep.subr.mxu0 %v1250
        %2883 = vmatpush1.msra.mxu0 %v1249
        %2884 = vmatprep.subr.mxu0 %v1254
        %2885 = vmatpush1.msra.mxu0 %v1253
        %2886 = vmatprep.subr.mxu0 %v1258
        %2887 = vmatpush1.msra.mxu0 %v1257
        %2888 = vmatprep.subr.mxu0 %v1262
        %2889 = vmatpush1.msra.mxu0 %v1261
        %2890 = vmatprep.subr.mxu0 %v1266
        %2891 = vmatpush1.msra.mxu0 %v1265
        %2892 = vmatprep.subr.mxu0 %v1270
        %2893 = vmatpush1.msra.mxu0 %v1269
        %2894 = vmatprep.subr.mxu0 %v1274
        %2895 = vmatpush1.msra.mxu0 %v1273
        %2896 = vmatprep.subr.mxu0 %v1278
        %2897 = vmatpush1.msra.mxu0 %v1277
        %2898 = vmatprep.subr.mxu0 %v1282
        %2899 = vmatpush1.msra.mxu0 %v1281
        %2900 = vmatprep.subr.mxu0 %v1286
        %2901 = vmatpush1.msra.mxu0 %v1285
        %2902 = vmatprep.subr.mxu0 %v1290
        %2903 = vmatpush1.msra.mxu0 %v1289
        %2904 = vmatprep.subr.mxu0 %v1294
        %2905 = vmatpush1.msra.mxu0 %v1293
        %2906 = vmatprep.subr.mxu0 %v1298
        %2907 = vmatpush1.msra.mxu0 %v1297
        %2908 = vmatprep.subr.mxu0 %v1302
        %2909 = vmatpush1.msra.mxu0 %v1301
        %2910 = vmatprep.subr.mxu0 %v1306
        %2911 = vmatpush1.msra.mxu0 %v1305
        %2912 = vmatprep.subr.mxu0 %v1310
        %2913 = vmatpush1.msra.mxu0 %v1309
        %2914 = vmatprep.subr.mxu0 %v1314
        %2915 = vmatpush1.msra.mxu0 %v1313
        %2916 = vmatprep.subr.mxu0 %v1318
        %2917 = vmatpush1.msra.mxu0 %v1317
        %2918 = vmatprep.subr.mxu0 %v1322
        %2919 = vmatpush1.msra.mxu0 %v1321
        %2920 = vmatprep.subr.mxu0 %v1326
        %2921 = vmatpush1.msra.mxu0 %v1325
        %2922 = vmatprep.subr.mxu0 %v1330
        %2923 = vmatpush1.msra.mxu0 %v1329
        %2924 = vmatprep.subr.mxu0 %v1334
        %2925 = vmatpush1.msra.mxu0 %v1333
        %2926 = vmatprep.subr.mxu0 %v1338
        %2927 = vmatpush1.msra.mxu0 %v1337
        %2928 = vmatprep.subr.mxu0 %v1342
        %2929 = vmatpush1.msra.mxu0 %v1341
        %2930 = vmatprep.mubr.f32.mxu0 %v300
        %2931 = vmatmul.mubr.f32.gmra.mrb[0].mxu0 %v299
        %v2932 = vpop.f32.mrb[0].mxu0
        %v2933 = vadd.f32 %v2862, %v2932
        %v2934 = vpop.f32.mrb[0].mxu0
        %v2935 = vadd.f32 %v2864, %v2934
        %2936 = vdwg.mxu0
        %2937 = vmatprep.subr.mxu0 %v1346
        %2938 = vmatpush1.msra.mxu0 %v1345
        %2939 = vmatprep.subr.mxu0 %v1350
        %2940 = vmatpush1.msra.mxu0 %v1349
        %2941 = vmatprep.subr.mxu0 %v1354
        %2942 = vmatpush1.msra.mxu0 %v1353
        %2943 = vmatprep.subr.mxu0 %v1358
        %2944 = vmatpush1.msra.mxu0 %v1357
        %2945 = vmatprep.subr.mxu0 %v1362
        %2946 = vmatpush1.msra.mxu0 %v1361
        %2947 = vmatprep.subr.mxu0 %v1366
        %2948 = vmatpush1.msra.mxu0 %v1365
        %2949 = vmatprep.subr.mxu0 %v1370
        %2950 = vmatpush1.msra.mxu0 %v1369
        %2951 = vmatprep.subr.mxu0 %v1374
        %2952 = vmatpush1.msra.mxu0 %v1373
        %2953 = vmatprep.subr.mxu0 %v1378
        %2954 = vmatpush1.msra.mxu0 %v1377
        %2955 = vmatprep.subr.mxu0 %v1382
        %2956 = vmatpush1.msra.mxu0 %v1381
        %2957 = vmatprep.subr.mxu0 %v1386
        %2958 = vmatpush1.msra.mxu0 %v1385
        %2959 = vmatprep.subr.mxu0 %v1390
        %2960 = vmatpush1.msra.mxu0 %v1389
        %2961 = vmatprep.subr.mxu0 %v1394
        %2962 = vmatpush1.msra.mxu0 %v1393
        %2963 = vmatprep.subr.mxu0 %v1398
        %2964 = vmatpush1.msra.mxu0 %v1397
        %2965 = vmatprep.subr.mxu0 %v1402
        %2966 = vmatpush1.msra.mxu0 %v1401
        %2967 = vmatprep.subr.mxu0 %v1406
        %2968 = vmatpush1.msra.mxu0 %v1405
        %2969 = vmatprep.subr.mxu0 %v1410
        %2970 = vmatpush1.msra.mxu0 %v1409
        %2971 = vmatprep.subr.mxu0 %v1414
        %2972 = vmatpush1.msra.mxu0 %v1413
        %2973 = vmatprep.subr.mxu0 %v1418
        %2974 = vmatpush1.msra.mxu0 %v1417
        %2975 = vmatprep.subr.mxu0 %v1422
        %2976 = vmatpush1.msra.mxu0 %v1421
        %2977 = vmatprep.subr.mxu0 %v1426
        %2978 = vmatpush1.msra.mxu0 %v1425
        %2979 = vmatprep.subr.mxu0 %v1430
        %2980 = vmatpush1.msra.mxu0 %v1429
        %2981 = vmatprep.subr.mxu0 %v1434
        %2982 = vmatpush1.msra.mxu0 %v1433
        %2983 = vmatprep.subr.mxu0 %v1438
        %2984 = vmatpush1.msra.mxu0 %v1437
        %2985 = vmatprep.subr.mxu0 %v1442
        %2986 = vmatpush1.msra.mxu0 %v1441
        %2987 = vmatprep.subr.mxu0 %v1446
        %2988 = vmatpush1.msra.mxu0 %v1445
        %2989 = vmatprep.subr.mxu0 %v1450
        %2990 = vmatpush1.msra.mxu0 %v1449
        %2991 = vmatprep.subr.mxu0 %v1454
        %2992 = vmatpush1.msra.mxu0 %v1453
        %2993 = vmatprep.subr.mxu0 %v1458
        %2994 = vmatpush1.msra.mxu0 %v1457
        %2995 = vmatprep.subr.mxu0 %v1462
        %2996 = vmatpush1.msra.mxu0 %v1461
        %2997 = vmatprep.subr.mxu0 %v1466
        %2998 = vmatpush1.msra.mxu0 %v1465
        %2999 = vmatprep.subr.mxu0 %v1470
        %3000 = vmatpush1.msra.mxu0 %v1469
        %3001 = vmatprep.mubr.f32.mxu0 %v302
        %3002 = vmatmul.mubr.f32.gmra.mrb[0].mxu0 %v301
        %v3003 = vpop.f32.mrb[0].mxu0
        %v3004 = vadd.f32 %v2933, %v3003
        %v3005 = vpop.f32.mrb[0].mxu0
        %v3006 = vadd.f32 %v2935, %v3005
        %3007 = vdwg.mxu0
        %3008 = vmatprep.subr.mxu0 %v1474
        %3009 = vmatpush1.msra.mxu0 %v1473
        %3010 = vmatprep.subr.mxu0 %v1478
        %3011 = vmatpush1.msra.mxu0 %v1477
        %3012 = vmatprep.subr.mxu0 %v1482
        %3013 = vmatpush1.msra.mxu0 %v1481
        %3014 = vmatprep.subr.mxu0 %v1486
        %3015 = vmatpush1.msra.mxu0 %v1485
        %3016 = vmatprep.subr.mxu0 %v1490
        %3017 = vmatpush1.msra.mxu0 %v1489
        %3018 = vmatprep.subr.mxu0 %v1494
        %3019 = vmatpush1.msra.mxu0 %v1493
        %3020 = vmatprep.subr.mxu0 %v1498
        %3021 = vmatpush1.msra.mxu0 %v1497
        %3022 = vmatprep.subr.mxu0 %v1502
        %3023 = vmatpush1.msra.mxu0 %v1501
        %3024 = vmatprep.subr.mxu0 %v1506
        %3025 = vmatpush1.msra.mxu0 %v1505
        %3026 = vmatprep.subr.mxu0 %v1510
        %3027 = vmatpush1.msra.mxu0 %v1509
        %3028 = vmatprep.subr.mxu0 %v1514
        %3029 = vmatpush1.msra.mxu0 %v1513
        %3030 = vmatprep.subr.mxu0 %v1518
        %3031 = vmatpush1.msra.mxu0 %v1517
        %3032 = vmatprep.subr.mxu0 %v1522
        %3033 = vmatpush1.msra.mxu0 %v1521
        %3034 = vmatprep.subr.mxu0 %v1526
        %3035 = vmatpush1.msra.mxu0 %v1525
        %3036 = vmatprep.subr.mxu0 %v1530
        %3037 = vmatpush1.msra.mxu0 %v1529
        %3038 = vmatprep.subr.mxu0 %v1534
        %3039 = vmatpush1.msra.mxu0 %v1533
        %3040 = vmatprep.subr.mxu0 %v1538
        %3041 = vmatpush1.msra.mxu0 %v1537
        %3042 = vmatprep.subr.mxu0 %v1542
        %3043 = vmatpush1.msra.mxu0 %v1541
        %3044 = vmatprep.subr.mxu0 %v1546
        %3045 = vmatpush1.msra.mxu0 %v1545
        %3046 = vmatprep.subr.mxu0 %v1550
        %3047 = vmatpush1.msra.mxu0 %v1549
        %3048 = vmatprep.subr.mxu0 %v1554
        %3049 = vmatpush1.msra.mxu0 %v1553
        %3050 = vmatprep.subr.mxu0 %v1558
        %3051 = vmatpush1.msra.mxu0 %v1557
        %3052 = vmatprep.subr.mxu0 %v1562
        %3053 = vmatpush1.msra.mxu0 %v1561
        %3054 = vmatprep.subr.mxu0 %v1566
        %3055 = vmatpush1.msra.mxu0 %v1565
        %3056 = vmatprep.subr.mxu0 %v1570
        %3057 = vmatpush1.msra.mxu0 %v1569
        %3058 = vmatprep.subr.mxu0 %v1574
        %3059 = vmatpush1.msra.mxu0 %v1573
        %3060 = vmatprep.subr.mxu0 %v1578
        %3061 = vmatpush1.msra.mxu0 %v1577
        %3062 = vmatprep.subr.mxu0 %v1582
        %3063 = vmatpush1.msra.mxu0 %v1581
        %3064 = vmatprep.subr.mxu0 %v1586
        %3065 = vmatpush1.msra.mxu0 %v1585
        %3066 = vmatprep.subr.mxu0 %v1590
        %3067 = vmatpush1.msra.mxu0 %v1589
        %3068 = vmatprep.subr.mxu0 %v1594
        %3069 = vmatpush1.msra.mxu0 %v1593
        %3070 = vmatprep.subr.mxu0 %v1598
        %3071 = vmatpush1.msra.mxu0 %v1597
        %3072 = vmatprep.mubr.f32.mxu0 %v304
        %3073 = vmatmul.mubr.f32.gmra.mrb[0].mxu0 %v303
        %v3074 = vpop.f32.mrb[0].mxu0
        %v3075 = vadd.f32 %v3004, %v3074
        %v3076 = vpop.f32.mrb[0].mxu0
        %v3077 = vadd.f32 %v3006, %v3076
        %3078 = vdwg.mxu0
        %3079 = vmatprep.subr.mxu0 %v1602
        %3080 = vmatpush1.msra.mxu0 %v1601
        %3081 = vmatprep.subr.mxu0 %v1606
        %3082 = vmatpush1.msra.mxu0 %v1605
        %3083 = vmatprep.subr.mxu0 %v1610
        %3084 = vmatpush1.msra.mxu0 %v1609
        %3085 = vmatprep.subr.mxu0 %v1614
        %3086 = vmatpush1.msra.mxu0 %v1613
        %3087 = vmatprep.subr.mxu0 %v1618
        %3088 = vmatpush1.msra.mxu0 %v1617
        %3089 = vmatprep.subr.mxu0 %v1622
        %3090 = vmatpush1.msra.mxu0 %v1621
        %3091 = vmatprep.subr.mxu0 %v1626
        %3092 = vmatpush1.msra.mxu0 %v1625
        %3093 = vmatprep.subr.mxu0 %v1630
        %3094 = vmatpush1.msra.mxu0 %v1629
        %3095 = vmatprep.subr.mxu0 %v1634
        %3096 = vmatpush1.msra.mxu0 %v1633
        %3097 = vmatprep.subr.mxu0 %v1638
        %3098 = vmatpush1.msra.mxu0 %v1637
        %3099 = vmatprep.subr.mxu0 %v1642
        %3100 = vmatpush1.msra.mxu0 %v1641
        %3101 = vmatprep.subr.mxu0 %v1646
        %3102 = vmatpush1.msra.mxu0 %v1645
        %3103 = vmatprep.subr.mxu0 %v1650
        %3104 = vmatpush1.msra.mxu0 %v1649
        %3105 = vmatprep.subr.mxu0 %v1654
        %3106 = vmatpush1.msra.mxu0 %v1653
        %3107 = vmatprep.subr.mxu0 %v1658
        %3108 = vmatpush1.msra.mxu0 %v1657
        %3109 = vmatprep.subr.mxu0 %v1662
        %3110 = vmatpush1.msra.mxu0 %v1661
        %3111 = vmatprep.subr.mxu0 %v1666
        %3112 = vmatpush1.msra.mxu0 %v1665
        %3113 = vmatprep.subr.mxu0 %v1670
        %3114 = vmatpush1.msra.mxu0 %v1669
        %3115 = vmatprep.subr.mxu0 %v1674
        %3116 = vmatpush1.msra.mxu0 %v1673
        %3117 = vmatprep.subr.mxu0 %v1678
        %3118 = vmatpush1.msra.mxu0 %v1677
        %3119 = vmatprep.subr.mxu0 %v1682
        %3120 = vmatpush1.msra.mxu0 %v1681
        %3121 = vmatprep.subr.mxu0 %v1686
        %3122 = vmatpush1.msra.mxu0 %v1685
        %3123 = vmatprep.subr.mxu0 %v1690
        %3124 = vmatpush1.msra.mxu0 %v1689
        %3125 = vmatprep.subr.mxu0 %v1694
        %3126 = vmatpush1.msra.mxu0 %v1693
        %3127 = vmatprep.subr.mxu0 %v1698
        %3128 = vmatpush1.msra.mxu0 %v1697
        %3129 = vmatprep.subr.mxu0 %v1702
        %3130 = vmatpush1.msra.mxu0 %v1701
        %3131 = vmatprep.subr.mxu0 %v1706
        %3132 = vmatpush1.msra.mxu0 %v1705
        %3133 = vmatprep.subr.mxu0 %v1710
        %3134 = vmatpush1.msra.mxu0 %v1709
        %3135 = vmatprep.subr.mxu0 %v1714
        %3136 = vmatpush1.msra.mxu0 %v1713
        %3137 = vmatprep.subr.mxu0 %v1718
        %3138 = vmatpush1.msra.mxu0 %v1717
        %3139 = vmatprep.subr.mxu0 %v1722
        %3140 = vmatpush1.msra.mxu0 %v1721
        %3141 = vmatprep.subr.mxu0 %v1726
        %3142 = vmatpush1.msra.mxu0 %v1725
        %3143 = vmatprep.mubr.f32.mxu0 %v306
        %3144 = vmatmul.mubr.f32.gmra.mrb[0].mxu0 %v305
        %v3145 = vpop.f32.mrb[0].mxu0
        %v3146 = vadd.f32 %v3075, %v3145
        %v3147 = vpop.f32.mrb[0].mxu0
        %v3148 = vadd.f32 %v3077, %v3147
        %3149 = vdwg.mxu0
        %3150 = vmatprep.subr.mxu0 %v1730
        %3151 = vmatpush1.msra.mxu0 %v1729
        %3152 = vmatprep.subr.mxu0 %v1734
        %3153 = vmatpush1.msra.mxu0 %v1733
        %3154 = vmatprep.subr.mxu0 %v1738
        %3155 = vmatpush1.msra.mxu0 %v1737
        %3156 = vmatprep.subr.mxu0 %v1742
        %3157 = vmatpush1.msra.mxu0 %v1741
        %3158 = vmatprep.subr.mxu0 %v1746
        %3159 = vmatpush1.msra.mxu0 %v1745
        %3160 = vmatprep.subr.mxu0 %v1750
        %3161 = vmatpush1.msra.mxu0 %v1749
        %3162 = vmatprep.subr.mxu0 %v1754
        %3163 = vmatpush1.msra.mxu0 %v1753
        %3164 = vmatprep.subr.mxu0 %v1758
        %3165 = vmatpush1.msra.mxu0 %v1757
        %3166 = vmatprep.subr.mxu0 %v1762
        %3167 = vmatpush1.msra.mxu0 %v1761
        %3168 = vmatprep.subr.mxu0 %v1766
        %3169 = vmatpush1.msra.mxu0 %v1765
        %3170 = vmatprep.subr.mxu0 %v1770
        %3171 = vmatpush1.msra.mxu0 %v1769
        %3172 = vmatprep.subr.mxu0 %v1774
        %3173 = vmatpush1.msra.mxu0 %v1773
        %3174 = vmatprep.subr.mxu0 %v1778
        %3175 = vmatpush1.msra.mxu0 %v1777
        %3176 = vmatprep.subr.mxu0 %v1782
        %3177 = vmatpush1.msra.mxu0 %v1781
        %3178 = vmatprep.subr.mxu0 %v1786
        %3179 = vmatpush1.msra.mxu0 %v1785
        %3180 = vmatprep.subr.mxu0 %v1790
        %3181 = vmatpush1.msra.mxu0 %v1789
        %3182 = vmatprep.subr.mxu0 %v1794
        %3183 = vmatpush1.msra.mxu0 %v1793
        %3184 = vmatprep.subr.mxu0 %v1798
        %3185 = vmatpush1.msra.mxu0 %v1797
        %3186 = vmatprep.subr.mxu0 %v1802
        %3187 = vmatpush1.msra.mxu0 %v1801
        %3188 = vmatprep.subr.mxu0 %v1806
        %3189 = vmatpush1.msra.mxu0 %v1805
        %3190 = vmatprep.subr.mxu0 %v1810
        %3191 = vmatpush1.msra.mxu0 %v1809
        %3192 = vmatprep.subr.mxu0 %v1814
        %3193 = vmatpush1.msra.mxu0 %v1813
        %3194 = vmatprep.subr.mxu0 %v1818
        %3195 = vmatpush1.msra.mxu0 %v1817
        %3196 = vmatprep.subr.mxu0 %v1822
        %3197 = vmatpush1.msra.mxu0 %v1821
        %3198 = vmatprep.subr.mxu0 %v1826
        %3199 = vmatpush1.msra.mxu0 %v1825
        %3200 = vmatprep.subr.mxu0 %v1830
        %3201 = vmatpush1.msra.mxu0 %v1829
        %3202 = vmatprep.subr.mxu0 %v1834
        %3203 = vmatpush1.msra.mxu0 %v1833
        %3204 = vmatprep.subr.mxu0 %v1838
        %3205 = vmatpush1.msra.mxu0 %v1837
        %3206 = vmatprep.subr.mxu0 %v1842
        %3207 = vmatpush1.msra.mxu0 %v1841
        %3208 = vmatprep.subr.mxu0 %v1846
        %3209 = vmatpush1.msra.mxu0 %v1845
        %3210 = vmatprep.subr.mxu0 %v1850
        %3211 = vmatpush1.msra.mxu0 %v1849
        %3212 = vmatprep.subr.mxu0 %v1854
        %3213 = vmatpush1.msra.mxu0 %v1853
        %3214 = vmatprep.mubr.f32.mxu0 %v308
        %3215 = vmatmul.mubr.f32.gmra.mrb[0].mxu0 %v307
        %v3216 = vpop.f32.mrb[0].mxu0
        %v3217 = vadd.f32 %v3146, %v3216
        %v3218 = vpop.f32.mrb[0].mxu0
        %v3219 = vadd.f32 %v3148, %v3218
        %3220 = vdwg.mxu0
        %3221 = vmatprep.subr.mxu0 %v1858
        %3222 = vmatpush1.msra.mxu0 %v1857
        %3223 = vmatprep.subr.mxu0 %v1862
        %3224 = vmatpush1.msra.mxu0 %v1861
        %3225 = vmatprep.subr.mxu0 %v1866
        %3226 = vmatpush1.msra.mxu0 %v1865
        %3227 = vmatprep.subr.mxu0 %v1870
        %3228 = vmatpush1.msra.mxu0 %v1869
        %3229 = vmatprep.subr.mxu0 %v1874
        %3230 = vmatpush1.msra.mxu0 %v1873
        %3231 = vmatprep.subr.mxu0 %v1878
        %3232 = vmatpush1.msra.mxu0 %v1877
        %3233 = vmatprep.subr.mxu0 %v1882
        %3234 = vmatpush1.msra.mxu0 %v1881
        %3235 = vmatprep.subr.mxu0 %v1886
        %3236 = vmatpush1.msra.mxu0 %v1885
        %3237 = vmatprep.subr.mxu0 %v1890
        %3238 = vmatpush1.msra.mxu0 %v1889
        %3239 = vmatprep.subr.mxu0 %v1894
        %3240 = vmatpush1.msra.mxu0 %v1893
        %3241 = vmatprep.subr.mxu0 %v1898
        %3242 = vmatpush1.msra.mxu0 %v1897
        %3243 = vmatprep.subr.mxu0 %v1902
        %3244 = vmatpush1.msra.mxu0 %v1901
        %3245 = vmatprep.subr.mxu0 %v1906
        %3246 = vmatpush1.msra.mxu0 %v1905
        %3247 = vmatprep.subr.mxu0 %v1910
        %3248 = vmatpush1.msra.mxu0 %v1909
        %3249 = vmatprep.subr.mxu0 %v1914
        %3250 = vmatpush1.msra.mxu0 %v1913
        %3251 = vmatprep.subr.mxu0 %v1918
        %3252 = vmatpush1.msra.mxu0 %v1917
        %3253 = vmatprep.subr.mxu0 %v1922
        %3254 = vmatpush1.msra.mxu0 %v1921
        %3255 = vmatprep.subr.mxu0 %v1926
        %3256 = vmatpush1.msra.mxu0 %v1925
        %3257 = vmatprep.subr.mxu0 %v1930
        %3258 = vmatpush1.msra.mxu0 %v1929
        %3259 = vmatprep.subr.mxu0 %v1934
        %3260 = vmatpush1.msra.mxu0 %v1933
        %3261 = vmatprep.subr.mxu0 %v1938
        %3262 = vmatpush1.msra.mxu0 %v1937
        %3263 = vmatprep.subr.mxu0 %v1942
        %3264 = vmatpush1.msra.mxu0 %v1941
        %3265 = vmatprep.subr.mxu0 %v1946
        %3266 = vmatpush1.msra.mxu0 %v1945
        %3267 = vmatprep.subr.mxu0 %v1950
        %3268 = vmatpush1.msra.mxu0 %v1949
        %3269 = vmatprep.subr.mxu0 %v1954
        %3270 = vmatpush1.msra.mxu0 %v1953
        %3271 = vmatprep.subr.mxu0 %v1958
        %3272 = vmatpush1.msra.mxu0 %v1957
        %3273 = vmatprep.subr.mxu0 %v1962
        %3274 = vmatpush1.msra.mxu0 %v1961
        %3275 = vmatprep.subr.mxu0 %v1966
        %3276 = vmatpush1.msra.mxu0 %v1965
        %3277 = vmatprep.subr.mxu0 %v1970
        %3278 = vmatpush1.msra.mxu0 %v1969
        %3279 = vmatprep.subr.mxu0 %v1974
        %3280 = vmatpush1.msra.mxu0 %v1973
        %3281 = vmatprep.subr.mxu0 %v1978
        %3282 = vmatpush1.msra.mxu0 %v1977
        %3283 = vmatprep.subr.mxu0 %v1982
        %3284 = vmatpush1.msra.mxu0 %v1981
        %3285 = vmatprep.mubr.f32.mxu0 %v310
        %3286 = vmatmul.mubr.f32.gmra.mrb[0].mxu0 %v309
        %v3287 = vpop.f32.mrb[0].mxu0
        %v3288 = vadd.f32 %v3217, %v3287
        %v3289 = vpop.f32.mrb[0].mxu0
        %v3290 = vadd.f32 %v3219, %v3289
        %3291 = vdwg.mxu0
        %3292 = vmatprep.subr.mxu0 %v1986
        %3293 = vmatpush1.msra.mxu0 %v1985
        %3294 = vmatprep.subr.mxu0 %v1990
        %3295 = vmatpush1.msra.mxu0 %v1989
        %3296 = vmatprep.subr.mxu0 %v1994
        %3297 = vmatpush1.msra.mxu0 %v1993
        %3298 = vmatprep.subr.mxu0 %v1998
        %3299 = vmatpush1.msra.mxu0 %v1997
        %3300 = vmatprep.subr.mxu0 %v2002
        %3301 = vmatpush1.msra.mxu0 %v2001
        %3302 = vmatprep.subr.mxu0 %v2006
        %3303 = vmatpush1.msra.mxu0 %v2005
        %3304 = vmatprep.subr.mxu0 %v2010
        %3305 = vmatpush1.msra.mxu0 %v2009
        %3306 = vmatprep.subr.mxu0 %v2014
        %3307 = vmatpush1.msra.mxu0 %v2013
        %3308 = vmatprep.subr.mxu0 %v2018
        %3309 = vmatpush1.msra.mxu0 %v2017
        %3310 = vmatprep.subr.mxu0 %v2022
        %3311 = vmatpush1.msra.mxu0 %v2021
        %3312 = vmatprep.subr.mxu0 %v2026
        %3313 = vmatpush1.msra.mxu0 %v2025
        %3314 = vmatprep.subr.mxu0 %v2030
        %3315 = vmatpush1.msra.mxu0 %v2029
        %3316 = vmatprep.subr.mxu0 %v2034
        %3317 = vmatpush1.msra.mxu0 %v2033
        %3318 = vmatprep.subr.mxu0 %v2038
        %3319 = vmatpush1.msra.mxu0 %v2037
        %3320 = vmatprep.subr.mxu0 %v2042
        %3321 = vmatpush1.msra.mxu0 %v2041
        %3322 = vmatprep.subr.mxu0 %v2046
        %3323 = vmatpush1.msra.mxu0 %v2045
        %3324 = vmatprep.subr.mxu0 %v2050
        %3325 = vmatpush1.msra.mxu0 %v2049
        %3326 = vmatprep.subr.mxu0 %v2054
        %3327 = vmatpush1.msra.mxu0 %v2053
        %3328 = vmatprep.subr.mxu0 %v2058
        %3329 = vmatpush1.msra.mxu0 %v2057
        %3330 = vmatprep.subr.mxu0 %v2062
        %3331 = vmatpush1.msra.mxu0 %v2061
        %3332 = vmatprep.subr.mxu0 %v2066
        %3333 = vmatpush1.msra.mxu0 %v2065
        %3334 = vmatprep.subr.mxu0 %v2070
        %3335 = vmatpush1.msra.mxu0 %v2069
        %3336 = vmatprep.subr.mxu0 %v2074
        %3337 = vmatpush1.msra.mxu0 %v2073
        %3338 = vmatprep.subr.mxu0 %v2078
        %3339 = vmatpush1.msra.mxu0 %v2077
        %3340 = vmatprep.subr.mxu0 %v2082
        %3341 = vmatpush1.msra.mxu0 %v2081
        %3342 = vmatprep.subr.mxu0 %v2086
        %3343 = vmatpush1.msra.mxu0 %v2085
        %3344 = vmatprep.subr.mxu0 %v2090
        %3345 = vmatpush1.msra.mxu0 %v2089
        %3346 = vmatprep.subr.mxu0 %v2094
        %3347 = vmatpush1.msra.mxu0 %v2093
        %3348 = vmatprep.subr.mxu0 %v2098
        %3349 = vmatpush1.msra.mxu0 %v2097
        %3350 = vmatprep.subr.mxu0 %v2102
        %3351 = vmatpush1.msra.mxu0 %v2101
        %3352 = vmatprep.subr.mxu0 %v2106
        %3353 = vmatpush1.msra.mxu0 %v2105
        %3354 = vmatprep.subr.mxu0 %v2110
        %3355 = vmatpush1.msra.mxu0 %v2109
        %3356 = vmatprep.mubr.f32.mxu0 %v312
        %3357 = vmatmul.mubr.f32.gmra.mrb[0].mxu0 %v311
        %v3358 = vpop.f32.mrb[0].mxu0
        %v3359 = vadd.f32 %v3288, %v3358
        %v3360 = vpop.f32.mrb[0].mxu0
        %v3361 = vadd.f32 %v3290, %v3360
        %3362 = vdwg.mxu0
        %3363 = vmatprep.subr.mxu0 %v2114
        %3364 = vmatpush1.msra.mxu0 %v2113
        %3365 = vmatprep.subr.mxu0 %v2118
        %3366 = vmatpush1.msra.mxu0 %v2117
        %3367 = vmatprep.subr.mxu0 %v2122
        %3368 = vmatpush1.msra.mxu0 %v2121
        %3369 = vmatprep.subr.mxu0 %v2126
        %3370 = vmatpush1.msra.mxu0 %v2125
        %3371 = vmatprep.subr.mxu0 %v2130
        %3372 = vmatpush1.msra.mxu0 %v2129
        %3373 = vmatprep.subr.mxu0 %v2134
        %3374 = vmatpush1.msra.mxu0 %v2133
        %3375 = vmatprep.subr.mxu0 %v2138
        %3376 = vmatpush1.msra.mxu0 %v2137
        %3377 = vmatprep.subr.mxu0 %v2142
        %3378 = vmatpush1.msra.mxu0 %v2141
        %3379 = vmatprep.subr.mxu0 %v2146
        %3380 = vmatpush1.msra.mxu0 %v2145
        %3381 = vmatprep.subr.mxu0 %v2150
        %3382 = vmatpush1.msra.mxu0 %v2149
        %3383 = vmatprep.subr.mxu0 %v2154
        %3384 = vmatpush1.msra.mxu0 %v2153
        %3385 = vmatprep.subr.mxu0 %v2158
        %3386 = vmatpush1.msra.mxu0 %v2157
        %3387 = vmatprep.subr.mxu0 %v2162
        %3388 = vmatpush1.msra.mxu0 %v2161
        %3389 = vmatprep.subr.mxu0 %v2166
        %3390 = vmatpush1.msra.mxu0 %v2165
        %3391 = vmatprep.subr.mxu0 %v2170
        %3392 = vmatpush1.msra.mxu0 %v2169
        %3393 = vmatprep.subr.mxu0 %v2174
        %3394 = vmatpush1.msra.mxu0 %v2173
        %3395 = vmatprep.subr.mxu0 %v2178
        %3396 = vmatpush1.msra.mxu0 %v2177
        %3397 = vmatprep.subr.mxu0 %v2182
        %3398 = vmatpush1.msra.mxu0 %v2181
        %3399 = vmatprep.subr.mxu0 %v2186
        %3400 = vmatpush1.msra.mxu0 %v2185
        %3401 = vmatprep.subr.mxu0 %v2190
        %3402 = vmatpush1.msra.mxu0 %v2189
        %3403 = vmatprep.subr.mxu0 %v2194
        %3404 = vmatpush1.msra.mxu0 %v2193
        %3405 = vmatprep.subr.mxu0 %v2198
        %3406 = vmatpush1.msra.mxu0 %v2197
        %3407 = vmatprep.subr.mxu0 %v2202
        %3408 = vmatpush1.msra.mxu0 %v2201
        %3409 = vmatprep.subr.mxu0 %v2206
        %3410 = vmatpush1.msra.mxu0 %v2205
        %3411 = vmatprep.subr.mxu0 %v2210
        %3412 = vmatpush1.msra.mxu0 %v2209
        %3413 = vmatprep.subr.mxu0 %v2214
        %3414 = vmatpush1.msra.mxu0 %v2213
        %3415 = vmatprep.subr.mxu0 %v2218
        %3416 = vmatpush1.msra.mxu0 %v2217
        %3417 = vmatprep.subr.mxu0 %v2222
        %3418 = vmatpush1.msra.mxu0 %v2221
        %3419 = vmatprep.subr.mxu0 %v2226
        %3420 = vmatpush1.msra.mxu0 %v2225
        %3421 = vmatprep.subr.mxu0 %v2230
        %3422 = vmatpush1.msra.mxu0 %v2229
        %3423 = vmatprep.subr.mxu0 %v2234
        %3424 = vmatpush1.msra.mxu0 %v2233
        %3425 = vmatprep.subr.mxu0 %v2238
        %3426 = vmatpush1.msra.mxu0 %v2237
        %3427 = vmatprep.mubr.f32.mxu0 %v314
        %3428 = vmatmul.mubr.f32.gmra.mrb[0].mxu0 %v313
        %v3429 = vpop.f32.mrb[0].mxu0
        %v3430 = vadd.f32 %v3359, %v3429
        %v3431 = vpop.f32.mrb[0].mxu0
        %v3432 = vadd.f32 %v3361, %v3431
        %3433 = vdwg.mxu0
        %3434 = vmatprep.subr.mxu0 %v2242
        %3435 = vmatpush1.msra.mxu0 %v2241
        %3436 = vmatprep.subr.mxu0 %v2246
        %3437 = vmatpush1.msra.mxu0 %v2245
        %3438 = vmatprep.subr.mxu0 %v2250
        %3439 = vmatpush1.msra.mxu0 %v2249
        %3440 = vmatprep.subr.mxu0 %v2254
        %3441 = vmatpush1.msra.mxu0 %v2253
        %3442 = vmatprep.subr.mxu0 %v2258
        %3443 = vmatpush1.msra.mxu0 %v2257
        %3444 = vmatprep.subr.mxu0 %v2262
        %3445 = vmatpush1.msra.mxu0 %v2261
        %3446 = vmatprep.subr.mxu0 %v2266
        %3447 = vmatpush1.msra.mxu0 %v2265
        %3448 = vmatprep.subr.mxu0 %v2270
        %3449 = vmatpush1.msra.mxu0 %v2269
        %3450 = vmatprep.subr.mxu0 %v2274
        %3451 = vmatpush1.msra.mxu0 %v2273
        %3452 = vmatprep.subr.mxu0 %v2278
        %3453 = vmatpush1.msra.mxu0 %v2277
        %3454 = vmatprep.subr.mxu0 %v2282
        %3455 = vmatpush1.msra.mxu0 %v2281
        %3456 = vmatprep.subr.mxu0 %v2286
        %3457 = vmatpush1.msra.mxu0 %v2285
        %3458 = vmatprep.subr.mxu0 %v2290
        %3459 = vmatpush1.msra.mxu0 %v2289
        %3460 = vmatprep.subr.mxu0 %v2294
        %3461 = vmatpush1.msra.mxu0 %v2293
        %3462 = vmatprep.subr.mxu0 %v2298
        %3463 = vmatpush1.msra.mxu0 %v2297
        %3464 = vmatprep.subr.mxu0 %v2302
        %3465 = vmatpush1.msra.mxu0 %v2301
        %3466 = vmatprep.subr.mxu0 %v2306
        %3467 = vmatpush1.msra.mxu0 %v2305
        %3468 = vmatprep.subr.mxu0 %v2310
        %3469 = vmatpush1.msra.mxu0 %v2309
        %3470 = vmatprep.subr.mxu0 %v2314
        %3471 = vmatpush1.msra.mxu0 %v2313
        %3472 = vmatprep.subr.mxu0 %v2318
        %3473 = vmatpush1.msra.mxu0 %v2317
        %3474 = vmatprep.subr.mxu0 %v2322
        %3475 = vmatpush1.msra.mxu0 %v2321
        %3476 = vmatprep.subr.mxu0 %v2326
        %3477 = vmatpush1.msra.mxu0 %v2325
        %3478 = vmatprep.subr.mxu0 %v2330
        %3479 = vmatpush1.msra.mxu0 %v2329
        %3480 = vmatprep.subr.mxu0 %v2334
        %3481 = vmatpush1.msra.mxu0 %v2333
        %3482 = vmatprep.subr.mxu0 %v2338
        %3483 = vmatpush1.msra.mxu0 %v2337
        %3484 = vmatprep.subr.mxu0 %v2342
        %3485 = vmatpush1.msra.mxu0 %v2341
        %3486 = vmatprep.subr.mxu0 %v2346
        %3487 = vmatpush1.msra.mxu0 %v2345
        %3488 = vmatprep.subr.mxu0 %v2350
        %3489 = vmatpush1.msra.mxu0 %v2349
        %3490 = vmatprep.subr.mxu0 %v2354
        %3491 = vmatpush1.msra.mxu0 %v2353
        %3492 = vmatprep.subr.mxu0 %v2358
        %3493 = vmatpush1.msra.mxu0 %v2357
        %3494 = vmatprep.subr.mxu0 %v2362
        %3495 = vmatpush1.msra.mxu0 %v2361
        %3496 = vmatprep.subr.mxu0 %v2366
        %3497 = vmatpush1.msra.mxu0 %v2365
        %3498 = vmatprep.mubr.f32.mxu0 %v316
        %3499 = vmatmul.mubr.f32.gmra.mrb[0].mxu0 %v315
        %v3500 = vpop.f32.mrb[0].mxu0
        %v3501 = vadd.f32 %v3430, %v3500
        %v3502 = vpop.f32.mrb[0].mxu0
        %v3503 = vadd.f32 %v3432, %v3502
        %3504 = vdwg.mxu0
        %3505 = vmatprep.subr.mxu0 %v324
        %3506 = vmatpush1.msra.mxu0 %v323
        %3507 = vmatprep.subr.mxu0 %v328
        %3508 = vmatpush1.msra.mxu0 %v327
        %3509 = vmatprep.subr.mxu0 %v332
        %3510 = vmatpush1.msra.mxu0 %v331
        %3511 = vmatprep.subr.mxu0 %v336
        %3512 = vmatpush1.msra.mxu0 %v335
        %3513 = vmatprep.subr.mxu0 %v340
        %3514 = vmatpush1.msra.mxu0 %v339
        %3515 = vmatprep.subr.mxu0 %v344
        %3516 = vmatpush1.msra.mxu0 %v343
        %3517 = vmatprep.subr.mxu0 %v348
        %3518 = vmatpush1.msra.mxu0 %v347
        %3519 = vmatprep.subr.mxu0 %v352
        %3520 = vmatpush1.msra.mxu0 %v351
        %3521 = vmatprep.subr.mxu0 %v356
        %3522 = vmatpush1.msra.mxu0 %v355
        %3523 = vmatprep.subr.mxu0 %v360
        %3524 = vmatpush1.msra.mxu0 %v359
        %3525 = vmatprep.subr.mxu0 %v364
        %3526 = vmatpush1.msra.mxu0 %v363
        %3527 = vmatprep.subr.mxu0 %v368
        %3528 = vmatpush1.msra.mxu0 %v367
        %3529 = vmatprep.subr.mxu0 %v372
        %3530 = vmatpush1.msra.mxu0 %v371
        %3531 = vmatprep.subr.mxu0 %v376
        %3532 = vmatpush1.msra.mxu0 %v375
        %3533 = vmatprep.subr.mxu0 %v380
        %3534 = vmatpush1.msra.mxu0 %v379
        %3535 = vmatprep.subr.mxu0 %v384
        %3536 = vmatpush1.msra.mxu0 %v383
        %3537 = vmatprep.subr.mxu0 %v388
        %3538 = vmatpush1.msra.mxu0 %v387
        %3539 = vmatprep.subr.mxu0 %v392
        %3540 = vmatpush1.msra.mxu0 %v391
        %3541 = vmatprep.subr.mxu0 %v396
        %3542 = vmatpush1.msra.mxu0 %v395
        %3543 = vmatprep.subr.mxu0 %v400
        %3544 = vmatpush1.msra.mxu0 %v399
        %3545 = vmatprep.subr.mxu0 %v404
        %3546 = vmatpush1.msra.mxu0 %v403
        %3547 = vmatprep.subr.mxu0 %v408
        %3548 = vmatpush1.msra.mxu0 %v407
        %3549 = vmatprep.subr.mxu0 %v412
        %3550 = vmatpush1.msra.mxu0 %v411
        %3551 = vmatprep.subr.mxu0 %v416
        %3552 = vmatpush1.msra.mxu0 %v415
        %3553 = vmatprep.subr.mxu0 %v420
        %3554 = vmatpush1.msra.mxu0 %v419
        %3555 = vmatprep.subr.mxu0 %v424
        %3556 = vmatpush1.msra.mxu0 %v423
        %3557 = vmatprep.subr.mxu0 %v428
        %3558 = vmatpush1.msra.mxu0 %v427
        %3559 = vmatprep.subr.mxu0 %v432
        %3560 = vmatpush1.msra.mxu0 %v431
        %3561 = vmatprep.subr.mxu0 %v436
        %3562 = vmatpush1.msra.mxu0 %v435
        %3563 = vmatprep.subr.mxu0 %v440
        %3564 = vmatpush1.msra.mxu0 %v439
        %3565 = vmatprep.subr.mxu0 %v444
        %3566 = vmatpush1.msra.mxu0 %v443
        %3567 = vmatprep.subr.mxu0 %v448
        %3568 = vmatpush1.msra.mxu0 %v447
        %3569 = vmatprep.mubr.f32.mxu0 %v286
        %3570 = vmatmul.mubr.f32.gmra.mrb[0].mxu0 %v285
        %v3571 = vpop.f32.mrb[0].mxu0
        %v3572 = vadd.f32 0.0, %v3571
        %v3573 = vpop.f32.mrb[0].mxu0
        %v3574 = vadd.f32 0.0, %v3573
        %3575 = vdwg.mxu0
        %3576 = vmatprep.subr.mxu0 %v452
        %3577 = vmatpush1.msra.mxu0 %v451
        %3578 = vmatprep.subr.mxu0 %v456
        %3579 = vmatpush1.msra.mxu0 %v455
        %3580 = vmatprep.subr.mxu0 %v460
        %3581 = vmatpush1.msra.mxu0 %v459
        %3582 = vmatprep.subr.mxu0 %v464
        %3583 = vmatpush1.msra.mxu0 %v463
        %3584 = vmatprep.subr.mxu0 %v468
        %3585 = vmatpush1.msra.mxu0 %v467
        %3586 = vmatprep.subr.mxu0 %v472
        %3587 = vmatpush1.msra.mxu0 %v471
        %3588 = vmatprep.subr.mxu0 %v476
        %3589 = vmatpush1.msra.mxu0 %v475
        %3590 = vmatprep.subr.mxu0 %v480
        %3591 = vmatpush1.msra.mxu0 %v479
        %3592 = vmatprep.subr.mxu0 %v484
        %3593 = vmatpush1.msra.mxu0 %v483
        %3594 = vmatprep.subr.mxu0 %v488
        %3595 = vmatpush1.msra.mxu0 %v487
        %3596 = vmatprep.subr.mxu0 %v492
        %3597 = vmatpush1.msra.mxu0 %v491
        %3598 = vmatprep.subr.mxu0 %v496
        %3599 = vmatpush1.msra.mxu0 %v495
        %3600 = vmatprep.subr.mxu0 %v500
        %3601 = vmatpush1.msra.mxu0 %v499
        %3602 = vmatprep.subr.mxu0 %v504
        %3603 = vmatpush1.msra.mxu0 %v503
        %3604 = vmatprep.subr.mxu0 %v508
        %3605 = vmatpush1.msra.mxu0 %v507
        %3606 = vmatprep.subr.mxu0 %v512
        %3607 = vmatpush1.msra.mxu0 %v511
        %3608 = vmatprep.subr.mxu0 %v516
        %3609 = vmatpush1.msra.mxu0 %v515
        %3610 = vmatprep.subr.mxu0 %v520
        %3611 = vmatpush1.msra.mxu0 %v519
        %3612 = vmatprep.subr.mxu0 %v524
        %3613 = vmatpush1.msra.mxu0 %v523
        %3614 = vmatprep.subr.mxu0 %v528
        %3615 = vmatpush1.msra.mxu0 %v527
        %3616 = vmatprep.subr.mxu0 %v532
        %3617 = vmatpush1.msra.mxu0 %v531
        %3618 = vmatprep.subr.mxu0 %v536
        %3619 = vmatpush1.msra.mxu0 %v535
        %3620 = vmatprep.subr.mxu0 %v540
        %3621 = vmatpush1.msra.mxu0 %v539
        %3622 = vmatprep.subr.mxu0 %v544
        %3623 = vmatpush1.msra.mxu0 %v543
        %3624 = vmatprep.subr.mxu0 %v548
        %3625 = vmatpush1.msra.mxu0 %v547
        %3626 = vmatprep.subr.mxu0 %v552
        %3627 = vmatpush1.msra.mxu0 %v551
        %3628 = vmatprep.subr.mxu0 %v556
        %3629 = vmatpush1.msra.mxu0 %v555
        %3630 = vmatprep.subr.mxu0 %v560
        %3631 = vmatpush1.msra.mxu0 %v559
        %3632 = vmatprep.subr.mxu0 %v564
        %3633 = vmatpush1.msra.mxu0 %v563
        %3634 = vmatprep.subr.mxu0 %v568
        %3635 = vmatpush1.msra.mxu0 %v567
        %3636 = vmatprep.subr.mxu0 %v572
        %3637 = vmatpush1.msra.mxu0 %v571
        %3638 = vmatprep.subr.mxu0 %v576
        %3639 = vmatpush1.msra.mxu0 %v575
        %3640 = vmatprep.mubr.f32.mxu0 %v288
        %3641 = vmatmul.mubr.f32.gmra.mrb[0].mxu0 %v287
        %v3642 = vpop.f32.mrb[0].mxu0
        %v3643 = vadd.f32 %v3572, %v3642
        %v3644 = vpop.f32.mrb[0].mxu0
        %v3645 = vadd.f32 %v3574, %v3644
        %3646 = vdwg.mxu0
        %3647 = vmatprep.subr.mxu0 %v580
        %3648 = vmatpush1.msra.mxu0 %v579
        %3649 = vmatprep.subr.mxu0 %v584
        %3650 = vmatpush1.msra.mxu0 %v583
        %3651 = vmatprep.subr.mxu0 %v588
        %3652 = vmatpush1.msra.mxu0 %v587
        %3653 = vmatprep.subr.mxu0 %v592
        %3654 = vmatpush1.msra.mxu0 %v591
        %3655 = vmatprep.subr.mxu0 %v596
        %3656 = vmatpush1.msra.mxu0 %v595
        %3657 = vmatprep.subr.mxu0 %v600
        %3658 = vmatpush1.msra.mxu0 %v599
        %3659 = vmatprep.subr.mxu0 %v604
        %3660 = vmatpush1.msra.mxu0 %v603
        %3661 = vmatprep.subr.mxu0 %v608
        %3662 = vmatpush1.msra.mxu0 %v607
        %3663 = vmatprep.subr.mxu0 %v612
        %3664 = vmatpush1.msra.mxu0 %v611
        %3665 = vmatprep.subr.mxu0 %v616
        %3666 = vmatpush1.msra.mxu0 %v615
        %3667 = vmatprep.subr.mxu0 %v620
        %3668 = vmatpush1.msra.mxu0 %v619
        %3669 = vmatprep.subr.mxu0 %v624
        %3670 = vmatpush1.msra.mxu0 %v623
        %3671 = vmatprep.subr.mxu0 %v628
        %3672 = vmatpush1.msra.mxu0 %v627
        %3673 = vmatprep.subr.mxu0 %v632
        %3674 = vmatpush1.msra.mxu0 %v631
        %3675 = vmatprep.subr.mxu0 %v636
        %3676 = vmatpush1.msra.mxu0 %v635
        %3677 = vmatprep.subr.mxu0 %v640
        %3678 = vmatpush1.msra.mxu0 %v639
        %3679 = vmatprep.subr.mxu0 %v644
        %3680 = vmatpush1.msra.mxu0 %v643
        %3681 = vmatprep.subr.mxu0 %v648
        %3682 = vmatpush1.msra.mxu0 %v647
        %3683 = vmatprep.subr.mxu0 %v652
        %3684 = vmatpush1.msra.mxu0 %v651
        %3685 = vmatprep.subr.mxu0 %v656
        %3686 = vmatpush1.msra.mxu0 %v655
        %3687 = vmatprep.subr.mxu0 %v660
        %3688 = vmatpush1.msra.mxu0 %v659
        %3689 = vmatprep.subr.mxu0 %v664
        %3690 = vmatpush1.msra.mxu0 %v663
        %3691 = vmatprep.subr.mxu0 %v668
        %3692 = vmatpush1.msra.mxu0 %v667
        %3693 = vmatprep.subr.mxu0 %v672
        %3694 = vmatpush1.msra.mxu0 %v671
        %3695 = vmatprep.subr.mxu0 %v676
        %3696 = vmatpush1.msra.mxu0 %v675
        %3697 = vmatprep.subr.mxu0 %v680
        %3698 = vmatpush1.msra.mxu0 %v679
        %3699 = vmatprep.subr.mxu0 %v684
        %3700 = vmatpush1.msra.mxu0 %v683
        %3701 = vmatprep.subr.mxu0 %v688
        %3702 = vmatpush1.msra.mxu0 %v687
        %3703 = vmatprep.subr.mxu0 %v692
        %3704 = vmatpush1.msra.mxu0 %v691
        %3705 = vmatprep.subr.mxu0 %v696
        %3706 = vmatpush1.msra.mxu0 %v695
        %3707 = vmatprep.subr.mxu0 %v700
        %3708 = vmatpush1.msra.mxu0 %v699
        %3709 = vmatprep.subr.mxu0 %v704
        %3710 = vmatpush1.msra.mxu0 %v703
        %3711 = vmatprep.mubr.f32.mxu0 %v290
        %3712 = vmatmul.mubr.f32.gmra.mrb[0].mxu0 %v289
        %v3713 = vpop.f32.mrb[0].mxu0
        %v3714 = vadd.f32 %v3643, %v3713
        %v3715 = vpop.f32.mrb[0].mxu0
        %v3716 = vadd.f32 %v3645, %v3715
        %3717 = vdwg.mxu0
        %3718 = vmatprep.subr.mxu0 %v708
        %3719 = vmatpush1.msra.mxu0 %v707
        %3720 = vmatprep.subr.mxu0 %v712
        %3721 = vmatpush1.msra.mxu0 %v711
        %3722 = vmatprep.subr.mxu0 %v716
        %3723 = vmatpush1.msra.mxu0 %v715
        %3724 = vmatprep.subr.mxu0 %v720
        %3725 = vmatpush1.msra.mxu0 %v719
        %3726 = vmatprep.subr.mxu0 %v724
        %3727 = vmatpush1.msra.mxu0 %v723
        %3728 = vmatprep.subr.mxu0 %v728
        %3729 = vmatpush1.msra.mxu0 %v727
        %3730 = vmatprep.subr.mxu0 %v732
        %3731 = vmatpush1.msra.mxu0 %v731
        %3732 = vmatprep.subr.mxu0 %v736
        %3733 = vmatpush1.msra.mxu0 %v735
        %3734 = vmatprep.subr.mxu0 %v740
        %3735 = vmatpush1.msra.mxu0 %v739
        %3736 = vmatprep.subr.mxu0 %v744
        %3737 = vmatpush1.msra.mxu0 %v743
        %3738 = vmatprep.subr.mxu0 %v748
        %3739 = vmatpush1.msra.mxu0 %v747
        %3740 = vmatprep.subr.mxu0 %v752
        %3741 = vmatpush1.msra.mxu0 %v751
        %3742 = vmatprep.subr.mxu0 %v756
        %3743 = vmatpush1.msra.mxu0 %v755
        %3744 = vmatprep.subr.mxu0 %v760
        %3745 = vmatpush1.msra.mxu0 %v759
        %3746 = vmatprep.subr.mxu0 %v764
        %3747 = vmatpush1.msra.mxu0 %v763
        %3748 = vmatprep.subr.mxu0 %v768
        %3749 = vmatpush1.msra.mxu0 %v767
        %3750 = vmatprep.subr.mxu0 %v772
        %3751 = vmatpush1.msra.mxu0 %v771
        %3752 = vmatprep.subr.mxu0 %v776
        %3753 = vmatpush1.msra.mxu0 %v775
        %3754 = vmatprep.subr.mxu0 %v780
        %3755 = vmatpush1.msra.mxu0 %v779
        %3756 = vmatprep.subr.mxu0 %v784
        %3757 = vmatpush1.msra.mxu0 %v783
        %3758 = vmatprep.subr.mxu0 %v788
        %3759 = vmatpush1.msra.mxu0 %v787
        %3760 = vmatprep.subr.mxu0 %v792
        %3761 = vmatpush1.msra.mxu0 %v791
        %3762 = vmatprep.subr.mxu0 %v796
        %3763 = vmatpush1.msra.mxu0 %v795
        %3764 = vmatprep.subr.mxu0 %v800
        %3765 = vmatpush1.msra.mxu0 %v799
        %3766 = vmatprep.subr.mxu0 %v804
        %3767 = vmatpush1.msra.mxu0 %v803
        %3768 = vmatprep.subr.mxu0 %v808
        %3769 = vmatpush1.msra.mxu0 %v807
        %3770 = vmatprep.subr.mxu0 %v812
        %3771 = vmatpush1.msra.mxu0 %v811
        %3772 = vmatprep.subr.mxu0 %v816
        %3773 = vmatpush1.msra.mxu0 %v815
        %3774 = vmatprep.subr.mxu0 %v820
        %3775 = vmatpush1.msra.mxu0 %v819
        %3776 = vmatprep.subr.mxu0 %v824
        %3777 = vmatpush1.msra.mxu0 %v823
        %3778 = vmatprep.subr.mxu0 %v828
        %3779 = vmatpush1.msra.mxu0 %v827
        %3780 = vmatprep.subr.mxu0 %v832
        %3781 = vmatpush1.msra.mxu0 %v831
        %3782 = vmatprep.mubr.f32.mxu0 %v292
        %3783 = vmatmul.mubr.f32.gmra.mrb[0].mxu0 %v291
        %v3784 = vpop.f32.mrb[0].mxu0
        %v3785 = vadd.f32 %v3714, %v3784
        %v3786 = vpop.f32.mrb[0].mxu0
        %v3787 = vadd.f32 %v3716, %v3786
        %3788 = vdwg.mxu0
        %3789 = vmatprep.subr.mxu0 %v836
        %3790 = vmatpush1.msra.mxu0 %v835
        %3791 = vmatprep.subr.mxu0 %v840
        %3792 = vmatpush1.msra.mxu0 %v839
        %3793 = vmatprep.subr.mxu0 %v844
        %3794 = vmatpush1.msra.mxu0 %v843
        %3795 = vmatprep.subr.mxu0 %v848
        %3796 = vmatpush1.msra.mxu0 %v847
        %3797 = vmatprep.subr.mxu0 %v852
        %3798 = vmatpush1.msra.mxu0 %v851
        %3799 = vmatprep.subr.mxu0 %v856
        %3800 = vmatpush1.msra.mxu0 %v855
        %3801 = vmatprep.subr.mxu0 %v860
        %3802 = vmatpush1.msra.mxu0 %v859
        %3803 = vmatprep.subr.mxu0 %v864
        %3804 = vmatpush1.msra.mxu0 %v863
        %3805 = vmatprep.subr.mxu0 %v868
        %3806 = vmatpush1.msra.mxu0 %v867
        %3807 = vmatprep.subr.mxu0 %v872
        %3808 = vmatpush1.msra.mxu0 %v871
        %3809 = vmatprep.subr.mxu0 %v876
        %3810 = vmatpush1.msra.mxu0 %v875
        %3811 = vmatprep.subr.mxu0 %v880
        %3812 = vmatpush1.msra.mxu0 %v879
        %3813 = vmatprep.subr.mxu0 %v884
        %3814 = vmatpush1.msra.mxu0 %v883
        %3815 = vmatprep.subr.mxu0 %v888
        %3816 = vmatpush1.msra.mxu0 %v887
        %3817 = vmatprep.subr.mxu0 %v892
        %3818 = vmatpush1.msra.mxu0 %v891
        %3819 = vmatprep.subr.mxu0 %v896
        %3820 = vmatpush1.msra.mxu0 %v895
        %3821 = vmatprep.subr.mxu0 %v900
        %3822 = vmatpush1.msra.mxu0 %v899
        %3823 = vmatprep.subr.mxu0 %v904
        %3824 = vmatpush1.msra.mxu0 %v903
        %3825 = vmatprep.subr.mxu0 %v908
        %3826 = vmatpush1.msra.mxu0 %v907
        %3827 = vmatprep.subr.mxu0 %v912
        %3828 = vmatpush1.msra.mxu0 %v911
        %3829 = vmatprep.subr.mxu0 %v916
        %3830 = vmatpush1.msra.mxu0 %v915
        %3831 = vmatprep.subr.mxu0 %v920
        %3832 = vmatpush1.msra.mxu0 %v919
        %3833 = vmatprep.subr.mxu0 %v924
        %3834 = vmatpush1.msra.mxu0 %v923
        %3835 = vmatprep.subr.mxu0 %v928
        %3836 = vmatpush1.msra.mxu0 %v927
        %3837 = vmatprep.subr.mxu0 %v932
        %3838 = vmatpush1.msra.mxu0 %v931
        %3839 = vmatprep.subr.mxu0 %v936
        %3840 = vmatpush1.msra.mxu0 %v935
        %3841 = vmatprep.subr.mxu0 %v940
        %3842 = vmatpush1.msra.mxu0 %v939
        %3843 = vmatprep.subr.mxu0 %v944
        %3844 = vmatpush1.msra.mxu0 %v943
        %3845 = vmatprep.subr.mxu0 %v948
        %3846 = vmatpush1.msra.mxu0 %v947
        %3847 = vmatprep.subr.mxu0 %v952
        %3848 = vmatpush1.msra.mxu0 %v951
        %3849 = vmatprep.subr.mxu0 %v956
        %3850 = vmatpush1.msra.mxu0 %v955
        %3851 = vmatprep.subr.mxu0 %v960
        %3852 = vmatpush1.msra.mxu0 %v959
        %3853 = vmatprep.mubr.f32.mxu0 %v294
        %3854 = vmatmul.mubr.f32.gmra.mrb[0].mxu0 %v293
        %v3855 = vpop.f32.mrb[0].mxu0
        %v3856 = vadd.f32 %v3785, %v3855
        %v3857 = vpop.f32.mrb[0].mxu0
        %v3858 = vadd.f32 %v3787, %v3857
        %3859 = vdwg.mxu0
        %3860 = vmatprep.subr.mxu0 %v964
        %3861 = vmatpush1.msra.mxu0 %v963
        %3862 = vmatprep.subr.mxu0 %v968
        %3863 = vmatpush1.msra.mxu0 %v967
        %3864 = vmatprep.subr.mxu0 %v972
        %3865 = vmatpush1.msra.mxu0 %v971
        %3866 = vmatprep.subr.mxu0 %v976
        %3867 = vmatpush1.msra.mxu0 %v975
        %3868 = vmatprep.subr.mxu0 %v980
        %3869 = vmatpush1.msra.mxu0 %v979
        %3870 = vmatprep.subr.mxu0 %v984
        %3871 = vmatpush1.msra.mxu0 %v983
        %3872 = vmatprep.subr.mxu0 %v988
        %3873 = vmatpush1.msra.mxu0 %v987
        %3874 = vmatprep.subr.mxu0 %v992
        %3875 = vmatpush1.msra.mxu0 %v991
        %3876 = vmatprep.subr.mxu0 %v996
        %3877 = vmatpush1.msra.mxu0 %v995
        %3878 = vmatprep.subr.mxu0 %v1000
        %3879 = vmatpush1.msra.mxu0 %v999
        %3880 = vmatprep.subr.mxu0 %v1004
        %3881 = vmatpush1.msra.mxu0 %v1003
        %3882 = vmatprep.subr.mxu0 %v1008
        %3883 = vmatpush1.msra.mxu0 %v1007
        %3884 = vmatprep.subr.mxu0 %v1012
        %3885 = vmatpush1.msra.mxu0 %v1011
        %3886 = vmatprep.subr.mxu0 %v1016
        %3887 = vmatpush1.msra.mxu0 %v1015
        %3888 = vmatprep.subr.mxu0 %v1020
        %3889 = vmatpush1.msra.mxu0 %v1019
        %3890 = vmatprep.subr.mxu0 %v1024
        %3891 = vmatpush1.msra.mxu0 %v1023
        %3892 = vmatprep.subr.mxu0 %v1028
        %3893 = vmatpush1.msra.mxu0 %v1027
        %3894 = vmatprep.subr.mxu0 %v1032
        %3895 = vmatpush1.msra.mxu0 %v1031
        %3896 = vmatprep.subr.mxu0 %v1036
        %3897 = vmatpush1.msra.mxu0 %v1035
        %3898 = vmatprep.subr.mxu0 %v1040
        %3899 = vmatpush1.msra.mxu0 %v1039
        %3900 = vmatprep.subr.mxu0 %v1044
        %3901 = vmatpush1.msra.mxu0 %v1043
        %3902 = vmatprep.subr.mxu0 %v1048
        %3903 = vmatpush1.msra.mxu0 %v1047
        %3904 = vmatprep.subr.mxu0 %v1052
        %3905 = vmatpush1.msra.mxu0 %v1051
        %3906 = vmatprep.subr.mxu0 %v1056
        %3907 = vmatpush1.msra.mxu0 %v1055
        %3908 = vmatprep.subr.mxu0 %v1060
        %3909 = vmatpush1.msra.mxu0 %v1059
        %3910 = vmatprep.subr.mxu0 %v1064
        %3911 = vmatpush1.msra.mxu0 %v1063
        %3912 = vmatprep.subr.mxu0 %v1068
        %3913 = vmatpush1.msra.mxu0 %v1067
        %3914 = vmatprep.subr.mxu0 %v1072
        %3915 = vmatpush1.msra.mxu0 %v1071
        %3916 = vmatprep.subr.mxu0 %v1076
        %3917 = vmatpush1.msra.mxu0 %v1075
        %3918 = vmatprep.subr.mxu0 %v1080
        %3919 = vmatpush1.msra.mxu0 %v1079
        %3920 = vmatprep.subr.mxu0 %v1084
        %3921 = vmatpush1.msra.mxu0 %v1083
        %3922 = vmatprep.subr.mxu0 %v1088
        %3923 = vmatpush1.msra.mxu0 %v1087
        %3924 = vmatprep.mubr.f32.mxu0 %v296
        %3925 = vmatmul.mubr.f32.gmra.mrb[0].mxu0 %v295
        %v3926 = vpop.f32.mrb[0].mxu0
        %v3927 = vadd.f32 %v3856, %v3926
        %v3928 = vpop.f32.mrb[0].mxu0
        %v3929 = vadd.f32 %v3858, %v3928
        %3930 = vdwg.mxu0
        %3931 = vmatprep.subr.mxu0 %v1092
        %3932 = vmatpush1.msra.mxu0 %v1091
        %3933 = vmatprep.subr.mxu0 %v1096
        %3934 = vmatpush1.msra.mxu0 %v1095
        %3935 = vmatprep.subr.mxu0 %v1100
        %3936 = vmatpush1.msra.mxu0 %v1099
        %3937 = vmatprep.subr.mxu0 %v1104
        %3938 = vmatpush1.msra.mxu0 %v1103
        %3939 = vmatprep.subr.mxu0 %v1108
        %3940 = vmatpush1.msra.mxu0 %v1107
        %3941 = vmatprep.subr.mxu0 %v1112
        %3942 = vmatpush1.msra.mxu0 %v1111
        %3943 = vmatprep.subr.mxu0 %v1116
        %3944 = vmatpush1.msra.mxu0 %v1115
        %3945 = vmatprep.subr.mxu0 %v1120
        %3946 = vmatpush1.msra.mxu0 %v1119
        %3947 = vmatprep.subr.mxu0 %v1124
        %3948 = vmatpush1.msra.mxu0 %v1123
        %3949 = vmatprep.subr.mxu0 %v1128
        %3950 = vmatpush1.msra.mxu0 %v1127
        %3951 = vmatprep.subr.mxu0 %v1132
        %3952 = vmatpush1.msra.mxu0 %v1131
        %3953 = vmatprep.subr.mxu0 %v1136
        %3954 = vmatpush1.msra.mxu0 %v1135
        %3955 = vmatprep.subr.mxu0 %v1140
        %3956 = vmatpush1.msra.mxu0 %v1139
        %3957 = vmatprep.subr.mxu0 %v1144
        %3958 = vmatpush1.msra.mxu0 %v1143
        %3959 = vmatprep.subr.mxu0 %v1148
        %3960 = vmatpush1.msra.mxu0 %v1147
        %3961 = vmatprep.subr.mxu0 %v1152
        %3962 = vmatpush1.msra.mxu0 %v1151
        %3963 = vmatprep.subr.mxu0 %v1156
        %3964 = vmatpush1.msra.mxu0 %v1155
        %3965 = vmatprep.subr.mxu0 %v1160
        %3966 = vmatpush1.msra.mxu0 %v1159
        %3967 = vmatprep.subr.mxu0 %v1164
        %3968 = vmatpush1.msra.mxu0 %v1163
        %3969 = vmatprep.subr.mxu0 %v1168
        %3970 = vmatpush1.msra.mxu0 %v1167
        %3971 = vmatprep.subr.mxu0 %v1172
        %3972 = vmatpush1.msra.mxu0 %v1171
        %3973 = vmatprep.subr.mxu0 %v1176
        %3974 = vmatpush1.msra.mxu0 %v1175
        %3975 = vmatprep.subr.mxu0 %v1180
        %3976 = vmatpush1.msra.mxu0 %v1179
        %3977 = vmatprep.subr.mxu0 %v1184
        %3978 = vmatpush1.msra.mxu0 %v1183
        %3979 = vmatprep.subr.mxu0 %v1188
        %3980 = vmatpush1.msra.mxu0 %v1187
        %3981 = vmatprep.subr.mxu0 %v1192
        %3982 = vmatpush1.msra.mxu0 %v1191
        %3983 = vmatprep.subr.mxu0 %v1196
        %3984 = vmatpush1.msra.mxu0 %v1195
        %3985 = vmatprep.subr.mxu0 %v1200
        %3986 = vmatpush1.msra.mxu0 %v1199
        %3987 = vmatprep.subr.mxu0 %v1204
        %3988 = vmatpush1.msra.mxu0 %v1203
        %3989 = vmatprep.subr.mxu0 %v1208
        %3990 = vmatpush1.msra.mxu0 %v1207
        %3991 = vmatprep.subr.mxu0 %v1212
        %3992 = vmatpush1.msra.mxu0 %v1211
        %3993 = vmatprep.subr.mxu0 %v1216
        %3994 = vmatpush1.msra.mxu0 %v1215
        %3995 = vmatprep.mubr.f32.mxu0 %v298
        %3996 = vmatmul.mubr.f32.gmra.mrb[0].mxu0 %v297
        %v3997 = vpop.f32.mrb[0].mxu0
        %v3998 = vadd.f32 %v3927, %v3997
        %v3999 = vpop.f32.mrb[0].mxu0
        %v4000 = vadd.f32 %v3929, %v3999
        %4001 = vdwg.mxu0
        %4002 = vmatprep.subr.mxu0 %v1220
        %4003 = vmatpush1.msra.mxu0 %v1219
        %4004 = vmatprep.subr.mxu0 %v1224
        %4005 = vmatpush1.msra.mxu0 %v1223
        %4006 = vmatprep.subr.mxu0 %v1228
        %4007 = vmatpush1.msra.mxu0 %v1227
        %4008 = vmatprep.subr.mxu0 %v1232
        %4009 = vmatpush1.msra.mxu0 %v1231
        %4010 = vmatprep.subr.mxu0 %v1236
        %4011 = vmatpush1.msra.mxu0 %v1235
        %4012 = vmatprep.subr.mxu0 %v1240
        %4013 = vmatpush1.msra.mxu0 %v1239
        %4014 = vmatprep.subr.mxu0 %v1244
        %4015 = vmatpush1.msra.mxu0 %v1243
        %4016 = vmatprep.subr.mxu0 %v1248
        %4017 = vmatpush1.msra.mxu0 %v1247
        %4018 = vmatprep.subr.mxu0 %v1252
        %4019 = vmatpush1.msra.mxu0 %v1251
        %4020 = vmatprep.subr.mxu0 %v1256
        %4021 = vmatpush1.msra.mxu0 %v1255
        %4022 = vmatprep.subr.mxu0 %v1260
        %4023 = vmatpush1.msra.mxu0 %v1259
        %4024 = vmatprep.subr.mxu0 %v1264
        %4025 = vmatpush1.msra.mxu0 %v1263
        %4026 = vmatprep.subr.mxu0 %v1268
        %4027 = vmatpush1.msra.mxu0 %v1267
        %4028 = vmatprep.subr.mxu0 %v1272
        %4029 = vmatpush1.msra.mxu0 %v1271
        %4030 = vmatprep.subr.mxu0 %v1276
        %4031 = vmatpush1.msra.mxu0 %v1275
        %4032 = vmatprep.subr.mxu0 %v1280
        %4033 = vmatpush1.msra.mxu0 %v1279
        %4034 = vmatprep.subr.mxu0 %v1284
        %4035 = vmatpush1.msra.mxu0 %v1283
        %4036 = vmatprep.subr.mxu0 %v1288
        %4037 = vmatpush1.msra.mxu0 %v1287
        %4038 = vmatprep.subr.mxu0 %v1292
        %4039 = vmatpush1.msra.mxu0 %v1291
        %4040 = vmatprep.subr.mxu0 %v1296
        %4041 = vmatpush1.msra.mxu0 %v1295
        %4042 = vmatprep.subr.mxu0 %v1300
        %4043 = vmatpush1.msra.mxu0 %v1299
        %4044 = vmatprep.subr.mxu0 %v1304
        %4045 = vmatpush1.msra.mxu0 %v1303
        %4046 = vmatprep.subr.mxu0 %v1308
        %4047 = vmatpush1.msra.mxu0 %v1307
        %4048 = vmatprep.subr.mxu0 %v1312
        %4049 = vmatpush1.msra.mxu0 %v1311
        %4050 = vmatprep.subr.mxu0 %v1316
        %4051 = vmatpush1.msra.mxu0 %v1315
        %4052 = vmatprep.subr.mxu0 %v1320
        %4053 = vmatpush1.msra.mxu0 %v1319
        %4054 = vmatprep.subr.mxu0 %v1324
        %4055 = vmatpush1.msra.mxu0 %v1323
        %4056 = vmatprep.subr.mxu0 %v1328
        %4057 = vmatpush1.msra.mxu0 %v1327
        %4058 = vmatprep.subr.mxu0 %v1332
        %4059 = vmatpush1.msra.mxu0 %v1331
        %4060 = vmatprep.subr.mxu0 %v1336
        %4061 = vmatpush1.msra.mxu0 %v1335
        %4062 = vmatprep.subr.mxu0 %v1340
        %4063 = vmatpush1.msra.mxu0 %v1339
        %4064 = vmatprep.subr.mxu0 %v1344
        %4065 = vmatpush1.msra.mxu0 %v1343
        %4066 = vmatprep.mubr.f32.mxu0 %v300
        %4067 = vmatmul.mubr.f32.gmra.mrb[0].mxu0 %v299
        %v4068 = vpop.f32.mrb[0].mxu0
        %v4069 = vadd.f32 %v3998, %v4068
        %v4070 = vpop.f32.mrb[0].mxu0
        %v4071 = vadd.f32 %v4000, %v4070
        %4072 = vdwg.mxu0
        %4073 = vmatprep.subr.mxu0 %v1348
        %4074 = vmatpush1.msra.mxu0 %v1347
        %4075 = vmatprep.subr.mxu0 %v1352
        %4076 = vmatpush1.msra.mxu0 %v1351
        %4077 = vmatprep.subr.mxu0 %v1356
        %4078 = vmatpush1.msra.mxu0 %v1355
        %4079 = vmatprep.subr.mxu0 %v1360
        %4080 = vmatpush1.msra.mxu0 %v1359
        %4081 = vmatprep.subr.mxu0 %v1364
        %4082 = vmatpush1.msra.mxu0 %v1363
        %4083 = vmatprep.subr.mxu0 %v1368
        %4084 = vmatpush1.msra.mxu0 %v1367
        %4085 = vmatprep.subr.mxu0 %v1372
        %4086 = vmatpush1.msra.mxu0 %v1371
        %4087 = vmatprep.subr.mxu0 %v1376
        %4088 = vmatpush1.msra.mxu0 %v1375
        %4089 = vmatprep.subr.mxu0 %v1380
        %4090 = vmatpush1.msra.mxu0 %v1379
        %4091 = vmatprep.subr.mxu0 %v1384
        %4092 = vmatpush1.msra.mxu0 %v1383
        %4093 = vmatprep.subr.mxu0 %v1388
        %4094 = vmatpush1.msra.mxu0 %v1387
        %4095 = vmatprep.subr.mxu0 %v1392
        %4096 = vmatpush1.msra.mxu0 %v1391
        %4097 = vmatprep.subr.mxu0 %v1396
        %4098 = vmatpush1.msra.mxu0 %v1395
        %4099 = vmatprep.subr.mxu0 %v1400
        %4100 = vmatpush1.msra.mxu0 %v1399
        %4101 = vmatprep.subr.mxu0 %v1404
        %4102 = vmatpush1.msra.mxu0 %v1403
        %4103 = vmatprep.subr.mxu0 %v1408
        %4104 = vmatpush1.msra.mxu0 %v1407
        %4105 = vmatprep.subr.mxu0 %v1412
        %4106 = vmatpush1.msra.mxu0 %v1411
        %4107 = vmatprep.subr.mxu0 %v1416
        %4108 = vmatpush1.msra.mxu0 %v1415
        %4109 = vmatprep.subr.mxu0 %v1420
        %4110 = vmatpush1.msra.mxu0 %v1419
        %4111 = vmatprep.subr.mxu0 %v1424
        %4112 = vmatpush1.msra.mxu0 %v1423
        %4113 = vmatprep.subr.mxu0 %v1428
        %4114 = vmatpush1.msra.mxu0 %v1427
        %4115 = vmatprep.subr.mxu0 %v1432
        %4116 = vmatpush1.msra.mxu0 %v1431
        %4117 = vmatprep.subr.mxu0 %v1436
        %4118 = vmatpush1.msra.mxu0 %v1435
        %4119 = vmatprep.subr.mxu0 %v1440
        %4120 = vmatpush1.msra.mxu0 %v1439
        %4121 = vmatprep.subr.mxu0 %v1444
        %4122 = vmatpush1.msra.mxu0 %v1443
        %4123 = vmatprep.subr.mxu0 %v1448
        %4124 = vmatpush1.msra.mxu0 %v1447
        %4125 = vmatprep.subr.mxu0 %v1452
        %4126 = vmatpush1.msra.mxu0 %v1451
        %4127 = vmatprep.subr.mxu0 %v1456
        %4128 = vmatpush1.msra.mxu0 %v1455
        %4129 = vmatprep.subr.mxu0 %v1460
        %4130 = vmatpush1.msra.mxu0 %v1459
        %4131 = vmatprep.subr.mxu0 %v1464
        %4132 = vmatpush1.msra.mxu0 %v1463
        %4133 = vmatprep.subr.mxu0 %v1468
        %4134 = vmatpush1.msra.mxu0 %v1467
        %4135 = vmatprep.subr.mxu0 %v1472
        %4136 = vmatpush1.msra.mxu0 %v1471
        %4137 = vmatprep.mubr.f32.mxu0 %v302
        %4138 = vmatmul.mubr.f32.gmra.mrb[0].mxu0 %v301
        %v4139 = vpop.f32.mrb[0].mxu0
        %v4140 = vadd.f32 %v4069, %v4139
        %v4141 = vpop.f32.mrb[0].mxu0
        %v4142 = vadd.f32 %v4071, %v4141
        %4143 = vdwg.mxu0
        %4144 = vmatprep.subr.mxu0 %v1476
        %4145 = vmatpush1.msra.mxu0 %v1475
        %4146 = vmatprep.subr.mxu0 %v1480
        %4147 = vmatpush1.msra.mxu0 %v1479
        %4148 = vmatprep.subr.mxu0 %v1484
        %4149 = vmatpush1.msra.mxu0 %v1483
        %4150 = vmatprep.subr.mxu0 %v1488
        %4151 = vmatpush1.msra.mxu0 %v1487
        %4152 = vmatprep.subr.mxu0 %v1492
        %4153 = vmatpush1.msra.mxu0 %v1491
        %4154 = vmatprep.subr.mxu0 %v1496
        %4155 = vmatpush1.msra.mxu0 %v1495
        %4156 = vmatprep.subr.mxu0 %v1500
        %4157 = vmatpush1.msra.mxu0 %v1499
        %4158 = vmatprep.subr.mxu0 %v1504
        %4159 = vmatpush1.msra.mxu0 %v1503
        %4160 = vmatprep.subr.mxu0 %v1508
        %4161 = vmatpush1.msra.mxu0 %v1507
        %4162 = vmatprep.subr.mxu0 %v1512
        %4163 = vmatpush1.msra.mxu0 %v1511
        %4164 = vmatprep.subr.mxu0 %v1516
        %4165 = vmatpush1.msra.mxu0 %v1515
        %4166 = vmatprep.subr.mxu0 %v1520
        %4167 = vmatpush1.msra.mxu0 %v1519
        %4168 = vmatprep.subr.mxu0 %v1524
        %4169 = vmatpush1.msra.mxu0 %v1523
        %4170 = vmatprep.subr.mxu0 %v1528
        %4171 = vmatpush1.msra.mxu0 %v1527
        %4172 = vmatprep.subr.mxu0 %v1532
        %4173 = vmatpush1.msra.mxu0 %v1531
        %4174 = vmatprep.subr.mxu0 %v1536
        %4175 = vmatpush1.msra.mxu0 %v1535
        %4176 = vmatprep.subr.mxu0 %v1540
        %4177 = vmatpush1.msra.mxu0 %v1539
        %4178 = vmatprep.subr.mxu0 %v1544
        %4179 = vmatpush1.msra.mxu0 %v1543
        %4180 = vmatprep.subr.mxu0 %v1548
        %4181 = vmatpush1.msra.mxu0 %v1547
        %4182 = vmatprep.subr.mxu0 %v1552
        %4183 = vmatpush1.msra.mxu0 %v1551
        %4184 = vmatprep.subr.mxu0 %v1556
        %4185 = vmatpush1.msra.mxu0 %v1555
        %4186 = vmatprep.subr.mxu0 %v1560
        %4187 = vmatpush1.msra.mxu0 %v1559
        %4188 = vmatprep.subr.mxu0 %v1564
        %4189 = vmatpush1.msra.mxu0 %v1563
        %4190 = vmatprep.subr.mxu0 %v1568
        %4191 = vmatpush1.msra.mxu0 %v1567
        %4192 = vmatprep.subr.mxu0 %v1572
        %4193 = vmatpush1.msra.mxu0 %v1571
        %4194 = vmatprep.subr.mxu0 %v1576
        %4195 = vmatpush1.msra.mxu0 %v1575
        %4196 = vmatprep.subr.mxu0 %v1580
        %4197 = vmatpush1.msra.mxu0 %v1579
        %4198 = vmatprep.subr.mxu0 %v1584
        %4199 = vmatpush1.msra.mxu0 %v1583
        %4200 = vmatprep.subr.mxu0 %v1588
        %4201 = vmatpush1.msra.mxu0 %v1587
        %4202 = vmatprep.subr.mxu0 %v1592
        %4203 = vmatpush1.msra.mxu0 %v1591
        %4204 = vmatprep.subr.mxu0 %v1596
        %4205 = vmatpush1.msra.mxu0 %v1595
        %4206 = vmatprep.subr.mxu0 %v1600
        %4207 = vmatpush1.msra.mxu0 %v1599
        %4208 = vmatprep.mubr.f32.mxu0 %v304
        %4209 = vmatmul.mubr.f32.gmra.mrb[0].mxu0 %v303
        %v4210 = vpop.f32.mrb[0].mxu0
        %v4211 = vadd.f32 %v4140, %v4210
        %v4212 = vpop.f32.mrb[0].mxu0
        %v4213 = vadd.f32 %v4142, %v4212
        %4214 = vdwg.mxu0
        %4215 = vmatprep.subr.mxu0 %v1604
        %4216 = vmatpush1.msra.mxu0 %v1603
        %4217 = vmatprep.subr.mxu0 %v1608
        %4218 = vmatpush1.msra.mxu0 %v1607
        %4219 = vmatprep.subr.mxu0 %v1612
        %4220 = vmatpush1.msra.mxu0 %v1611
        %4221 = vmatprep.subr.mxu0 %v1616
        %4222 = vmatpush1.msra.mxu0 %v1615
        %4223 = vmatprep.subr.mxu0 %v1620
        %4224 = vmatpush1.msra.mxu0 %v1619
        %4225 = vmatprep.subr.mxu0 %v1624
        %4226 = vmatpush1.msra.mxu0 %v1623
        %4227 = vmatprep.subr.mxu0 %v1628
        %4228 = vmatpush1.msra.mxu0 %v1627
        %4229 = vmatprep.subr.mxu0 %v1632
        %4230 = vmatpush1.msra.mxu0 %v1631
        %4231 = vmatprep.subr.mxu0 %v1636
        %4232 = vmatpush1.msra.mxu0 %v1635
        %4233 = vmatprep.subr.mxu0 %v1640
        %4234 = vmatpush1.msra.mxu0 %v1639
        %4235 = vmatprep.subr.mxu0 %v1644
        %4236 = vmatpush1.msra.mxu0 %v1643
        %4237 = vmatprep.subr.mxu0 %v1648
        %4238 = vmatpush1.msra.mxu0 %v1647
        %4239 = vmatprep.subr.mxu0 %v1652
        %4240 = vmatpush1.msra.mxu0 %v1651
        %4241 = vmatprep.subr.mxu0 %v1656
        %4242 = vmatpush1.msra.mxu0 %v1655
        %4243 = vmatprep.subr.mxu0 %v1660
        %4244 = vmatpush1.msra.mxu0 %v1659
        %4245 = vmatprep.subr.mxu0 %v1664
        %4246 = vmatpush1.msra.mxu0 %v1663
        %4247 = vmatprep.subr.mxu0 %v1668
        %4248 = vmatpush1.msra.mxu0 %v1667
        %4249 = vmatprep.subr.mxu0 %v1672
        %4250 = vmatpush1.msra.mxu0 %v1671
        %4251 = vmatprep.subr.mxu0 %v1676
        %4252 = vmatpush1.msra.mxu0 %v1675
        %4253 = vmatprep.subr.mxu0 %v1680
        %4254 = vmatpush1.msra.mxu0 %v1679
        %4255 = vmatprep.subr.mxu0 %v1684
        %4256 = vmatpush1.msra.mxu0 %v1683
        %4257 = vmatprep.subr.mxu0 %v1688
        %4258 = vmatpush1.msra.mxu0 %v1687
        %4259 = vmatprep.subr.mxu0 %v1692
        %4260 = vmatpush1.msra.mxu0 %v1691
        %4261 = vmatprep.subr.mxu0 %v1696
        %4262 = vmatpush1.msra.mxu0 %v1695
        %4263 = vmatprep.subr.mxu0 %v1700
        %4264 = vmatpush1.msra.mxu0 %v1699
        %4265 = vmatprep.subr.mxu0 %v1704
        %4266 = vmatpush1.msra.mxu0 %v1703
        %4267 = vmatprep.subr.mxu0 %v1708
        %4268 = vmatpush1.msra.mxu0 %v1707
        %4269 = vmatprep.subr.mxu0 %v1712
        %4270 = vmatpush1.msra.mxu0 %v1711
        %4271 = vmatprep.subr.mxu0 %v1716
        %4272 = vmatpush1.msra.mxu0 %v1715
        %4273 = vmatprep.subr.mxu0 %v1720
        %4274 = vmatpush1.msra.mxu0 %v1719
        %4275 = vmatprep.subr.mxu0 %v1724
        %4276 = vmatpush1.msra.mxu0 %v1723
        %4277 = vmatprep.subr.mxu0 %v1728
        %4278 = vmatpush1.msra.mxu0 %v1727
        %4279 = vmatprep.mubr.f32.mxu0 %v306
        %4280 = vmatmul.mubr.f32.gmra.mrb[0].mxu0 %v305
        %v4281 = vpop.f32.mrb[0].mxu0
        %v4282 = vadd.f32 %v4211, %v4281
        %v4283 = vpop.f32.mrb[0].mxu0
        %v4284 = vadd.f32 %v4213, %v4283
        %4285 = vdwg.mxu0
        %4286 = vmatprep.subr.mxu0 %v1732
        %4287 = vmatpush1.msra.mxu0 %v1731
        %4288 = vmatprep.subr.mxu0 %v1736
        %4289 = vmatpush1.msra.mxu0 %v1735
        %4290 = vmatprep.subr.mxu0 %v1740
        %4291 = vmatpush1.msra.mxu0 %v1739
        %4292 = vmatprep.subr.mxu0 %v1744
        %4293 = vmatpush1.msra.mxu0 %v1743
        %4294 = vmatprep.subr.mxu0 %v1748
        %4295 = vmatpush1.msra.mxu0 %v1747
        %4296 = vmatprep.subr.mxu0 %v1752
        %4297 = vmatpush1.msra.mxu0 %v1751
        %4298 = vmatprep.subr.mxu0 %v1756
        %4299 = vmatpush1.msra.mxu0 %v1755
        %4300 = vmatprep.subr.mxu0 %v1760
        %4301 = vmatpush1.msra.mxu0 %v1759
        %4302 = vmatprep.subr.mxu0 %v1764
        %4303 = vmatpush1.msra.mxu0 %v1763
        %4304 = vmatprep.subr.mxu0 %v1768
        %4305 = vmatpush1.msra.mxu0 %v1767
        %4306 = vmatprep.subr.mxu0 %v1772
        %4307 = vmatpush1.msra.mxu0 %v1771
        %4308 = vmatprep.subr.mxu0 %v1776
        %4309 = vmatpush1.msra.mxu0 %v1775
        %4310 = vmatprep.subr.mxu0 %v1780
        %4311 = vmatpush1.msra.mxu0 %v1779
        %4312 = vmatprep.subr.mxu0 %v1784
        %4313 = vmatpush1.msra.mxu0 %v1783
        %4314 = vmatprep.subr.mxu0 %v1788
        %4315 = vmatpush1.msra.mxu0 %v1787
        %4316 = vmatprep.subr.mxu0 %v1792
        %4317 = vmatpush1.msra.mxu0 %v1791
        %4318 = vmatprep.subr.mxu0 %v1796
        %4319 = vmatpush1.msra.mxu0 %v1795
        %4320 = vmatprep.subr.mxu0 %v1800
        %4321 = vmatpush1.msra.mxu0 %v1799
        %4322 = vmatprep.subr.mxu0 %v1804
        %4323 = vmatpush1.msra.mxu0 %v1803
        %4324 = vmatprep.subr.mxu0 %v1808
        %4325 = vmatpush1.msra.mxu0 %v1807
        %4326 = vmatprep.subr.mxu0 %v1812
        %4327 = vmatpush1.msra.mxu0 %v1811
        %4328 = vmatprep.subr.mxu0 %v1816
        %4329 = vmatpush1.msra.mxu0 %v1815
        %4330 = vmatprep.subr.mxu0 %v1820
        %4331 = vmatpush1.msra.mxu0 %v1819
        %4332 = vmatprep.subr.mxu0 %v1824
        %4333 = vmatpush1.msra.mxu0 %v1823
        %4334 = vmatprep.subr.mxu0 %v1828
        %4335 = vmatpush1.msra.mxu0 %v1827
        %4336 = vmatprep.subr.mxu0 %v1832
        %4337 = vmatpush1.msra.mxu0 %v1831
        %4338 = vmatprep.subr.mxu0 %v1836
        %4339 = vmatpush1.msra.mxu0 %v1835
        %4340 = vmatprep.subr.mxu0 %v1840
        %4341 = vmatpush1.msra.mxu0 %v1839
        %4342 = vmatprep.subr.mxu0 %v1844
        %4343 = vmatpush1.msra.mxu0 %v1843
        %4344 = vmatprep.subr.mxu0 %v1848
        %4345 = vmatpush1.msra.mxu0 %v1847
        %4346 = vmatprep.subr.mxu0 %v1852
        %4347 = vmatpush1.msra.mxu0 %v1851
        %4348 = vmatprep.subr.mxu0 %v1856
        %4349 = vmatpush1.msra.mxu0 %v1855
        %4350 = vmatprep.mubr.f32.mxu0 %v308
        %4351 = vmatmul.mubr.f32.gmra.mrb[0].mxu0 %v307
        %v4352 = vpop.f32.mrb[0].mxu0
        %v4353 = vadd.f32 %v4282, %v4352
        %v4354 = vpop.f32.mrb[0].mxu0
        %v4355 = vadd.f32 %v4284, %v4354
        %4356 = vdwg.mxu0
        %4357 = vmatprep.subr.mxu0 %v1860
        %4358 = vmatpush1.msra.mxu0 %v1859
        %4359 = vmatprep.subr.mxu0 %v1864
        %4360 = vmatpush1.msra.mxu0 %v1863
        %4361 = vmatprep.subr.mxu0 %v1868
        %4362 = vmatpush1.msra.mxu0 %v1867
        %4363 = vmatprep.subr.mxu0 %v1872
        %4364 = vmatpush1.msra.mxu0 %v1871
        %4365 = vmatprep.subr.mxu0 %v1876
        %4366 = vmatpush1.msra.mxu0 %v1875
        %4367 = vmatprep.subr.mxu0 %v1880
        %4368 = vmatpush1.msra.mxu0 %v1879
        %4369 = vmatprep.subr.mxu0 %v1884
        %4370 = vmatpush1.msra.mxu0 %v1883
        %4371 = vmatprep.subr.mxu0 %v1888
        %4372 = vmatpush1.msra.mxu0 %v1887
        %4373 = vmatprep.subr.mxu0 %v1892
        %4374 = vmatpush1.msra.mxu0 %v1891
        %4375 = vmatprep.subr.mxu0 %v1896
        %4376 = vmatpush1.msra.mxu0 %v1895
        %4377 = vmatprep.subr.mxu0 %v1900
        %4378 = vmatpush1.msra.mxu0 %v1899
        %4379 = vmatprep.subr.mxu0 %v1904
        %4380 = vmatpush1.msra.mxu0 %v1903
        %4381 = vmatprep.subr.mxu0 %v1908
        %4382 = vmatpush1.msra.mxu0 %v1907
        %4383 = vmatprep.subr.mxu0 %v1912
        %4384 = vmatpush1.msra.mxu0 %v1911
        %4385 = vmatprep.subr.mxu0 %v1916
        %4386 = vmatpush1.msra.mxu0 %v1915
        %4387 = vmatprep.subr.mxu0 %v1920
        %4388 = vmatpush1.msra.mxu0 %v1919
        %4389 = vmatprep.subr.mxu0 %v1924
        %4390 = vmatpush1.msra.mxu0 %v1923
        %4391 = vmatprep.subr.mxu0 %v1928
        %4392 = vmatpush1.msra.mxu0 %v1927
        %4393 = vmatprep.subr.mxu0 %v1932
        %4394 = vmatpush1.msra.mxu0 %v1931
        %4395 = vmatprep.subr.mxu0 %v1936
        %4396 = vmatpush1.msra.mxu0 %v1935
        %4397 = vmatprep.subr.mxu0 %v1940
        %4398 = vmatpush1.msra.mxu0 %v1939
        %4399 = vmatprep.subr.mxu0 %v1944
        %4400 = vmatpush1.msra.mxu0 %v1943
        %4401 = vmatprep.subr.mxu0 %v1948
        %4402 = vmatpush1.msra.mxu0 %v1947
        %4403 = vmatprep.subr.mxu0 %v1952
        %4404 = vmatpush1.msra.mxu0 %v1951
        %4405 = vmatprep.subr.mxu0 %v1956
        %4406 = vmatpush1.msra.mxu0 %v1955
        %4407 = vmatprep.subr.mxu0 %v1960
        %4408 = vmatpush1.msra.mxu0 %v1959
        %4409 = vmatprep.subr.mxu0 %v1964
        %4410 = vmatpush1.msra.mxu0 %v1963
        %4411 = vmatprep.subr.mxu0 %v1968
        %4412 = vmatpush1.msra.mxu0 %v1967
        %4413 = vmatprep.subr.mxu0 %v1972
        %4414 = vmatpush1.msra.mxu0 %v1971
        %4415 = vmatprep.subr.mxu0 %v1976
        %4416 = vmatpush1.msra.mxu0 %v1975
        %4417 = vmatprep.subr.mxu0 %v1980
        %4418 = vmatpush1.msra.mxu0 %v1979
        %4419 = vmatprep.subr.mxu0 %v1984
        %4420 = vmatpush1.msra.mxu0 %v1983
        %4421 = vmatprep.mubr.f32.mxu0 %v310
        %4422 = vmatmul.mubr.f32.gmra.mrb[0].mxu0 %v309
        %v4423 = vpop.f32.mrb[0].mxu0
        %v4424 = vadd.f32 %v4353, %v4423
        %v4425 = vpop.f32.mrb[0].mxu0
        %v4426 = vadd.f32 %v4355, %v4425
        %4427 = vdwg.mxu0
        %4428 = vmatprep.subr.mxu0 %v1988
        %4429 = vmatpush1.msra.mxu0 %v1987
        %4430 = vmatprep.subr.mxu0 %v1992
        %4431 = vmatpush1.msra.mxu0 %v1991
        %4432 = vmatprep.subr.mxu0 %v1996
        %4433 = vmatpush1.msra.mxu0 %v1995
        %4434 = vmatprep.subr.mxu0 %v2000
        %4435 = vmatpush1.msra.mxu0 %v1999
        %4436 = vmatprep.subr.mxu0 %v2004
        %4437 = vmatpush1.msra.mxu0 %v2003
        %4438 = vmatprep.subr.mxu0 %v2008
        %4439 = vmatpush1.msra.mxu0 %v2007
        %4440 = vmatprep.subr.mxu0 %v2012
        %4441 = vmatpush1.msra.mxu0 %v2011
        %4442 = vmatprep.subr.mxu0 %v2016
        %4443 = vmatpush1.msra.mxu0 %v2015
        %4444 = vmatprep.subr.mxu0 %v2020
        %4445 = vmatpush1.msra.mxu0 %v2019
        %4446 = vmatprep.subr.mxu0 %v2024
        %4447 = vmatpush1.msra.mxu0 %v2023
        %4448 = vmatprep.subr.mxu0 %v2028
        %4449 = vmatpush1.msra.mxu0 %v2027
        %4450 = vmatprep.subr.mxu0 %v2032
        %4451 = vmatpush1.msra.mxu0 %v2031
        %4452 = vmatprep.subr.mxu0 %v2036
        %4453 = vmatpush1.msra.mxu0 %v2035
        %4454 = vmatprep.subr.mxu0 %v2040
        %4455 = vmatpush1.msra.mxu0 %v2039
        %4456 = vmatprep.subr.mxu0 %v2044
        %4457 = vmatpush1.msra.mxu0 %v2043
        %4458 = vmatprep.subr.mxu0 %v2048
        %4459 = vmatpush1.msra.mxu0 %v2047
        %4460 = vmatprep.subr.mxu0 %v2052
        %4461 = vmatpush1.msra.mxu0 %v2051
        %4462 = vmatprep.subr.mxu0 %v2056
        %4463 = vmatpush1.msra.mxu0 %v2055
        %4464 = vmatprep.subr.mxu0 %v2060
        %4465 = vmatpush1.msra.mxu0 %v2059
        %4466 = vmatprep.subr.mxu0 %v2064
        %4467 = vmatpush1.msra.mxu0 %v2063
        %4468 = vmatprep.subr.mxu0 %v2068
        %4469 = vmatpush1.msra.mxu0 %v2067
        %4470 = vmatprep.subr.mxu0 %v2072
        %4471 = vmatpush1.msra.mxu0 %v2071
        %4472 = vmatprep.subr.mxu0 %v2076
        %4473 = vmatpush1.msra.mxu0 %v2075
        %4474 = vmatprep.subr.mxu0 %v2080
        %4475 = vmatpush1.msra.mxu0 %v2079
        %4476 = vmatprep.subr.mxu0 %v2084
        %4477 = vmatpush1.msra.mxu0 %v2083
        %4478 = vmatprep.subr.mxu0 %v2088
        %4479 = vmatpush1.msra.mxu0 %v2087
        %4480 = vmatprep.subr.mxu0 %v2092
        %4481 = vmatpush1.msra.mxu0 %v2091
        %4482 = vmatprep.subr.mxu0 %v2096
        %4483 = vmatpush1.msra.mxu0 %v2095
        %4484 = vmatprep.subr.mxu0 %v2100
        %4485 = vmatpush1.msra.mxu0 %v2099
        %4486 = vmatprep.subr.mxu0 %v2104
        %4487 = vmatpush1.msra.mxu0 %v2103
        %4488 = vmatprep.subr.mxu0 %v2108
        %4489 = vmatpush1.msra.mxu0 %v2107
        %4490 = vmatprep.subr.mxu0 %v2112
        %4491 = vmatpush1.msra.mxu0 %v2111
        %4492 = vmatprep.mubr.f32.mxu0 %v312
        %4493 = vmatmul.mubr.f32.gmra.mrb[0].mxu0 %v311
        %v4494 = vpop.f32.mrb[0].mxu0
        %v4495 = vadd.f32 %v4424, %v4494
        %v4496 = vpop.f32.mrb[0].mxu0
        %v4497 = vadd.f32 %v4426, %v4496
        %4498 = vdwg.mxu0
        %4499 = vmatprep.subr.mxu0 %v2116
        %4500 = vmatpush1.msra.mxu0 %v2115
        %4501 = vmatprep.subr.mxu0 %v2120
        %4502 = vmatpush1.msra.mxu0 %v2119
        %4503 = vmatprep.subr.mxu0 %v2124
        %4504 = vmatpush1.msra.mxu0 %v2123
        %4505 = vmatprep.subr.mxu0 %v2128
        %4506 = vmatpush1.msra.mxu0 %v2127
        %4507 = vmatprep.subr.mxu0 %v2132
        %4508 = vmatpush1.msra.mxu0 %v2131
        %4509 = vmatprep.subr.mxu0 %v2136
        %4510 = vmatpush1.msra.mxu0 %v2135
        %4511 = vmatprep.subr.mxu0 %v2140
        %4512 = vmatpush1.msra.mxu0 %v2139
        %4513 = vmatprep.subr.mxu0 %v2144
        %4514 = vmatpush1.msra.mxu0 %v2143
        %4515 = vmatprep.subr.mxu0 %v2148
        %4516 = vmatpush1.msra.mxu0 %v2147
        %4517 = vmatprep.subr.mxu0 %v2152
        %4518 = vmatpush1.msra.mxu0 %v2151
        %4519 = vmatprep.subr.mxu0 %v2156
        %4520 = vmatpush1.msra.mxu0 %v2155
        %4521 = vmatprep.subr.mxu0 %v2160
        %4522 = vmatpush1.msra.mxu0 %v2159
        %4523 = vmatprep.subr.mxu0 %v2164
        %4524 = vmatpush1.msra.mxu0 %v2163
        %4525 = vmatprep.subr.mxu0 %v2168
        %4526 = vmatpush1.msra.mxu0 %v2167
        %4527 = vmatprep.subr.mxu0 %v2172
        %4528 = vmatpush1.msra.mxu0 %v2171
        %4529 = vmatprep.subr.mxu0 %v2176
        %4530 = vmatpush1.msra.mxu0 %v2175
        %4531 = vmatprep.subr.mxu0 %v2180
        %4532 = vmatpush1.msra.mxu0 %v2179
        %4533 = vmatprep.subr.mxu0 %v2184
        %4534 = vmatpush1.msra.mxu0 %v2183
        %4535 = vmatprep.subr.mxu0 %v2188
        %4536 = vmatpush1.msra.mxu0 %v2187
        %4537 = vmatprep.subr.mxu0 %v2192
        %4538 = vmatpush1.msra.mxu0 %v2191
        %4539 = vmatprep.subr.mxu0 %v2196
        %4540 = vmatpush1.msra.mxu0 %v2195
        %4541 = vmatprep.subr.mxu0 %v2200
        %4542 = vmatpush1.msra.mxu0 %v2199
        %4543 = vmatprep.subr.mxu0 %v2204
        %4544 = vmatpush1.msra.mxu0 %v2203
        %4545 = vmatprep.subr.mxu0 %v2208
        %4546 = vmatpush1.msra.mxu0 %v2207
        %4547 = vmatprep.subr.mxu0 %v2212
        %4548 = vmatpush1.msra.mxu0 %v2211
        %4549 = vmatprep.subr.mxu0 %v2216
        %4550 = vmatpush1.msra.mxu0 %v2215
        %4551 = vmatprep.subr.mxu0 %v2220
        %4552 = vmatpush1.msra.mxu0 %v2219
        %4553 = vmatprep.subr.mxu0 %v2224
        %4554 = vmatpush1.msra.mxu0 %v2223
        %4555 = vmatprep.subr.mxu0 %v2228
        %4556 = vmatpush1.msra.mxu0 %v2227
        %4557 = vmatprep.subr.mxu0 %v2232
        %4558 = vmatpush1.msra.mxu0 %v2231
        %4559 = vmatprep.subr.mxu0 %v2236
        %4560 = vmatpush1.msra.mxu0 %v2235
        %4561 = vmatprep.subr.mxu0 %v2240
        %4562 = vmatpush1.msra.mxu0 %v2239
        %4563 = vmatprep.mubr.f32.mxu0 %v314
        %4564 = vmatmul.mubr.f32.gmra.mrb[0].mxu0 %v313
        %v4565 = vpop.f32.mrb[0].mxu0
        %v4566 = vadd.f32 %v4495, %v4565
        %v4567 = vpop.f32.mrb[0].mxu0
        %v4568 = vadd.f32 %v4497, %v4567
        %4569 = vdwg.mxu0
        %4570 = vmatprep.subr.mxu0 %v2244
        %4571 = vmatpush1.msra.mxu0 %v2243
        %4572 = vmatprep.subr.mxu0 %v2248
        %4573 = vmatpush1.msra.mxu0 %v2247
        %4574 = vmatprep.subr.mxu0 %v2252
        %4575 = vmatpush1.msra.mxu0 %v2251
        %4576 = vmatprep.subr.mxu0 %v2256
        %4577 = vmatpush1.msra.mxu0 %v2255
        %4578 = vmatprep.subr.mxu0 %v2260
        %4579 = vmatpush1.msra.mxu0 %v2259
        %4580 = vmatprep.subr.mxu0 %v2264
        %4581 = vmatpush1.msra.mxu0 %v2263
        %4582 = vmatprep.subr.mxu0 %v2268
        %4583 = vmatpush1.msra.mxu0 %v2267
        %4584 = vmatprep.subr.mxu0 %v2272
        %4585 = vmatpush1.msra.mxu0 %v2271
        %4586 = vmatprep.subr.mxu0 %v2276
        %4587 = vmatpush1.msra.mxu0 %v2275
        %4588 = vmatprep.subr.mxu0 %v2280
        %4589 = vmatpush1.msra.mxu0 %v2279
        %4590 = vmatprep.subr.mxu0 %v2284
        %4591 = vmatpush1.msra.mxu0 %v2283
        %4592 = vmatprep.subr.mxu0 %v2288
        %4593 = vmatpush1.msra.mxu0 %v2287
        %4594 = vmatprep.subr.mxu0 %v2292
        %4595 = vmatpush1.msra.mxu0 %v2291
        %4596 = vmatprep.subr.mxu0 %v2296
        %4597 = vmatpush1.msra.mxu0 %v2295
        %4598 = vmatprep.subr.mxu0 %v2300
        %4599 = vmatpush1.msra.mxu0 %v2299
        %4600 = vmatprep.subr.mxu0 %v2304
        %4601 = vmatpush1.msra.mxu0 %v2303
        %4602 = vmatprep.subr.mxu0 %v2308
        %4603 = vmatpush1.msra.mxu0 %v2307
        %4604 = vmatprep.subr.mxu0 %v2312
        %4605 = vmatpush1.msra.mxu0 %v2311
        %4606 = vmatprep.subr.mxu0 %v2316
        %4607 = vmatpush1.msra.mxu0 %v2315
        %4608 = vmatprep.subr.mxu0 %v2320
        %4609 = vmatpush1.msra.mxu0 %v2319
        %4610 = vmatprep.subr.mxu0 %v2324
        %4611 = vmatpush1.msra.mxu0 %v2323
        %4612 = vmatprep.subr.mxu0 %v2328
        %4613 = vmatpush1.msra.mxu0 %v2327
        %4614 = vmatprep.subr.mxu0 %v2332
        %4615 = vmatpush1.msra.mxu0 %v2331
        %4616 = vmatprep.subr.mxu0 %v2336
        %4617 = vmatpush1.msra.mxu0 %v2335
        %4618 = vmatprep.subr.mxu0 %v2340
        %4619 = vmatpush1.msra.mxu0 %v2339
        %4620 = vmatprep.subr.mxu0 %v2344
        %4621 = vmatpush1.msra.mxu0 %v2343
        %4622 = vmatprep.subr.mxu0 %v2348
        %4623 = vmatpush1.msra.mxu0 %v2347
        %4624 = vmatprep.subr.mxu0 %v2352
        %4625 = vmatpush1.msra.mxu0 %v2351
        %4626 = vmatprep.subr.mxu0 %v2356
        %4627 = vmatpush1.msra.mxu0 %v2355
        %4628 = vmatprep.subr.mxu0 %v2360
        %4629 = vmatpush1.msra.mxu0 %v2359
        %4630 = vmatprep.subr.mxu0 %v2364
        %4631 = vmatpush1.msra.mxu0 %v2363
        %4632 = vmatprep.subr.mxu0 %v2368
        %4633 = vmatpush1.msra.mxu0 %v2367
        %4634 = vmatprep.mubr.f32.mxu0 %v316
        %4635 = vmatmul.mubr.f32.gmra.mrb[0].mxu0 %v315
        %v4636 = vpop.f32.mrb[0].mxu0
        %v4637 = vadd.f32 %v4566, %v4636
        %v4638 = vpop.f32.mrb[0].mxu0
        %v4639 = vadd.f32 %v4568, %v4638
        %4640 = vdwg.mxu0
        %v4641 = vadd.f32 %v317, %v3501
        %v4642 = vadd.f32 %v318, %v3503
        %v4643 = vadd.f32 %v319, %v4637
        %v4644 = vadd.f32 %v320, %v4639
        %4645 = vst [vmem:[%s248] sm:$0xff] %v4641
        %4646 = vst [vmem:[%s248 + $0x8] sm:$0xff] %v4642
        %4647 = vst [vmem:[%s248 + $0x10] sm:$0xff] %v4643
        %4648 = vst [vmem:[%s248 + $0x18] sm:$0xff] %v4644
        %p4649 = scmp.eq.s32.totalorder %s25, 7
        // Predicated region
        $region45: #{net0_forward.2} parent=31 // pred_check
          %p4650 = pneg %p4649
        $region46: #{net0_forward.2} parent=31 // pred_check_branch
          %4652 = sbr.rel (%p4650) target = $region48
        $region47: #{net0_forward.2} parent=31 // pred_region
          %v4653 = vld [vmem:[%s248] sm:$0xff]
          %v4654 = vld [vmem:[%s248 + $0x8] sm:$0xff]
          %v4655 = vld [vmem:[%s248 + $0x10] sm:$0xff]
          %v4656 = vld [vmem:[%s248 + $0x18] sm:$0xff]
          %v4657 = vmax.f32 %v4653, 0.0
          %v4658 = vmax.f32 %v4654, 0.0
          %v4659 = vmax.f32 %v4655, 0.0
          %v4660 = vmax.f32 %v4656, 0.0
          %4661 = vst [vmem:[%s248] sm:$0xff] %v4657
          %4662 = vst [vmem:[%s248 + $0x8] sm:$0xff] %v4658
          %4663 = vst [vmem:[%s248 + $0x10] sm:$0xff] %v4659
          %4664 = vst [vmem:[%s248 + $0x18] sm:$0xff] %v4660
        $region48: #{net0_forward.2} parent=31 // pred_fallthru
          _
        %s4665 = smul.u32 4, %s24
        %p4666 = scmp.lt.s32.totalorder %s4665, 7
        %s4667 = scalar_select %p4666, %s4665, 7
        %s4668 = smul.addr %s4667, 8
        %s4669 = scalar_lea.vmem %s3, %s4668
        // Predicated region
        $region49: #{net0_forward.2} parent=31 // pred_check
          %p4670 = pneg %p125
        $region50: #{net0_forward.2} parent=31 // pred_check_branch
          %4672 = sbr.rel (%p4670) target = $region52
        $region51: #{net0_forward.2} parent=31 // pred_region
          %s4673 = smul.u32 4, %s24
        $region52: #{net0_forward.2} parent=31 // pred_fallthru
          _
      $region32: #{net0_forward.2} parent=5 // pred_fallthru
        _
      %p4674 = scmp.le.s32.totalorder 2, %s15
      // Predicated region
      $region53: #{net0_forward.2} parent=5 // pred_check
        %p4675 = pneg %p4674
      $region54: #{net0_forward.2} parent=5 // pred_check_branch
        %4677 = sbr.rel (%p4675) target = $region56
      $region55: #{net0_forward.2} parent=5 // pred_region
        %s4678 = ssub.s32 %s15, 2
        // Predicated region
        $region57: #{net0_forward.2} parent=55 // pred_check
          %p4679 = pneg %p131
        $region58: #{net0_forward.2} parent=55 // pred_check_branch
          %4681 = sbr.rel (%p4679) target = $region60
        $region59: #{net0_forward.2} parent=55 // pred_region
          %s4682 = smul.u32 4, %s26
          %p4683 = scmp.lt.s32.totalorder %s4682, 7
          %s4684 = scalar_select %p4683, %s4682, 7
          %s4685 = smul.addr %s4684, 8
          %s4686 = scalar_lea.vmem %s3, %s4685
        $region60: #{net0_forward.2} parent=55 // pred_fallthru
          _
      $region56: #{net0_forward.2} parent=5 // pred_fallthru
        _
    $region6: #{net0_forward.2} parent=1 // loop_footer
      %s19 = sadd.s32 1, %s15
    $region7: #{net0_forward.2} parent=1 // loop_footer_branch
      %14 = sbr.rel target = $region3
    $region8: #{net0_forward.2} parent=1 // loop_exit
      _
    %4687 = vsyncpa [#allocation3], 1
    %s4688 = scalar_lea.sflag [#allocation3], 1
    %4689 = vsyncpa %s4688, 1
    %4690 = vsyncpa [#allocation5], 1
    %s4691 = scalar_lea.sflag [#allocation5], 1
    %4692 = vsyncpa %s4691, 1

</llo_original>
